<compile_context>
chip_gen: v6e
topology: v6e:2x2x1
jax: 0.10.0
libtpu: 0.0.40
codegen_flags: <defaults>
</compile_context>

<pallas_src>
import math
from functools import partial

import jax
import jax.numpy as jnp
from jax.experimental import pallas as pl
from jax.experimental.pallas import tpu as pltpu

_VMEM_LIMIT = 48 * 1024 * 1024
_LANE = 128
_SUBLANE = 16  # bf16 sublane minimum


# -------------------------- tiling helpers --------------------------

def _round_up(x, m):
    return (x + m - 1) // m * m


def _col_tile(p):
    """Largest lane tile (multiple of 128, <=512) dividing the padded dim p."""
    for c in (512, 384, 256, 128):
        if p % c == 0:
            return c
    return p


def _row_tile(m):
    """Largest row tile (multiple of 16, <=256) dividing the padded row count m."""
    for c in (256, 128, 64, 32, 16):
        if m % c == 0:
            return c
    return m


def _pad2(x, rows, cols):
    return jnp.pad(x, ((0, rows - x.shape[0]), (0, cols - x.shape[1])))


# -------------------------- kernels --------------------------

def _matmul_kernel(*refs, has_residual):
    """Tiled matmul, f32 accumulator scratch, optional residual-add epilogue."""
    if has_residual:
        x_ref, w_ref, b_ref, res_ref, o_ref, acc_ref = refs
    else:
        x_ref, w_ref, b_ref, o_ref, acc_ref = refs
        res_ref = None

    @pl.when(pl.program_id(2) == 0)
    def _():
        acc_ref[...] = jnp.zeros(acc_ref.shape, acc_ref.dtype)

    acc_ref[...] += jnp.dot(x_ref[...], w_ref[...],
                            preferred_element_type=jnp.float32)

    @pl.when(pl.program_id(2) == pl.num_programs(2) - 1)
    def _():
        y = acc_ref[...] + b_ref[...].astype(jnp.float32)
        if has_residual:
            y = y + res_ref[...].astype(jnp.float32)
        o_ref[...] = y.astype(o_ref.dtype)


def _ln_matmul_kernel(x_ref, g_ref, bln_ref, w_ref, b_ref, o_ref, xn_scr,
                      *, eps, real_k):
    """Fused LayerNorm + matmul; LN computed once per row block and cached."""
    @pl.when(pl.program_id(1) == 0)
    def _():
        x = x_ref[...].astype(jnp.float32)                 # (tm, Kp), padded cols are 0
        col = jax.lax.broadcasted_iota(jnp.int32, x.shape, 1)
        mean = jnp.sum(x, axis=-1, keepdims=True) * (1.0 / real_k)
        xc = jnp.where(col < real_k, x - mean, 0.0)        # torch-style biased var
        var = jnp.sum(xc * xc, axis=-1, keepdims=True) * (1.0 / real_k)
        xn = xc * jax.lax.rsqrt(var + eps) * g_ref[...] + bln_ref[...]
        xn_scr[...] = xn.astype(jnp.bfloat16)

    y = jnp.dot(xn_scr[...], w_ref[...],
                preferred_element_type=jnp.float32) + b_ref[...]
    o_ref[...] = y.astype(o_ref.dtype)


def _ln_ffn_kernel(x_ref, g_ref, bln_ref, w1_ref, b1_ref, w2_ref, b2_ref,
                   o_ref, xn_scr, acc_ref, *, eps, real_k):
    """LayerNorm + Linear(E->4E) + ReLU + Linear(4E->E) + residual add.

    Output block = full padded E, so the first GEMM runs once per hidden tile
    and the 4E hidden activation never hits HBM.
    """
    kh = pl.program_id(1)

    @pl.when(kh == 0)
    def _():
        x = x_ref[...].astype(jnp.float32)
        col = jax.lax.broadcasted_iota(jnp.int32, x.shape, 1)
        mean = jnp.sum(x, axis=-1, keepdims=True) * (1.0 / real_k)
        xc = jnp.where(col < real_k, x - mean, 0.0)
        var = jnp.sum(xc * xc, axis=-1, keepdims=True) * (1.0 / real_k)
        xn = xc * jax.lax.rsqrt(var + eps) * g_ref[...] + bln_ref[...]
        xn_scr[...] = xn.astype(jnp.bfloat16)
        acc_ref[...] = jnp.zeros(acc_ref.shape, acc_ref.dtype)

    h = jnp.dot(xn_scr[...], w1_ref[...],
                preferred_element_type=jnp.float32) + b1_ref[...]
    h = jnp.maximum(h, 0.0)
    acc_ref[...] += jnp.dot(h.astype(jnp.bfloat16), w2_ref[...],
                            preferred_element_type=jnp.float32)

    @pl.when(kh == pl.num_programs(1) - 1)
    def _():
        y = acc_ref[...] + b2_ref[...] + x_ref[...].astype(jnp.float32)
        o_ref[...] = y.astype(o_ref.dtype)


def _flash_attn_kernel(q_ref, k_ref, v_ref, o_ref, m_sc, l_sc, acc_sc,
                       *, scale, num_heads, head_dim, tq, tkv, hd_pad):
    """Flash-style causal attention, heads packed in the lane dimension.

    q/k/v blocks are (1, t, hd_pad) slices of the qkv slab; per-head lane slices
    are taken inside the kernel (no head transpose / 128-padding per head).
    Only the diagonal KV tile applies the iota mask; strictly-below tiles don't.
    """
    qi = pl.program_id(1)
    ki = pl.program_id(2)

    @pl.when(ki == 0)
    def _():
        m_sc[...] = jnp.full(m_sc.shape, -jnp.inf, jnp.float32)
        l_sc[...] = jnp.zeros(l_sc.shape, jnp.float32)
        acc_sc[...] = jnp.zeros(acc_sc.shape, jnp.float32)

    def process(masked):
        if masked:
            r = jax.lax.broadcasted_iota(jnp.int32, (tq, tkv), 0)
            c = jax.lax.broadcasted_iota(jnp.int32, (tq, tkv), 1)
            keep = c <= r  # diagonal tile: tq == tkv and same global offset
        for h in range(num_heads):
            lo, hi = h * head_dim, (h + 1) * head_dim
            qh = q_ref[0, :, lo:hi]                         # (tq, D) bf16
            kh = k_ref[0, :, lo:hi]                         # (tkv, D) bf16
            vh = v_ref[0, :, lo:hi]                         # (tkv, D) bf16
            s = jax.lax.dot_general(
                qh, kh, (((1,), (1,)), ((), ())),
                preferred_element_type=jnp.float32) * scale
            if masked:
                # Finite mask value: every row keeps its diagonal entry
                # (tq == tkv guaranteed), so no fully-masked rows exist.
                s = jnp.where(keep, s, -1e30)
            m_prev = m_sc[h]
            m_new = jnp.maximum(m_prev, jnp.max(s, axis=-1, keepdims=True))
            alpha = jnp.exp(m_prev - m_new)
            p = jnp.exp(s - m_new)
            l_sc[h] = alpha * l_sc[h] + jnp.sum(p, axis=-1, keepdims=True)
            acc_sc[h] = alpha * acc_sc[h] + jnp.dot(
                p.astype(jnp.bfloat16), vh, preferred_element_type=jnp.float32)
            m_sc[h] = m_new

    @pl.when(ki < qi)       # strictly below the diagonal: no masking needed
    def _():
        process(False)

    @pl.when(ki == qi)      # diagonal tile: mask, then finalize the output block
    def _():
        process(True)
        # approx reciprocal on the EUP: ~1e-3 rel error, fine for inference.
        outs = [acc_sc[h] * pl.reciprocal(l_sc[h], approx=True)
                for h in range(num_heads)]
        out = jnp.concatenate(outs, axis=-1)                # (tq, H*D)
        if hd_pad > num_heads * head_dim:
            out = jnp.concatenate(
                [out, jnp.zeros((tq, hd_pad - num_heads * head_dim), out.dtype)],
                axis=-1)
        o_ref[0] = out.astype(o_ref.dtype)


# -------------------------- pallas_call wrappers --------------------------

def linear_tiled(x, w, b, residual=None, out_dtype=jnp.bfloat16):
    """x:[Mp,Kp] bf16, w:[Kp,Np] bf16, b:[1,Np] f32 -> [Mp,Np]. All dims pre-padded."""
    Mp, Kp = x.shape
    Np = w.shape[1]
    tm, tn, tk = _row_tile(Mp), _col_tile(Np), _col_tile(Kp)

    in_specs = [
        pl.BlockSpec((tm, tk), lambda i, j, k: (i, k)),
        pl.BlockSpec((tk, tn), lambda i, j, k: (k, j)),
        pl.BlockSpec((1, tn), lambda i, j, k: (0, j)),
    ]
    args = [x, w, b]
    if residual is not None:
        in_specs.append(pl.BlockSpec((tm, tn), lambda i, j, k: (i, j)))
        args.append(residual)

    return pl.pallas_call(
        partial(_matmul_kernel, has_residual=residual is not None),
        grid=(Mp // tm, Np // tn, Kp // tk),
        in_specs=in_specs,
        out_specs=pl.BlockSpec((tm, tn), lambda i, j, k: (i, j)),
        out_shape=jax.ShapeDtypeStruct((Mp, Np), out_dtype),
        scratch_shapes=[pltpu.VMEM((tm, tn), jnp.float32)],
        compiler_params=pltpu.CompilerParams(
            dimension_semantics=("parallel", "parallel", "arbitrary"),
            vmem_limit_bytes=_VMEM_LIMIT),
    )(*args)


def fused_ln_linear(x, g, bln, w, b, *, real_k, eps=1e-5, out_dtype=jnp.bfloat16):
    """LayerNorm(x) @ w + b. x:[Mp,Kp] bf16, w:[Kp,Np] bf16 -> [Mp,Np] bf16."""
    Mp, Kp = x.shape
    Np = w.shape[1]
    tm, tn = _row_tile(Mp), _col_tile(Np)

    return pl.pallas_call(
        partial(_ln_matmul_kernel, eps=eps, real_k=real_k),
        grid=(Mp // tm, Np // tn),
        in_specs=[
            pl.BlockSpec((tm, Kp), lambda i, j: (i, 0)),
            pl.BlockSpec((1, Kp), lambda i, j: (0, 0)),
            pl.BlockSpec((1, Kp), lambda i, j: (0, 0)),
            pl.BlockSpec((Kp, tn), lambda i, j: (0, j)),
            pl.BlockSpec((1, tn), lambda i, j: (0, j)),
        ],
        out_specs=pl.BlockSpec((tm, tn), lambda i, j: (i, j)),
        out_shape=jax.ShapeDtypeStruct((Mp, Np), out_dtype),
        scratch_shapes=[pltpu.VMEM((tm, Kp), jnp.bfloat16)],
        compiler_params=pltpu.CompilerParams(
            # LN cached across j -> the j axis must stay sequential per core.
            dimension_semantics=("parallel", "arbitrary"),
            vmem_limit_bytes=_VMEM_LIMIT),
    )(x, g, bln, w, b)


def fused_ln_ffn(x, g, bln, w1, b1, w2, b2, *, real_k, eps=1e-5,
                 out_dtype=jnp.bfloat16):
    """x + Linear(ReLU(Linear(LN(x), w1, b1)), w2, b2). x:[Mp,Ep] bf16."""
    Mp, Ep = x.shape
    Fp = w1.shape[1]
    tm, tk = _row_tile(Mp), _col_tile(Fp)

    return pl.pallas_call(
        partial(_ln_ffn_kernel, eps=eps, real_k=real_k),
        grid=(Mp // tm, Fp // tk),
        in_specs=[
            pl.BlockSpec((tm, Ep), lambda i, k: (i, 0)),
            pl.BlockSpec((1, Ep), lambda i, k: (0, 0)),
            pl.BlockSpec((1, Ep), lambda i, k: (0, 0)),
            pl.BlockSpec((Ep, tk), lambda i, k: (0, k)),
            pl.BlockSpec((1, tk), lambda i, k: (0, k)),
            pl.BlockSpec((tk, Ep), lambda i, k: (k, 0)),
            pl.BlockSpec((1, Ep), lambda i, k: (0, 0)),
        ],
        out_specs=pl.BlockSpec((tm, Ep), lambda i, k: (i, 0)),
        out_shape=jax.ShapeDtypeStruct((Mp, Ep), out_dtype),
        scratch_shapes=[pltpu.VMEM((tm, Ep), jnp.bfloat16),
                        pltpu.VMEM((tm, Ep), jnp.float32)],
        compiler_params=pltpu.CompilerParams(
            dimension_semantics=("parallel", "arbitrary"),
            vmem_limit_bytes=_VMEM_LIMIT),
    )(x, g, bln, w1, b1, w2, b2)


def flash_causal_attention(qkv, num_heads, head_dim, hd_pad, seq_tile):
    """qkv: [B, Sp, 3*hd_pad] bf16 (q|k|v sections, heads packed in lanes).
    Returns [B, Sp, hd_pad] bf16, already in the layout the wo matmul wants."""
    B, Sp, _ = qkv.shape
    tq = tkv = seq_tile
    assert tq == tkv and Sp % tq == 0
    scale = 1.0 / math.sqrt(head_dim)
    nq = Sp // tq

    return pl.pallas_call(
        partial(_flash_attn_kernel, scale=scale, num_heads=num_heads,
                head_dim=head_dim, tq=tq, tkv=tkv, hd_pad=hd_pad),
        grid=(B, nq, nq),
        in_specs=[
            pl.BlockSpec((1, tq, hd_pad), lambda b, qi, ki: (b, qi, 0)),
            # causal clamp: above-diagonal steps reuse the resident block (no DMA)
            pl.BlockSpec((1, tkv, hd_pad),
                         lambda b, qi, ki: (b, jnp.minimum(ki, qi), 1)),
            pl.BlockSpec((1, tkv, hd_pad),
                         lambda b, qi, ki: (b, jnp.minimum(ki, qi), 2)),
        ],
        out_specs=pl.BlockSpec((1, tq, hd_pad), lambda b, qi, ki: (b, qi, 0)),
        out_shape=jax.ShapeDtypeStruct((B, Sp, hd_pad), jnp.bfloat16),
        scratch_shapes=[pltpu.VMEM((num_heads, tq, 1), jnp.float32),
                        pltpu.VMEM((num_heads, tq, 1), jnp.float32),
                        pltpu.VMEM((num_heads, tq, head_dim), jnp.float32)],
        compiler_params=pltpu.CompilerParams(
            dimension_semantics=("parallel", "parallel", "arbitrary"),
            vmem_limit_bytes=_VMEM_LIMIT),
    )(qkv, qkv, qkv)


# -------------------------- Parameter init (padded once) --------------------------

def _linear_init(key, fan_in, fan_out):
    kw, kb = jax.random.split(key)
    bound = 1.0 / math.sqrt(fan_in)
    w = jax.random.uniform(kw, (fan_in, fan_out), jnp.float32, -bound, bound)
    b = jax.random.uniform(kb, (fan_out,), jnp.float32, -bound, bound)
    return w, b


def init_gpt_params(key, vocab_size, max_seq_len, emb_size, num_heads, head_size,
                    num_layers):
    E, HD, F, V = emb_size, num_heads * head_size, 4 * emb_size, vocab_size
    Ep, HDp, Fp, Vp = (_round_up(d, _LANE) for d in (E, HD, F, V))

    def pad_w(w, rows, cols):
        return _pad2(w, rows, cols).astype(jnp.bfloat16)

    def pad_b(b, cols):
        return _pad2(b.reshape(1, -1).astype(jnp.float32), 1, cols)

    keys = jax.random.split(key, 3 + num_layers)
    params = {
        "tok_emb": _pad2(jax.random.normal(keys[0], (V, E), jnp.float32), V, Ep),
        "pos_emb": _pad2(jax.random.normal(keys[1], (max_seq_len, E), jnp.float32),
                         max_seq_len, Ep),
    }
    layers = []
    for l in range(num_layers):
        lk = jax.random.split(keys[2 + l], 6)
        wq, bq = _linear_init(lk[0], E, HD)
        wk, bk = _linear_init(lk[1], E, HD)
        wv, bv = _linear_init(lk[2], E, HD)
        wo, bo = _linear_init(lk[3], HD, E)
        w1, b1 = _linear_init(lk[4], E, F)
        w2, b2 = _linear_init(lk[5], F, E)
        layers.append(dict(
            # fused QKV projection; each section padded to HDp so q/k/v stay lane-aligned
            w_qkv=jnp.concatenate([pad_w(wq, Ep, HDp), pad_w(wk, Ep, HDp),
                                   pad_w(wv, Ep, HDp)], axis=1),
            b_qkv=jnp.concatenate([pad_b(bq, HDp), pad_b(bk, HDp),
                                   pad_b(bv, HDp)], axis=1),
            wo=pad_w(wo, HDp, Ep), bo=pad_b(bo, Ep),
            w1=pad_w(w1, Ep, Fp), b1=pad_b(b1, Fp),
            w2=pad_w(w2, Fp, Ep), b2=pad_b(b2, Ep),
            ln1_g=pad_b(jnp.ones((E,), jnp.float32), Ep),
            ln1_b=pad_b(jnp.zeros((E,), jnp.float32), Ep),
            ln2_g=pad_b(jnp.ones((E,), jnp.float32), Ep),
            ln2_b=pad_b(jnp.zeros((E,), jnp.float32), Ep),
        ))
    params["layers"] = layers
    lm_w, lm_b = _linear_init(keys[2 + num_layers], E, V)
    params["lm_w"] = pad_w(lm_w, Ep, Vp)
    params["lm_b"] = pad_b(lm_b, Vp)
    return params


# -------------------------- Forward pass --------------------------

def decoder_block(x, p, *, B, Sp, num_heads, head_size, emb_size, hd_pad, seq_tile):
    Mp = x.shape[0]
    # 1. fused LayerNorm + QKV projection -> [Mp, 3*HDp] bf16 (heads packed in lanes)
    qkv = fused_ln_linear(x, p["ln1_g"], p["ln1_b"], p["w_qkv"], p["b_qkv"],
                          real_k=emb_size)
    # 2. flash causal attention reading q/k/v straight out of the qkv slab
    attn = flash_causal_attention(qkv.reshape(B, Sp, 3 * hd_pad),
                                  num_heads, head_size, hd_pad, seq_tile)
    # 3. output projection + residual add fused into the epilogue
    x1 = linear_tiled(attn.reshape(Mp, hd_pad), p["wo"], p["bo"], residual=x)
    # 4. fused LayerNorm + FFN + residual; 4E hidden never hits HBM
    x2 = fused_ln_ffn(x1, p["ln2_g"], p["ln2_b"], p["w1"], p["b1"], p["w2"], p["b2"],
                      real_k=emb_size)
    return x2


def gpt_forward(params, tokens, *, num_heads, head_size, emb_size, vocab_size):
    B, S = tokens.shape
    Ep = params["tok_emb"].shape[1]
    Vp = params["lm_w"].shape[1]
    hd_pad = params["layers"][0]["wo"].shape[0]
    seq_tile = min(256, _round_up(S, _SUBLANE))
    Sp = _round_up(S, seq_tile)
    Mp = B * Sp

    # Embedding gathers stay in plain JAX (no rectangular BlockSpec for a gather).
    tok = jnp.take(params["tok_emb"], tokens, axis=0)          # [B, S, Ep] f32
    pos = params["pos_emb"][:S]                                 # [S, Ep]
    # TODO(synk): nn.Dropout is identity at inference; training-mode dropout not implemented.
    x = (tok + pos[None, :, :]).astype(jnp.bfloat16)
    x = jnp.pad(x, ((0, 0), (0, Sp - S), (0, 0))).reshape(Mp, Ep)  # single pad for whole net

    for p in params["layers"]:
        x = decoder_block(x, p, B=B, Sp=Sp, num_heads=num_heads, head_size=head_size,
                          emb_size=emb_size, hd_pad=hd_pad, seq_tile=seq_tile)

    logits = linear_tiled(x, params["lm_w"], params["lm_b"], out_dtype=jnp.float32)
    return logits.reshape(B, Sp, Vp)[:, :S, :vocab_size]       # single slice at the end


# -------------------------- Main --------------------------

if __name__ == "__main__":
    vocab_size, max_seq_len, emb_size = 64, 16, 32
    num_heads, head_size, num_layers = 4, 8, 2
    B, S = 2, 8

    key = jax.random.PRNGKey(0)
    pkey, tkey = jax.random.split(key)
    params = init_gpt_params(pkey, vocab_size, max_seq_len, emb_size,
                             num_heads, head_size, num_layers)
    tokens = jax.random.randint(tkey, (B, S), 0, vocab_size, dtype=jnp.int32)

    fwd = jax.jit(partial(gpt_forward, num_heads=num_heads, head_size=head_size,
                          emb_size=emb_size, vocab_size=vocab_size))
    logits = fwd(params, tokens)
    jax.block_until_ready(logits)

    assert logits.shape == (B, S, vocab_size), logits.shape
    assert logits.dtype == jnp.float32
    assert bool(jnp.all(jnp.isfinite(logits)))
    print("KERNEL_OK")
</pallas_src>

<mosaic_0001>
module attributes {stable_mosaic.version = 11 : i64} {
  func.func @_matmul_kernel(%arg0: i32, %arg1: i32, %arg2: i32, %arg3: memref<32x128xbf16, #tpu.memory_space<vmem>>, %arg4: memref<128x128xbf16, #tpu.memory_space<vmem>>, %arg5: memref<1x128xf32, #tpu.memory_space<vmem>>, %arg6: memref<32x128xbf16, #tpu.memory_space<vmem>>, %arg7: memref<32x128xbf16, #tpu.memory_space<vmem>>, %arg8: memref<32x128xf32, #tpu.memory_space<vmem>>) attributes {dimension_semantics = [#tpu.dimension_semantics<parallel>, #tpu.dimension_semantics<parallel>, #tpu.dimension_semantics<arbitrary>], iteration_bounds = array<i64: 1, 1, 1>, scalar_prefetch = 0 : i64, scratch_operands = 1 : i64, tpu.core_type = #tpu.core_type<tc>, window_params = [{transform_indices = @transform_0, window_bounds = array<i64: 32, 128>}, {transform_indices = @transform_1, window_bounds = array<i64: 128, 128>}, {transform_indices = @transform_2, window_bounds = array<i64: 1, 128>}, {transform_indices = @transform_3, window_bounds = array<i64: 32, 128>}, {transform_indices = @transform_4, window_bounds = array<i64: 32, 128>}]} {
    %c0_i32 = arith.constant 0 : i32
    %0 = arith.cmpi eq, %arg2, %c0_i32 : i32
    %1 = arith.extui %0 : i1 to i32
    %c0_i32_0 = arith.constant 0 : i32
    %2 = arith.cmpi ne, %1, %c0_i32_0 : i32
    scf.if %2 {
      %cst_10 = arith.constant 0.000000e+00 : f32
      %12 = vector.broadcast %cst_10 : f32 to vector<32x128xf32>
      %c0_11 = arith.constant 0 : index
      %c0_12 = arith.constant 0 : index
      %13 = vector.load %arg8[%c0_11, %c0_12] : memref<32x128xf32, #tpu.memory_space<vmem>>, vector<32x128xf32>
      tpu.vector_store %arg8[%c0_11, %c0_12], %12 {strides = array<i32>} : memref<32x128xf32, #tpu.memory_space<vmem>>, vector<32x128xf32>,
    } else {
    }
    %c0 = arith.constant 0 : index
    %c0_1 = arith.constant 0 : index
    %3 = vector.load %arg8[%c0, %c0_1] : memref<32x128xf32, #tpu.memory_space<vmem>>, vector<32x128xf32>
    %c0_2 = arith.constant 0 : index
    %c0_3 = arith.constant 0 : index
    %4 = vector.load %arg3[%c0_2, %c0_3] : memref<32x128xbf16, #tpu.memory_space<vmem>>, vector<32x128xbf16>
    %c0_4 = arith.constant 0 : index
    %c0_5 = arith.constant 0 : index
    %5 = vector.load %arg4[%c0_4, %c0_5] : memref<128x128xbf16, #tpu.memory_space<vmem>>, vector<128x128xbf16>
    %cst = arith.constant dense<0.000000e+00> : vector<32x128xf32>
    %6 = tpu.matmul %4, %5, %cst {dimension_numbers = #tpu.dot_dimension_numbers<[1], [0], [0], [1], [0, 0, 1, 1], [], []>} : vector<32x128xbf16>, vector<128x128xbf16>, vector<32x128xf32> -> vector<32x128xf32>
    %7 = arith.addf %3, %6 : vector<32x128xf32>
    %c0_6 = arith.constant 0 : index
    %c0_7 = arith.constant 0 : index
    %8 = vector.load %arg8[%c0_6, %c0_7] : memref<32x128xf32, #tpu.memory_space<vmem>>, vector<32x128xf32>
    tpu.vector_store %arg8[%c0_6, %c0_7], %7 {strides = array<i32>} : memref<32x128xf32, #tpu.memory_space<vmem>>, vector<32x128xf32>,
    %c0_i32_8 = arith.constant 0 : i32
    %9 = arith.cmpi eq, %arg2, %c0_i32_8 : i32
    %10 = arith.extui %9 : i1 to i32
    %c0_i32_9 = arith.constant 0 : i32
    %11 = arith.cmpi ne, %10, %c0_i32_9 : i32
    scf.if %11 {
      %c0_10 = arith.constant 0 : index
      %c0_11 = arith.constant 0 : index
      %12 = vector.load %arg8[%c0_10, %c0_11] : memref<32x128xf32, #tpu.memory_space<vmem>>, vector<32x128xf32>
      %c0_12 = arith.constant 0 : index
      %c0_13 = arith.constant 0 : index
      %13 = vector.load %arg5[%c0_12, %c0_13] : memref<1x128xf32, #tpu.memory_space<vmem>>, vector<1x128xf32>
      %14 = vector.broadcast %13 : vector<1x128xf32> to vector<32x128xf32>
      %15 = arith.addf %12, %14 : vector<32x128xf32>
      %c0_14 = arith.constant 0 : index
      %c0_15 = arith.constant 0 : index
      %16 = vector.load %arg6[%c0_14, %c0_15] : memref<32x128xbf16, #tpu.memory_space<vmem>>, vector<32x128xbf16>
      %17 = arith.extf %16 : vector<32x128xbf16> to vector<32x128xf32>
      %18 = arith.addf %15, %17 : vector<32x128xf32>
      %19 = arith.truncf %18 : vector<32x128xf32> to vector<32x128xbf16>
      %c0_16 = arith.constant 0 : index
      %c0_17 = arith.constant 0 : index
      %20 = vector.load %arg7[%c0_16, %c0_17] : memref<32x128xbf16, #tpu.memory_space<vmem>>, vector<32x128xbf16>
      tpu.vector_store %arg7[%c0_16, %c0_17], %19 {strides = array<i32>} : memref<32x128xbf16, #tpu.memory_space<vmem>>, vector<32x128xbf16>,
    } else {
    }
    return
  }
  func.func @transform_0(%arg0: i32, %arg1: i32, %arg2: i32) -> (i32, i32) {
    %c0_i32 = arith.constant 0 : i32
    return %arg0, %arg2 : i32, i32
  }
  func.func @transform_1(%arg0: i32, %arg1: i32, %arg2: i32) -> (i32, i32) {
    %c0_i32 = arith.constant 0 : i32
    return %arg2, %arg1 : i32, i32
  }
  func.func @transform_2(%arg0: i32, %arg1: i32, %arg2: i32) -> (i32, i32) {
    %c0_i32 = arith.constant 0 : i32
    %c0_i32_0 = arith.constant 0 : i32
    return %c0_i32, %arg1 : i32, i32
  }
  func.func @transform_3(%arg0: i32, %arg1: i32, %arg2: i32) -> (i32, i32) {
    %c0_i32 = arith.constant 0 : i32
    return %arg0, %arg1 : i32, i32
  }
  func.func @transform_4(%arg0: i32, %arg1: i32, %arg2: i32) -> (i32, i32) {
    %c0_i32 = arith.constant 0 : i32
    return %arg0, %arg1 : i32, i32
  }
}

module attributes {stable_mosaic.version = 11 : i64} {
  func.func @_ln_matmul_kernel(%arg0: i32, %arg1: i32, %arg2: memref<32x128xbf16, #tpu.memory_space<vmem>>, %arg3: memref<1x128xf32, #tpu.memory_space<vmem>>, %arg4: memref<1x128xf32, #tpu.memory_space<vmem>>, %arg5: memref<128x384xbf16, #tpu.memory_space<vmem>>, %arg6: memref<1x384xf32, #tpu.memory_space<vmem>>, %arg7: memref<32x384xbf16, #tpu.memory_space<vmem>>, %arg8: memref<32x128xbf16, #tpu.memory_space<vmem>>) attributes {dimension_semantics = [#tpu.dimension_semantics<parallel>, #tpu.dimension_semantics<arbitrary>], iteration_bounds = array<i64: 1, 1>, scalar_prefetch = 0 : i64, scratch_operands = 1 : i64, tpu.core_type = #tpu.core_type<tc>, window_params = [{transform_indices = @transform_0, window_bounds = array<i64: 32, 128>}, {pipeline_mode = #tpu.pipeline_mode<synchronous>, transform_indices = @transform_1, window_bounds = array<i64: 1, 128>}, {pipeline_mode = #tpu.pipeline_mode<synchronous>, transform_indices = @transform_2, window_bounds = array<i64: 1, 128>}, {transform_indices = @transform_3, window_bounds = array<i64: 128, 384>}, {transform_indices = @transform_4, window_bounds = array<i64: 1, 384>}, {transform_indices = @transform_5, window_bounds = array<i64: 32, 384>}]} {
    %c0_i32 = arith.constant 0 : i32
    %0 = arith.cmpi eq, %arg1, %c0_i32 : i32
    %1 = arith.extui %0 : i1 to i32
    %c0_i32_0 = arith.constant 0 : i32
    %2 = arith.cmpi ne, %1, %c0_i32_0 : i32
    scf.if %2 {
      %c0_8 = arith.constant 0 : index
      %c0_9 = arith.constant 0 : index
      %11 = vector.load %arg2[%c0_8, %c0_9] : memref<32x128xbf16, #tpu.memory_space<vmem>>, vector<32x128xbf16>
      %12 = arith.extf %11 : vector<32x128xbf16> to vector<32x128xf32>
      %13 = tpu.iota {dimensions = array<i32: 1>} : vector<32x128xi32>
      %cst_10 = arith.constant dense<0.000000e+00> : vector<32xf32>
      %14 = vector.multi_reduction <add>, %12, %cst_10 [1] : vector<32x128xf32> to vector<32xf32>
      %15 = vector.shape_cast %14 : vector<32xf32> to vector<32x1xf32>
      %cst_11 = arith.constant 3.125000e-02 : f32
      %16 = vector.broadcast %cst_11 : f32 to vector<32x1xf32>
      %17 = arith.mulf %15, %16 : vector<32x1xf32>
      %c32_i32 = arith.constant 32 : i32
      %18 = vector.broadcast %c32_i32 : i32 to vector<32x128xi32>
      %19 = arith.cmpi slt, %13, %18 : vector<32x128xi32>
      %20 = vector.broadcast %17 : vector<32x1xf32> to vector<32x128xf32>
      %21 = arith.subf %12, %20 : vector<32x128xf32>
      %cst_12 = arith.constant 0.000000e+00 : f32
      %22 = vector.broadcast %cst_12 : f32 to vector<32x128xf32>
      %23 = arith.select %19, %21, %22 : vector<32x128xi1>, vector<32x128xf32>
      %24 = arith.mulf %23, %23 : vector<32x128xf32>
      %cst_13 = arith.constant dense<0.000000e+00> : vector<32xf32>
      %25 = vector.multi_reduction <add>, %24, %cst_13 [1] : vector<32x128xf32> to vector<32xf32>
      %26 = vector.shape_cast %25 : vector<32xf32> to vector<32x1xf32>
      %cst_14 = arith.constant 3.125000e-02 : f32
      %27 = vector.broadcast %cst_14 : f32 to vector<32x1xf32>
      %28 = arith.mulf %26, %27 : vector<32x1xf32>
      %cst_15 = arith.constant 9.99999974E-6 : f32
      %29 = vector.broadcast %cst_15 : f32 to vector<32x1xf32>
      %30 = arith.addf %28, %29 : vector<32x1xf32>
      %31 = math.rsqrt %30 : vector<32x1xf32>
      %32 = vector.broadcast %31 : vector<32x1xf32> to vector<32x128xf32>
      %33 = arith.mulf %23, %32 : vector<32x128xf32>
      %c0_16 = arith.constant 0 : index
      %c0_17 = arith.constant 0 : index
      %34 = vector.load %arg3[%c0_16, %c0_17] : memref<1x128xf32, #tpu.memory_space<vmem>>, vector<1x128xf32>
      %35 = vector.broadcast %34 : vector<1x128xf32> to vector<32x128xf32>
      %36 = arith.mulf %33, %35 : vector<32x128xf32>
      %c0_18 = arith.constant 0 : index
      %c0_19 = arith.constant 0 : index
      %37 = vector.load %arg4[%c0_18, %c0_19] : memref<1x128xf32, #tpu.memory_space<vmem>>, vector<1x128xf32>
      %38 = vector.broadcast %37 : vector<1x128xf32> to vector<32x128xf32>
      %39 = arith.addf %36, %38 : vector<32x128xf32>
      %40 = arith.truncf %39 : vector<32x128xf32> to vector<32x128xbf16>
      %c0_20 = arith.constant 0 : index
      %c0_21 = arith.constant 0 : index
      %41 = vector.load %arg8[%c0_20, %c0_21] : memref<32x128xbf16, #tpu.memory_space<vmem>>, vector<32x128xbf16>
      tpu.vector_store %arg8[%c0_20, %c0_21], %40 {strides = array<i32>} : memref<32x128xbf16, #tpu.memory_space<vmem>>, vector<32x128xbf16>,
    } else {
    }
    %c0 = arith.constant 0 : index
    %c0_1 = arith.constant 0 : index
    %3 = vector.load %arg8[%c0, %c0_1] : memref<32x128xbf16, #tpu.memory_space<vmem>>, vector<32x128xbf16>
    %c0_2 = arith.constant 0 : index
    %c0_3 = arith.constant 0 : index
    %4 = vector.load %arg5[%c0_2, %c0_3] : memref<128x384xbf16, #tpu.memory_space<vmem>>, vector<128x384xbf16>
    %cst = arith.constant dense<0.000000e+00> : vector<32x384xf32>
    %5 = tpu.matmul %3, %4, %cst {dimension_numbers = #tpu.dot_dimension_numbers<[1], [0], [0], [1], [0, 0, 1, 1], [], []>} : vector<32x128xbf16>, vector<128x384xbf16>, vector<32x384xf32> -> vector<32x384xf32>
    %c0_4 = arith.constant 0 : index
    %c0_5 = arith.constant 0 : index
    %6 = vector.load %arg6[%c0_4, %c0_5] : memref<1x384xf32, #tpu.memory_space<vmem>>, vector<1x384xf32>
    %7 = vector.broadcast %6 : vector<1x384xf32> to vector<32x384xf32>
    %8 = arith.addf %5, %7 : vector<32x384xf32>
    %9 = arith.truncf %8 : vector<32x384xf32> to vector<32x384xbf16>
    %c0_6 = arith.constant 0 : index
    %c0_7 = arith.constant 0 : index
    %10 = vector.load %arg7[%c0_6, %c0_7] : memref<32x384xbf16, #tpu.memory_space<vmem>>, vector<32x384xbf16>
    tpu.vector_store %arg7[%c0_6, %c0_7], %9 {strides = array<i32>} : memref<32x384xbf16, #tpu.memory_space<vmem>>, vector<32x384xbf16>,
    return
  }
  func.func @transform_0(%arg0: i32, %arg1: i32) -> (i32, i32) {
    %c0_i32 = arith.constant 0 : i32
    %c0_i32_0 = arith.constant 0 : i32
    return %arg0, %c0_i32 : i32, i32
  }
  func.func @transform_1(%arg0: i32, %arg1: i32) -> (i32, i32) {
    %c0_i32 = arith.constant 0 : i32
    %c0_i32_0 = arith.constant 0 : i32
    %c0_i32_1 = arith.constant 0 : i32
    return %c0_i32, %c0_i32_0 : i32, i32
  }
  func.func @transform_2(%arg0: i32, %arg1: i32) -> (i32, i32) {
    %c0_i32 = arith.constant 0 : i32
    %c0_i32_0 = arith.constant 0 : i32
    %c0_i32_1 = arith.constant 0 : i32
    return %c0_i32, %c0_i32_0 : i32, i32
  }
  func.func @transform_3(%arg0: i32, %arg1: i32) -> (i32, i32) {
    %c0_i32 = arith.constant 0 : i32
    %c0_i32_0 = arith.constant 0 : i32
    return %c0_i32, %arg1 : i32, i32
  }
  func.func @transform_4(%arg0: i32, %arg1: i32) -> (i32, i32) {
    %c0_i32 = arith.constant 0 : i32
    %c0_i32_0 = arith.constant 0 : i32
    return %c0_i32, %arg1 : i32, i32
  }
  func.func @transform_5(%arg0: i32, %arg1: i32) -> (i32, i32) {
    %c0_i32 = arith.constant 0 : i32
    return %arg0, %arg1 : i32, i32
  }
}

module attributes {stable_mosaic.version = 11 : i64} {
  func.func @_ln_ffn_kernel(%arg0: i32, %arg1: i32, %arg2: memref<32x128xbf16, #tpu.memory_space<vmem>>, %arg3: memref<1x128xf32, #tpu.memory_space<vmem>>, %arg4: memref<1x128xf32, #tpu.memory_space<vmem>>, %arg5: memref<128x128xbf16, #tpu.memory_space<vmem>>, %arg6: memref<1x128xf32, #tpu.memory_space<vmem>>, %arg7: memref<128x128xbf16, #tpu.memory_space<vmem>>, %arg8: memref<1x128xf32, #tpu.memory_space<vmem>>, %arg9: memref<32x128xbf16, #tpu.memory_space<vmem>>, %arg10: memref<32x128xbf16, #tpu.memory_space<vmem>>, %arg11: memref<32x128xf32, #tpu.memory_space<vmem>>) attributes {dimension_semantics = [#tpu.dimension_semantics<parallel>, #tpu.dimension_semantics<arbitrary>], iteration_bounds = array<i64: 1, 1>, scalar_prefetch = 0 : i64, scratch_operands = 2 : i64, tpu.core_type = #tpu.core_type<tc>, window_params = [{transform_indices = @transform_0, window_bounds = array<i64: 32, 128>}, {pipeline_mode = #tpu.pipeline_mode<synchronous>, transform_indices = @transform_1, window_bounds = array<i64: 1, 128>}, {pipeline_mode = #tpu.pipeline_mode<synchronous>, transform_indices = @transform_2, window_bounds = array<i64: 1, 128>}, {transform_indices = @transform_3, window_bounds = array<i64: 128, 128>}, {transform_indices = @transform_4, window_bounds = array<i64: 1, 128>}, {transform_indices = @transform_5, window_bounds = array<i64: 128, 128>}, {pipeline_mode = #tpu.pipeline_mode<synchronous>, transform_indices = @transform_6, window_bounds = array<i64: 1, 128>}, {transform_indices = @transform_7, window_bounds = array<i64: 32, 128>}]} {
    %c0_i32 = arith.constant 0 : i32
    %0 = arith.cmpi eq, %arg1, %c0_i32 : i32
    %1 = arith.extui %0 : i1 to i32
    %c0_i32_0 = arith.constant 0 : i32
    %2 = arith.cmpi ne, %1, %c0_i32_0 : i32
    scf.if %2 {
      %c0_16 = arith.constant 0 : index
      %c0_17 = arith.constant 0 : index
      %20 = vector.load %arg2[%c0_16, %c0_17] : memref<32x128xbf16, #tpu.memory_space<vmem>>, vector<32x128xbf16>
      %21 = arith.extf %20 : vector<32x128xbf16> to vector<32x128xf32>
      %22 = tpu.iota {dimensions = array<i32: 1>} : vector<32x128xi32>
      %cst_18 = arith.constant dense<0.000000e+00> : vector<32xf32>
      %23 = vector.multi_reduction <add>, %21, %cst_18 [1] : vector<32x128xf32> to vector<32xf32>
      %24 = vector.shape_cast %23 : vector<32xf32> to vector<32x1xf32>
      %cst_19 = arith.constant 3.125000e-02 : f32
      %25 = vector.broadcast %cst_19 : f32 to vector<32x1xf32>
      %26 = arith.mulf %24, %25 : vector<32x1xf32>
      %c32_i32 = arith.constant 32 : i32
      %27 = vector.broadcast %c32_i32 : i32 to vector<32x128xi32>
      %28 = arith.cmpi slt, %22, %27 : vector<32x128xi32>
      %29 = vector.broadcast %26 : vector<32x1xf32> to vector<32x128xf32>
      %30 = arith.subf %21, %29 : vector<32x128xf32>
      %cst_20 = arith.constant 0.000000e+00 : f32
      %31 = vector.broadcast %cst_20 : f32 to vector<32x128xf32>
      %32 = arith.select %28, %30, %31 : vector<32x128xi1>, vector<32x128xf32>
      %33 = arith.mulf %32, %32 : vector<32x128xf32>
      %cst_21 = arith.constant dense<0.000000e+00> : vector<32xf32>
      %34 = vector.multi_reduction <add>, %33, %cst_21 [1] : vector<32x128xf32> to vector<32xf32>
      %35 = vector.shape_cast %34 : vector<32xf32> to vector<32x1xf32>
      %cst_22 = arith.constant 3.125000e-02 : f32
      %36 = vector.broadcast %cst_22 : f32 to vector<32x1xf32>
      %37 = arith.mulf %35, %36 : vector<32x1xf32>
      %cst_23 = arith.constant 9.99999974E-6 : f32
      %38 = vector.broadcast %cst_23 : f32 to vector<32x1xf32>
      %39 = arith.addf %37, %38 : vector<32x1xf32>
      %40 = math.rsqrt %39 : vector<32x1xf32>
      %41 = vector.broadcast %40 : vector<32x1xf32> to vector<32x128xf32>
      %42 = arith.mulf %32, %41 : vector<32x128xf32>
      %c0_24 = arith.constant 0 : index
      %c0_25 = arith.constant 0 : index
      %43 = vector.load %arg3[%c0_24, %c0_25] : memref<1x128xf32, #tpu.memory_space<vmem>>, vector<1x128xf32>
      %44 = vector.broadcast %43 : vector<1x128xf32> to vector<32x128xf32>
      %45 = arith.mulf %42, %44 : vector<32x128xf32>
      %c0_26 = arith.constant 0 : index
      %c0_27 = arith.constant 0 : index
      %46 = vector.load %arg4[%c0_26, %c0_27] : memref<1x128xf32, #tpu.memory_space<vmem>>, vector<1x128xf32>
      %47 = vector.broadcast %46 : vector<1x128xf32> to vector<32x128xf32>
      %48 = arith.addf %45, %47 : vector<32x128xf32>
      %49 = arith.truncf %48 : vector<32x128xf32> to vector<32x128xbf16>
      %c0_28 = arith.constant 0 : index
      %c0_29 = arith.constant 0 : index
      %50 = vector.load %arg10[%c0_28, %c0_29] : memref<32x128xbf16, #tpu.memory_space<vmem>>, vector<32x128xbf16>
      tpu.vector_store %arg10[%c0_28, %c0_29], %49 {strides = array<i32>} : memref<32x128xbf16, #tpu.memory_space<vmem>>, vector<32x128xbf16>,
      %cst_30 = arith.constant 0.000000e+00 : f32
      %51 = vector.broadcast %cst_30 : f32 to vector<32x128xf32>
      %c0_31 = arith.constant 0 : index
      %c0_32 = arith.constant 0 : index
      %52 = vector.load %arg11[%c0_31, %c0_32] : memref<32x128xf32, #tpu.memory_space<vmem>>, vector<32x128xf32>
      tpu.vector_store %arg11[%c0_31, %c0_32], %51 {strides = array<i32>} : memref<32x128xf32, #tpu.memory_space<vmem>>, vector<32x128xf32>,
    } else {
    }
    %c0 = arith.constant 0 : index
    %c0_1 = arith.constant 0 : index
    %3 = vector.load %arg10[%c0, %c0_1] : memref<32x128xbf16, #tpu.memory_space<vmem>>, vector<32x128xbf16>
    %c0_2 = arith.constant 0 : index
    %c0_3 = arith.constant 0 : index
    %4 = vector.load %arg5[%c0_2, %c0_3] : memref<128x128xbf16, #tpu.memory_space<vmem>>, vector<128x128xbf16>
    %cst = arith.constant dense<0.000000e+00> : vector<32x128xf32>
    %5 = tpu.matmul %3, %4, %cst {dimension_numbers = #tpu.dot_dimension_numbers<[1], [0], [0], [1], [0, 0, 1, 1], [], []>} : vector<32x128xbf16>, vector<128x128xbf16>, vector<32x128xf32> -> vector<32x128xf32>
    %c0_4 = arith.constant 0 : index
    %c0_5 = arith.constant 0 : index
    %6 = vector.load %arg6[%c0_4, %c0_5] : memref<1x128xf32, #tpu.memory_space<vmem>>, vector<1x128xf32>
    %7 = vector.broadcast %6 : vector<1x128xf32> to vector<32x128xf32>
    %8 = arith.addf %5, %7 : vector<32x128xf32>
    %cst_6 = arith.constant 0.000000e+00 : f32
    %9 = vector.broadcast %cst_6 : f32 to vector<32x128xf32>
    %10 = arith.maximumf %8, %9 : vector<32x128xf32>
    %c0_7 = arith.constant 0 : index
    %c0_8 = arith.constant 0 : index
    %11 = vector.load %arg11[%c0_7, %c0_8] : memref<32x128xf32, #tpu.memory_space<vmem>>, vector<32x128xf32>
    %12 = arith.truncf %10 : vector<32x128xf32> to vector<32x128xbf16>
    %c0_9 = arith.constant 0 : index
    %c0_10 = arith.constant 0 : index
    %13 = vector.load %arg7[%c0_9, %c0_10] : memref<128x128xbf16, #tpu.memory_space<vmem>>, vector<128x128xbf16>
    %cst_11 = arith.constant dense<0.000000e+00> : vector<32x128xf32>
    %14 = tpu.matmul %12, %13, %cst_11 {dimension_numbers = #tpu.dot_dimension_numbers<[1], [0], [0], [1], [0, 0, 1, 1], [], []>} : vector<32x128xbf16>, vector<128x128xbf16>, vector<32x128xf32> -> vector<32x128xf32>
    %15 = arith.addf %11, %14 : vector<32x128xf32>
    %c0_12 = arith.constant 0 : index
    %c0_13 = arith.constant 0 : index
    %16 = vector.load %arg11[%c0_12, %c0_13] : memref<32x128xf32, #tpu.memory_space<vmem>>, vector<32x128xf32>
    tpu.vector_store %arg11[%c0_12, %c0_13], %15 {strides = array<i32>} : memref<32x128xf32, #tpu.memory_space<vmem>>, vector<32x128xf32>,
    %c0_i32_14 = arith.constant 0 : i32
    %17 = arith.cmpi eq, %arg1, %c0_i32_14 : i32
    %18 = arith.extui %17 : i1 to i32
    %c0_i32_15 = arith.constant 0 : i32
    %19 = arith.cmpi ne, %18, %c0_i32_15 : i32
    scf.if %19 {
      %c0_16 = arith.constant 0 : index
      %c0_17 = arith.constant 0 : index
      %20 = vector.load %arg11[%c0_16, %c0_17] : memref<32x128xf32, #tpu.memory_space<vmem>>, vector<32x128xf32>
      %c0_18 = arith.constant 0 : index
      %c0_19 = arith.constant 0 : index
      %21 = vector.load %arg8[%c0_18, %c0_19] : memref<1x128xf32, #tpu.memory_space<vmem>>, vector<1x128xf32>
      %22 = vector.broadcast %21 : vector<1x128xf32> to vector<32x128xf32>
      %23 = arith.addf %20, %22 : vector<32x128xf32>
      %c0_20 = arith.constant 0 : index
      %c0_21 = arith.constant 0 : index
      %24 = vector.load %arg2[%c0_20, %c0_21] : memref<32x128xbf16, #tpu.memory_space<vmem>>, vector<32x128xbf16>
      %25 = arith.extf %24 : vector<32x128xbf16> to vector<32x128xf32>
      %26 = arith.addf %23, %25 : vector<32x128xf32>
      %27 = arith.truncf %26 : vector<32x128xf32> to vector<32x128xbf16>
      %c0_22 = arith.constant 0 : index
      %c0_23 = arith.constant 0 : index
      %28 = vector.load %arg9[%c0_22, %c0_23] : memref<32x128xbf16, #tpu.memory_space<vmem>>, vector<32x128xbf16>
      tpu.vector_store %arg9[%c0_22, %c0_23], %27 {strides = array<i32>} : memref<32x128xbf16, #tpu.memory_space<vmem>>, vector<32x128xbf16>,
    } else {
    }
    return
  }
  func.func @transform_0(%arg0: i32, %arg1: i32) -> (i32, i32) {
    %c0_i32 = arith.constant 0 : i32
    %c0_i32_0 = arith.constant 0 : i32
    return %arg0, %c0_i32 : i32, i32
  }
  func.func @transform_1(%arg0: i32, %arg1: i32) -> (i32, i32) {
    %c0_i32 = arith.constant 0 : i32
    %c0_i32_0 = arith.constant 0 : i32
    %c0_i32_1 = arith.constant 0 : i32
    return %c0_i32, %c0_i32_0 : i32, i32
  }
  func.func @transform_2(%arg0: i32, %arg1: i32) -> (i32, i32) {
    %c0_i32 = arith.constant 0 : i32
    %c0_i32_0 = arith.constant 0 : i32
    %c0_i32_1 = arith.constant 0 : i32
    return %c0_i32, %c0_i32_0 : i32, i32
  }
  func.func @transform_3(%arg0: i32, %arg1: i32) -> (i32, i32) {
    %c0_i32 = arith.constant 0 : i32
    %c0_i32_0 = arith.constant 0 : i32
    return %c0_i32, %arg1 : i32, i32
  }
  func.func @transform_4(%arg0: i32, %arg1: i32) -> (i32, i32) {
    %c0_i32 = arith.constant 0 : i32
    %c0_i32_0 = arith.constant 0 : i32
    return %c0_i32, %arg1 : i32, i32
  }
  func.func @transform_5(%arg0: i32, %arg1: i32) -> (i32, i32) {
    %c0_i32 = arith.constant 0 : i32
    %c0_i32_0 = arith.constant 0 : i32
    return %arg1, %c0_i32 : i32, i32
  }
  func.func @transform_6(%arg0: i32, %arg1: i32) -> (i32, i32) {
    %c0_i32 = arith.constant 0 : i32
    %c0_i32_0 = arith.constant 0 : i32
    %c0_i32_1 = arith.constant 0 : i32
    return %c0_i32, %c0_i32_0 : i32, i32
  }
  func.func @transform_7(%arg0: i32, %arg1: i32) -> (i32, i32) {
    %c0_i32 = arith.constant 0 : i32
    %c0_i32_0 = arith.constant 0 : i32
    return %arg0, %c0_i32 : i32, i32
  }
}

module attributes {stable_mosaic.version = 11 : i64} {
  func.func @_flash_attn_kernel(%arg0: i32, %arg1: i32, %arg2: i32, %arg3: memref<1x16x128xbf16, #tpu.memory_space<vmem>>, %arg4: memref<1x16x128xbf16, #tpu.memory_space<vmem>>, %arg5: memref<1x16x128xbf16, #tpu.memory_space<vmem>>, %arg6: memref<1x16x128xbf16, #tpu.memory_space<vmem>>, %arg7: memref<4x16x1xf32, #tpu.memory_space<vmem>>, %arg8: memref<4x16x1xf32, #tpu.memory_space<vmem>>, %arg9: memref<4x16x8xf32, #tpu.memory_space<vmem>>) attributes {dimension_semantics = [#tpu.dimension_semantics<parallel>, #tpu.dimension_semantics<parallel>, #tpu.dimension_semantics<arbitrary>], iteration_bounds = array<i64: 2, 1, 1>, scalar_prefetch = 0 : i64, scratch_operands = 3 : i64, tpu.core_type = #tpu.core_type<tc>, window_params = [{transform_indices = @transform_0, window_bounds = array<i64: 1, 16, 128>}, {transform_indices = @transform_1, window_bounds = array<i64: 1, 16, 128>}, {transform_indices = @transform_2, window_bounds = array<i64: 1, 16, 128>}, {transform_indices = @transform_3, window_bounds = array<i64: 1, 16, 128>}]} {
    %c0_i32 = arith.constant 0 : i32
    %0 = arith.cmpi eq, %arg2, %c0_i32 : i32
    %1 = arith.extui %0 : i1 to i32
    %c0_i32_0 = arith.constant 0 : i32
    %2 = arith.cmpi ne, %1, %c0_i32_0 : i32
    scf.if %2 {
      %cst = arith.constant 0xFF800000 : f32
      %9 = vector.broadcast %cst : f32 to vector<4x16x1xf32>
      %c0 = arith.constant 0 : index
      %c0_3 = arith.constant 0 : index
      %c0_4 = arith.constant 0 : index
      %10 = vector.load %arg7[%c0, %c0_3, %c0_4] : memref<4x16x1xf32, #tpu.memory_space<vmem>>, vector<4x16x1xf32>
      tpu.vector_store %arg7[%c0, %c0_3, %c0_4], %9 {strides = array<i32>} : memref<4x16x1xf32, #tpu.memory_space<vmem>>, vector<4x16x1xf32>,
      %cst_5 = arith.constant 0.000000e+00 : f32
      %11 = vector.broadcast %cst_5 : f32 to vector<4x16x1xf32>
      %c0_6 = arith.constant 0 : index
      %c0_7 = arith.constant 0 : index
      %c0_8 = arith.constant 0 : index
      %12 = vector.load %arg8[%c0_6, %c0_7, %c0_8] : memref<4x16x1xf32, #tpu.memory_space<vmem>>, vector<4x16x1xf32>
      tpu.vector_store %arg8[%c0_6, %c0_7, %c0_8], %11 {strides = array<i32>} : memref<4x16x1xf32, #tpu.memory_space<vmem>>, vector<4x16x1xf32>,
      %cst_9 = arith.constant 0.000000e+00 : f32
      %13 = vector.broadcast %cst_9 : f32 to vector<4x16x8xf32>
      %c0_10 = arith.constant 0 : index
      %c0_11 = arith.constant 0 : index
      %c0_12 = arith.constant 0 : index
      %14 = vector.load %arg9[%c0_10, %c0_11, %c0_12] : memref<4x16x8xf32, #tpu.memory_space<vmem>>, vector<4x16x8xf32>
      tpu.vector_store %arg9[%c0_10, %c0_11, %c0_12], %13 {strides = array<i32>} : memref<4x16x8xf32, #tpu.memory_space<vmem>>, vector<4x16x8xf32>,
    } else {
    }
    %3 = arith.cmpi slt, %arg2, %arg1 : i32
    %4 = arith.extui %3 : i1 to i32
    %c0_i32_1 = arith.constant 0 : i32
    %5 = arith.cmpi ne, %4, %c0_i32_1 : i32
    scf.if %5 {
      %c0 = arith.constant 0 : index
      %c0_3 = arith.constant 0 : index
      %c0_4 = arith.constant 0 : index
      %9 = vector.load %arg3[%c0, %c0_3, %c0_4] : memref<1x16x128xbf16, #tpu.memory_space<vmem>>, vector<1x16x8xbf16>
      %10 = vector.shape_cast %9 : vector<1x16x8xbf16> to vector<16x8xbf16>
      %c0_5 = arith.constant 0 : index
      %c0_6 = arith.constant 0 : index
      %c0_7 = arith.constant 0 : index
      %11 = vector.load %arg4[%c0_5, %c0_6, %c0_7] : memref<1x16x128xbf16, #tpu.memory_space<vmem>>, vector<1x16x8xbf16>
      %12 = vector.shape_cast %11 : vector<1x16x8xbf16> to vector<16x8xbf16>
      %c0_8 = arith.constant 0 : index
      %c0_9 = arith.constant 0 : index
      %c0_10 = arith.constant 0 : index
      %13 = vector.load %arg5[%c0_8, %c0_9, %c0_10] : memref<1x16x128xbf16, #tpu.memory_space<vmem>>, vector<1x16x8xbf16>
      %14 = vector.shape_cast %13 : vector<1x16x8xbf16> to vector<16x8xbf16>
      %cst = arith.constant dense<0.000000e+00> : vector<16x16xf32>
      %15 = tpu.matmul %10, %12, %cst {dimension_numbers = #tpu.dot_dimension_numbers<[1], [1], [0], [0], [0, 0, 1, 0], [], []>} : vector<16x8xbf16>, vector<16x8xbf16>, vector<16x16xf32> -> vector<16x16xf32>
      %cst_11 = arith.constant 0.353553385 : f32
      %16 = vector.broadcast %cst_11 : f32 to vector<16x16xf32>
      %17 = arith.mulf %15, %16 : vector<16x16xf32>
      %c0_12 = arith.constant 0 : index
      %c0_13 = arith.constant 0 : index
      %c0_14 = arith.constant 0 : index
      %18 = vector.load %arg7[%c0_12, %c0_13, %c0_14] : memref<4x16x1xf32, #tpu.memory_space<vmem>>, vector<1x16x1xf32>
      %19 = vector.shape_cast %18 : vector<1x16x1xf32> to vector<16x1xf32>
      %cst_15 = arith.constant dense<0xFF800000> : vector<16xf32>
      %20 = vector.multi_reduction <maximumf>, %17, %cst_15 [1] : vector<16x16xf32> to vector<16xf32>
      %21 = vector.shape_cast %20 : vector<16xf32> to vector<16x1xf32>
      %22 = arith.maximumf %19, %21 : vector<16x1xf32>
      %23 = arith.subf %19, %22 : vector<16x1xf32>
      %24 = math.exp %23 : vector<16x1xf32>
      %25 = vector.broadcast %22 : vector<16x1xf32> to vector<16x16xf32>
      %26 = arith.subf %17, %25 : vector<16x16xf32>
      %27 = math.exp %26 : vector<16x16xf32>
      %c0_16 = arith.constant 0 : index
      %c0_17 = arith.constant 0 : index
      %c0_18 = arith.constant 0 : index
      %28 = vector.load %arg8[%c0_16, %c0_17, %c0_18] : memref<4x16x1xf32, #tpu.memory_space<vmem>>, vector<1x16x1xf32>
      %29 = vector.shape_cast %28 : vector<1x16x1xf32> to vector<16x1xf32>
      %30 = arith.mulf %24, %29 : vector<16x1xf32>
      %cst_19 = arith.constant dense<0.000000e+00> : vector<16xf32>
      %31 = vector.multi_reduction <add>, %27, %cst_19 [1] : vector<16x16xf32> to vector<16xf32>
      %32 = vector.shape_cast %31 : vector<16xf32> to vector<16x1xf32>
      %33 = arith.addf %30, %32 : vector<16x1xf32>
      %c0_20 = arith.constant 0 : index
      %c0_21 = arith.constant 0 : index
      %c0_22 = arith.constant 0 : index
      %34 = vector.load %arg8[%c0_20, %c0_21, %c0_22] : memref<4x16x1xf32, #tpu.memory_space<vmem>>, vector<1x16x1xf32>
      %35 = vector.shape_cast %34 : vector<1x16x1xf32> to vector<16x1xf32>
      %36 = vector.shape_cast %33 : vector<16x1xf32> to vector<1x16x1xf32>
      tpu.vector_store %arg8[%c0_20, %c0_21, %c0_22], %36 {strides = array<i32>} : memref<4x16x1xf32, #tpu.memory_space<vmem>>, vector<1x16x1xf32>,
      %c0_23 = arith.constant 0 : index
      %c0_24 = arith.constant 0 : index
      %c0_25 = arith.constant 0 : index
      %37 = vector.load %arg9[%c0_23, %c0_24, %c0_25] : memref<4x16x8xf32, #tpu.memory_space<vmem>>, vector<1x16x8xf32>
      %38 = vector.shape_cast %37 : vector<1x16x8xf32> to vector<16x8xf32>
      %39 = vector.broadcast %24 : vector<16x1xf32> to vector<16x8xf32>
      %40 = arith.mulf %39, %38 : vector<16x8xf32>
      %41 = arith.truncf %27 : vector<16x16xf32> to vector<16x16xbf16>
      %cst_26 = arith.constant dense<0.000000e+00> : vector<16x8xf32>
      %42 = tpu.matmul %41, %14, %cst_26 {dimension_numbers = #tpu.dot_dimension_numbers<[1], [0], [0], [1], [0, 0, 1, 1], [], []>} : vector<16x16xbf16>, vector<16x8xbf16>, vector<16x8xf32> -> vector<16x8xf32>
      %43 = arith.addf %40, %42 : vector<16x8xf32>
      %c0_27 = arith.constant 0 : index
      %c0_28 = arith.constant 0 : index
      %c0_29 = arith.constant 0 : index
      %44 = vector.load %arg9[%c0_27, %c0_28, %c0_29] : memref<4x16x8xf32, #tpu.memory_space<vmem>>, vector<1x16x8xf32>
      %45 = vector.shape_cast %44 : vector<1x16x8xf32> to vector<16x8xf32>
      %46 = vector.shape_cast %43 : vector<16x8xf32> to vector<1x16x8xf32>
      tpu.vector_store %arg9[%c0_27, %c0_28, %c0_29], %46 {strides = array<i32>} : memref<4x16x8xf32, #tpu.memory_space<vmem>>, vector<1x16x8xf32>,
      %c0_30 = arith.constant 0 : index
      %c0_31 = arith.constant 0 : index
      %c0_32 = arith.constant 0 : index
      %47 = vector.load %arg7[%c0_30, %c0_31, %c0_32] : memref<4x16x1xf32, #tpu.memory_space<vmem>>, vector<1x16x1xf32>
      %48 = vector.shape_cast %47 : vector<1x16x1xf32> to vector<16x1xf32>
      %49 = vector.shape_cast %22 : vector<16x1xf32> to vector<1x16x1xf32>
      tpu.vector_store %arg7[%c0_30, %c0_31, %c0_32], %49 {strides = array<i32>} : memref<4x16x1xf32, #tpu.memory_space<vmem>>, vector<1x16x1xf32>,
      %c0_33 = arith.constant 0 : index
      %c0_34 = arith.constant 0 : index
      %c8 = arith.constant 8 : index
      %50 = vector.load %arg3[%c0_33, %c0_34, %c8] : memref<1x16x128xbf16, #tpu.memory_space<vmem>>, vector<1x16x8xbf16>
      %51 = vector.shape_cast %50 : vector<1x16x8xbf16> to vector<16x8xbf16>
      %c0_35 = arith.constant 0 : index
      %c0_36 = arith.constant 0 : index
      %c8_37 = arith.constant 8 : index
      %52 = vector.load %arg4[%c0_35, %c0_36, %c8_37] : memref<1x16x128xbf16, #tpu.memory_space<vmem>>, vector<1x16x8xbf16>
      %53 = vector.shape_cast %52 : vector<1x16x8xbf16> to vector<16x8xbf16>
      %c0_38 = arith.constant 0 : index
      %c0_39 = arith.constant 0 : index
      %c8_40 = arith.constant 8 : index
      %54 = vector.load %arg5[%c0_38, %c0_39, %c8_40] : memref<1x16x128xbf16, #tpu.memory_space<vmem>>, vector<1x16x8xbf16>
      %55 = vector.shape_cast %54 : vector<1x16x8xbf16> to vector<16x8xbf16>
      %cst_41 = arith.constant dense<0.000000e+00> : vector<16x16xf32>
      %56 = tpu.matmul %51, %53, %cst_41 {dimension_numbers = #tpu.dot_dimension_numbers<[1], [1], [0], [0], [0, 0, 1, 0], [], []>} : vector<16x8xbf16>, vector<16x8xbf16>, vector<16x16xf32> -> vector<16x16xf32>
      %cst_42 = arith.constant 0.353553385 : f32
      %57 = vector.broadcast %cst_42 : f32 to vector<16x16xf32>
      %58 = arith.mulf %56, %57 : vector<16x16xf32>
      %c1 = arith.constant 1 : index
      %c0_43 = arith.constant 0 : index
      %c0_44 = arith.constant 0 : index
      %59 = vector.load %arg7[%c1, %c0_43, %c0_44] : memref<4x16x1xf32, #tpu.memory_space<vmem>>, vector<1x16x1xf32>
      %60 = vector.shape_cast %59 : vector<1x16x1xf32> to vector<16x1xf32>
      %cst_45 = arith.constant dense<0xFF800000> : vector<16xf32>
      %61 = vector.multi_reduction <maximumf>, %58, %cst_45 [1] : vector<16x16xf32> to vector<16xf32>
      %62 = vector.shape_cast %61 : vector<16xf32> to vector<16x1xf32>
      %63 = arith.maximumf %60, %62 : vector<16x1xf32>
      %64 = arith.subf %60, %63 : vector<16x1xf32>
      %65 = math.exp %64 : vector<16x1xf32>
      %66 = vector.broadcast %63 : vector<16x1xf32> to vector<16x16xf32>
      %67 = arith.subf %58, %66 : vector<16x16xf32>
      %68 = math.exp %67 : vector<16x16xf32>
      %c1_46 = arith.constant 1 : index
      %c0_47 = arith.constant 0 : index
      %c0_48 = arith.constant 0 : index
      %69 = vector.load %arg8[%c1_46, %c0_47, %c0_48] : memref<4x16x1xf32, #tpu.memory_space<vmem>>, vector<1x16x1xf32>
      %70 = vector.shape_cast %69 : vector<1x16x1xf32> to vector<16x1xf32>
      %71 = arith.mulf %65, %70 : vector<16x1xf32>
      %cst_49 = arith.constant dense<0.000000e+00> : vector<16xf32>
      %72 = vector.multi_reduction <add>, %68, %cst_49 [1] : vector<16x16xf32> to vector<16xf32>
      %73 = vector.shape_cast %72 : vector<16xf32> to vector<16x1xf32>
      %74 = arith.addf %71, %73 : vector<16x1xf32>
      %c1_50 = arith.constant 1 : index
      %c0_51 = arith.constant 0 : index
      %c0_52 = arith.constant 0 : index
      %75 = vector.load %arg8[%c1_50, %c0_51, %c0_52] : memref<4x16x1xf32, #tpu.memory_space<vmem>>, vector<1x16x1xf32>
      %76 = vector.shape_cast %75 : vector<1x16x1xf32> to vector<16x1xf32>
      %77 = vector.shape_cast %74 : vector<16x1xf32> to vector<1x16x1xf32>
      tpu.vector_store %arg8[%c1_50, %c0_51, %c0_52], %77 {strides = array<i32>} : memref<4x16x1xf32, #tpu.memory_space<vmem>>, vector<1x16x1xf32>,
      %c1_53 = arith.constant 1 : index
      %c0_54 = arith.constant 0 : index
      %c0_55 = arith.constant 0 : index
      %78 = vector.load %arg9[%c1_53, %c0_54, %c0_55] : memref<4x16x8xf32, #tpu.memory_space<vmem>>, vector<1x16x8xf32>
      %79 = vector.shape_cast %78 : vector<1x16x8xf32> to vector<16x8xf32>
      %80 = vector.broadcast %65 : vector<16x1xf32> to vector<16x8xf32>
      %81 = arith.mulf %80, %79 : vector<16x8xf32>
      %82 = arith.truncf %68 : vector<16x16xf32> to vector<16x16xbf16>
      %cst_56 = arith.constant dense<0.000000e+00> : vector<16x8xf32>
      %83 = tpu.matmul %82, %55, %cst_56 {dimension_numbers = #tpu.dot_dimension_numbers<[1], [0], [0], [1], [0, 0, 1, 1], [], []>} : vector<16x16xbf16>, vector<16x8xbf16>, vector<16x8xf32> -> vector<16x8xf32>
      %84 = arith.addf %81, %83 : vector<16x8xf32>
      %c1_57 = arith.constant 1 : index
      %c0_58 = arith.constant 0 : index
      %c0_59 = arith.constant 0 : index
      %85 = vector.load %arg9[%c1_57, %c0_58, %c0_59] : memref<4x16x8xf32, #tpu.memory_space<vmem>>, vector<1x16x8xf32>
      %86 = vector.shape_cast %85 : vector<1x16x8xf32> to vector<16x8xf32>
      %87 = vector.shape_cast %84 : vector<16x8xf32> to vector<1x16x8xf32>
      tpu.vector_store %arg9[%c1_57, %c0_58, %c0_59], %87 {strides = array<i32>} : memref<4x16x8xf32, #tpu.memory_space<vmem>>, vector<1x16x8xf32>,
      %c1_60 = arith.constant 1 : index
      %c0_61 = arith.constant 0 : index
      %c0_62 = arith.constant 0 : index
      %88 = vector.load %arg7[%c1_60, %c0_61, %c0_62] : memref<4x16x1xf32, #tpu.memory_space<vmem>>, vector<1x16x1xf32>
      %89 = vector.shape_cast %88 : vector<1x16x1xf32> to vector<16x1xf32>
      %90 = vector.shape_cast %63 : vector<16x1xf32> to vector<1x16x1xf32>
      tpu.vector_store %arg7[%c1_60, %c0_61, %c0_62], %90 {strides = array<i32>} : memref<4x16x1xf32, #tpu.memory_space<vmem>>, vector<1x16x1xf32>,
      %c0_63 = arith.constant 0 : index
      %c0_64 = arith.constant 0 : index
      %c16 = arith.constant 16 : index
      %91 = vector.load %arg3[%c0_63, %c0_64, %c16] : memref<1x16x128xbf16, #tpu.memory_space<vmem>>, vector<1x16x8xbf16>
      %92 = vector.shape_cast %91 : vector<1x16x8xbf16> to vector<16x8xbf16>
      %c0_65 = arith.constant 0 : index
      %c0_66 = arith.constant 0 : index
      %c16_67 = arith.constant 16 : index
      %93 = vector.load %arg4[%c0_65, %c0_66, %c16_67] : memref<1x16x128xbf16, #tpu.memory_space<vmem>>, vector<1x16x8xbf16>
      %94 = vector.shape_cast %93 : vector<1x16x8xbf16> to vector<16x8xbf16>
      %c0_68 = arith.constant 0 : index
      %c0_69 = arith.constant 0 : index
      %c16_70 = arith.constant 16 : index
      %95 = vector.load %arg5[%c0_68, %c0_69, %c16_70] : memref<1x16x128xbf16, #tpu.memory_space<vmem>>, vector<1x16x8xbf16>
      %96 = vector.shape_cast %95 : vector<1x16x8xbf16> to vector<16x8xbf16>
      %cst_71 = arith.constant dense<0.000000e+00> : vector<16x16xf32>
      %97 = tpu.matmul %92, %94, %cst_71 {dimension_numbers = #tpu.dot_dimension_numbers<[1], [1], [0], [0], [0, 0, 1, 0], [], []>} : vector<16x8xbf16>, vector<16x8xbf16>, vector<16x16xf32> -> vector<16x16xf32>
      %cst_72 = arith.constant 0.353553385 : f32
      %98 = vector.broadcast %cst_72 : f32 to vector<16x16xf32>
      %99 = arith.mulf %97, %98 : vector<16x16xf32>
      %c2 = arith.constant 2 : index
      %c0_73 = arith.constant 0 : index
      %c0_74 = arith.constant 0 : index
      %100 = vector.load %arg7[%c2, %c0_73, %c0_74] : memref<4x16x1xf32, #tpu.memory_space<vmem>>, vector<1x16x1xf32>
      %101 = vector.shape_cast %100 : vector<1x16x1xf32> to vector<16x1xf32>
      %cst_75 = arith.constant dense<0xFF800000> : vector<16xf32>
      %102 = vector.multi_reduction <maximumf>, %99, %cst_75 [1] : vector<16x16xf32> to vector<16xf32>
      %103 = vector.shape_cast %102 : vector<16xf32> to vector<16x1xf32>
      %104 = arith.maximumf %101, %103 : vector<16x1xf32>
      %105 = arith.subf %101, %104 : vector<16x1xf32>
      %106 = math.exp %105 : vector<16x1xf32>
      %107 = vector.broadcast %104 : vector<16x1xf32> to vector<16x16xf32>
      %108 = arith.subf %99, %107 : vector<16x16xf32>
      %109 = math.exp %108 : vector<16x16xf32>
      %c2_76 = arith.constant 2 : index
      %c0_77 = arith.constant 0 : index
      %c0_78 = arith.constant 0 : index
      %110 = vector.load %arg8[%c2_76, %c0_77, %c0_78] : memref<4x16x1xf32, #tpu.memory_space<vmem>>, vector<1x16x1xf32>
      %111 = vector.shape_cast %110 : vector<1x16x1xf32> to vector<16x1xf32>
      %112 = arith.mulf %106, %111 : vector<16x1xf32>
      %cst_79 = arith.constant dense<0.000000e+00> : vector<16xf32>
      %113 = vector.multi_reduction <add>, %109, %cst_79 [1] : vector<16x16xf32> to vector<16xf32>
      %114 = vector.shape_cast %113 : vector<16xf32> to vector<16x1xf32>
      %115 = arith.addf %112, %114 : vector<16x1xf32>
      %c2_80 = arith.constant 2 : index
      %c0_81 = arith.constant 0 : index
      %c0_82 = arith.constant 0 : index
      %116 = vector.load %arg8[%c2_80, %c0_81, %c0_82] : memref<4x16x1xf32, #tpu.memory_space<vmem>>, vector<1x16x1xf32>
      %117 = vector.shape_cast %116 : vector<1x16x1xf32> to vector<16x1xf32>
      %118 = vector.shape_cast %115 : vector<16x1xf32> to vector<1x16x1xf32>
      tpu.vector_store %arg8[%c2_80, %c0_81, %c0_82], %118 {strides = array<i32>} : memref<4x16x1xf32, #tpu.memory_space<vmem>>, vector<1x16x1xf32>,
      %c2_83 = arith.constant 2 : index
      %c0_84 = arith.constant 0 : index
      %c0_85 = arith.constant 0 : index
      %119 = vector.load %arg9[%c2_83, %c0_84, %c0_85] : memref<4x16x8xf32, #tpu.memory_space<vmem>>, vector<1x16x8xf32>
      %120 = vector.shape_cast %119 : vector<1x16x8xf32> to vector<16x8xf32>
      %121 = vector.broadcast %106 : vector<16x1xf32> to vector<16x8xf32>
      %122 = arith.mulf %121, %120 : vector<16x8xf32>
      %123 = arith.truncf %109 : vector<16x16xf32> to vector<16x16xbf16>
      %cst_86 = arith.constant dense<0.000000e+00> : vector<16x8xf32>
      %124 = tpu.matmul %123, %96, %cst_86 {dimension_numbers = #tpu.dot_dimension_numbers<[1], [0], [0], [1], [0, 0, 1, 1], [], []>} : vector<16x16xbf16>, vector<16x8xbf16>, vector<16x8xf32> -> vector<16x8xf32>
      %125 = arith.addf %122, %124 : vector<16x8xf32>
      %c2_87 = arith.constant 2 : index
      %c0_88 = arith.constant 0 : index
      %c0_89 = arith.constant 0 : index
      %126 = vector.load %arg9[%c2_87, %c0_88, %c0_89] : memref<4x16x8xf32, #tpu.memory_space<vmem>>, vector<1x16x8xf32>
      %127 = vector.shape_cast %126 : vector<1x16x8xf32> to vector<16x8xf32>
      %128 = vector.shape_cast %125 : vector<16x8xf32> to vector<1x16x8xf32>
      tpu.vector_store %arg9[%c2_87, %c0_88, %c0_89], %128 {strides = array<i32>} : memref<4x16x8xf32, #tpu.memory_space<vmem>>, vector<1x16x8xf32>,
      %c2_90 = arith.constant 2 : index
      %c0_91 = arith.constant 0 : index
      %c0_92 = arith.constant 0 : index
      %129 = vector.load %arg7[%c2_90, %c0_91, %c0_92] : memref<4x16x1xf32, #tpu.memory_space<vmem>>, vector<1x16x1xf32>
      %130 = vector.shape_cast %129 : vector<1x16x1xf32> to vector<16x1xf32>
      %131 = vector.shape_cast %104 : vector<16x1xf32> to vector<1x16x1xf32>
      tpu.vector_store %arg7[%c2_90, %c0_91, %c0_92], %131 {strides = array<i32>} : memref<4x16x1xf32, #tpu.memory_space<vmem>>, vector<1x16x1xf32>,
      %c0_93 = arith.constant 0 : index
      %c0_94 = arith.constant 0 : index
      %c24 = arith.constant 24 : index
      %132 = vector.load %arg3[%c0_93, %c0_94, %c24] : memref<1x16x128xbf16, #tpu.memory_space<vmem>>, vector<1x16x8xbf16>
      %133 = vector.shape_cast %132 : vector<1x16x8xbf16> to vector<16x8xbf16>
      %c0_95 = arith.constant 0 : index
      %c0_96 = arith.constant 0 : index
      %c24_97 = arith.constant 24 : index
      %134 = vector.load %arg4[%c0_95, %c0_96, %c24_97] : memref<1x16x128xbf16, #tpu.memory_space<vmem>>, vector<1x16x8xbf16>
      %135 = vector.shape_cast %134 : vector<1x16x8xbf16> to vector<16x8xbf16>
      %c0_98 = arith.constant 0 : index
      %c0_99 = arith.constant 0 : index
      %c24_100 = arith.constant 24 : index
      %136 = vector.load %arg5[%c0_98, %c0_99, %c24_100] : memref<1x16x128xbf16, #tpu.memory_space<vmem>>, vector<1x16x8xbf16>
      %137 = vector.shape_cast %136 : vector<1x16x8xbf16> to vector<16x8xbf16>
      %cst_101 = arith.constant dense<0.000000e+00> : vector<16x16xf32>
      %138 = tpu.matmul %133, %135, %cst_101 {dimension_numbers = #tpu.dot_dimension_numbers<[1], [1], [0], [0], [0, 0, 1, 0], [], []>} : vector<16x8xbf16>, vector<16x8xbf16>, vector<16x16xf32> -> vector<16x16xf32>
      %cst_102 = arith.constant 0.353553385 : f32
      %139 = vector.broadcast %cst_102 : f32 to vector<16x16xf32>
      %140 = arith.mulf %138, %139 : vector<16x16xf32>
      %c3 = arith.constant 3 : index
      %c0_103 = arith.constant 0 : index
      %c0_104 = arith.constant 0 : index
      %141 = vector.load %arg7[%c3, %c0_103, %c0_104] : memref<4x16x1xf32, #tpu.memory_space<vmem>>, vector<1x16x1xf32>
      %142 = vector.shape_cast %141 : vector<1x16x1xf32> to vector<16x1xf32>
      %cst_105 = arith.constant dense<0xFF800000> : vector<16xf32>
      %143 = vector.multi_reduction <maximumf>, %140, %cst_105 [1] : vector<16x16xf32> to vector<16xf32>
      %144 = vector.shape_cast %143 : vector<16xf32> to vector<16x1xf32>
      %145 = arith.maximumf %142, %144 : vector<16x1xf32>
      %146 = arith.subf %142, %145 : vector<16x1xf32>
      %147 = math.exp %146 : vector<16x1xf32>
      %148 = vector.broadcast %145 : vector<16x1xf32> to vector<16x16xf32>
      %149 = arith.subf %140, %148 : vector<16x16xf32>
      %150 = math.exp %149 : vector<16x16xf32>
      %c3_106 = arith.constant 3 : index
      %c0_107 = arith.constant 0 : index
      %c0_108 = arith.constant 0 : index
      %151 = vector.load %arg8[%c3_106, %c0_107, %c0_108] : memref<4x16x1xf32, #tpu.memory_space<vmem>>, vector<1x16x1xf32>
      %152 = vector.shape_cast %151 : vector<1x16x1xf32> to vector<16x1xf32>
      %153 = arith.mulf %147, %152 : vector<16x1xf32>
      %cst_109 = arith.constant dense<0.000000e+00> : vector<16xf32>
      %154 = vector.multi_reduction <add>, %150, %cst_109 [1] : vector<16x16xf32> to vector<16xf32>
      %155 = vector.shape_cast %154 : vector<16xf32> to vector<16x1xf32>
      %156 = arith.addf %153, %155 : vector<16x1xf32>
      %c3_110 = arith.constant 3 : index
      %c0_111 = arith.constant 0 : index
      %c0_112 = arith.constant 0 : index
      %157 = vector.load %arg8[%c3_110, %c0_111, %c0_112] : memref<4x16x1xf32, #tpu.memory_space<vmem>>, vector<1x16x1xf32>
      %158 = vector.shape_cast %157 : vector<1x16x1xf32> to vector<16x1xf32>
      %159 = vector.shape_cast %156 : vector<16x1xf32> to vector<1x16x1xf32>
      tpu.vector_store %arg8[%c3_110, %c0_111, %c0_112], %159 {strides = array<i32>} : memref<4x16x1xf32, #tpu.memory_space<vmem>>, vector<1x16x1xf32>,
      %c3_113 = arith.constant 3 : index
      %c0_114 = arith.constant 0 : index
      %c0_115 = arith.constant 0 : index
      %160 = vector.load %arg9[%c3_113, %c0_114, %c0_115] : memref<4x16x8xf32, #tpu.memory_space<vmem>>, vector<1x16x8xf32>
      %161 = vector.shape_cast %160 : vector<1x16x8xf32> to vector<16x8xf32>
      %162 = vector.broadcast %147 : vector<16x1xf32> to vector<16x8xf32>
      %163 = arith.mulf %162, %161 : vector<16x8xf32>
      %164 = arith.truncf %150 : vector<16x16xf32> to vector<16x16xbf16>
      %cst_116 = arith.constant dense<0.000000e+00> : vector<16x8xf32>
      %165 = tpu.matmul %164, %137, %cst_116 {dimension_numbers = #tpu.dot_dimension_numbers<[1], [0], [0], [1], [0, 0, 1, 1], [], []>} : vector<16x16xbf16>, vector<16x8xbf16>, vector<16x8xf32> -> vector<16x8xf32>
      %166 = arith.addf %163, %165 : vector<16x8xf32>
      %c3_117 = arith.constant 3 : index
      %c0_118 = arith.constant 0 : index
      %c0_119 = arith.constant 0 : index
      %167 = vector.load %arg9[%c3_117, %c0_118, %c0_119] : memref<4x16x8xf32, #tpu.memory_space<vmem>>, vector<1x16x8xf32>
      %168 = vector.shape_cast %167 : vector<1x16x8xf32> to vector<16x8xf32>
      %169 = vector.shape_cast %166 : vector<16x8xf32> to vector<1x16x8xf32>
      tpu.vector_store %arg9[%c3_117, %c0_118, %c0_119], %169 {strides = array<i32>} : memref<4x16x8xf32, #tpu.memory_space<vmem>>, vector<1x16x8xf32>,
      %c3_120 = arith.constant 3 : index
      %c0_121 = arith.constant 0 : index
      %c0_122 = arith.constant 0 : index
      %170 = vector.load %arg7[%c3_120, %c0_121, %c0_122] : memref<4x16x1xf32, #tpu.memory_space<vmem>>, vector<1x16x1xf32>
      %171 = vector.shape_cast %170 : vector<1x16x1xf32> to vector<16x1xf32>
      %172 = vector.shape_cast %145 : vector<16x1xf32> to vector<1x16x1xf32>
      tpu.vector_store %arg7[%c3_120, %c0_121, %c0_122], %172 {strides = array<i32>} : memref<4x16x1xf32, #tpu.memory_space<vmem>>, vector<1x16x1xf32>,
    } else {
    }
    %6 = arith.cmpi eq, %arg2, %arg1 : i32
    %7 = arith.extui %6 : i1 to i32
    %c0_i32_2 = arith.constant 0 : i32
    %8 = arith.cmpi ne, %7, %c0_i32_2 : i32
    scf.if %8 {
      %9 = tpu.iota {dimensions = array<i32: 0>} : vector<16x16xi32>
      %10 = tpu.iota {dimensions = array<i32: 1>} : vector<16x16xi32>
      %11 = arith.cmpi sle, %10, %9 : vector<16x16xi32>
      %c0 = arith.constant 0 : index
      %c0_3 = arith.constant 0 : index
      %c0_4 = arith.constant 0 : index
      %12 = vector.load %arg3[%c0, %c0_3, %c0_4] : memref<1x16x128xbf16, #tpu.memory_space<vmem>>, vector<1x16x8xbf16>
      %13 = vector.shape_cast %12 : vector<1x16x8xbf16> to vector<16x8xbf16>
      %c0_5 = arith.constant 0 : index
      %c0_6 = arith.constant 0 : index
      %c0_7 = arith.constant 0 : index
      %14 = vector.load %arg4[%c0_5, %c0_6, %c0_7] : memref<1x16x128xbf16, #tpu.memory_space<vmem>>, vector<1x16x8xbf16>
      %15 = vector.shape_cast %14 : vector<1x16x8xbf16> to vector<16x8xbf16>
      %c0_8 = arith.constant 0 : index
      %c0_9 = arith.constant 0 : index
      %c0_10 = arith.constant 0 : index
      %16 = vector.load %arg5[%c0_8, %c0_9, %c0_10] : memref<1x16x128xbf16, #tpu.memory_space<vmem>>, vector<1x16x8xbf16>
      %17 = vector.shape_cast %16 : vector<1x16x8xbf16> to vector<16x8xbf16>
      %cst = arith.constant dense<0.000000e+00> : vector<16x16xf32>
      %18 = tpu.matmul %13, %15, %cst {dimension_numbers = #tpu.dot_dimension_numbers<[1], [1], [0], [0], [0, 0, 1, 0], [], []>} : vector<16x8xbf16>, vector<16x8xbf16>, vector<16x16xf32> -> vector<16x16xf32>
      %cst_11 = arith.constant 0.353553385 : f32
      %19 = vector.broadcast %cst_11 : f32 to vector<16x16xf32>
      %20 = arith.mulf %18, %19 : vector<16x16xf32>
      %cst_12 = arith.constant -1.000000e+30 : f32
      %21 = vector.broadcast %cst_12 : f32 to vector<16x16xf32>
      %22 = arith.select %11, %20, %21 : vector<16x16xi1>, vector<16x16xf32>
      %c0_13 = arith.constant 0 : index
      %c0_14 = arith.constant 0 : index
      %c0_15 = arith.constant 0 : index
      %23 = vector.load %arg7[%c0_13, %c0_14, %c0_15] : memref<4x16x1xf32, #tpu.memory_space<vmem>>, vector<1x16x1xf32>
      %24 = vector.shape_cast %23 : vector<1x16x1xf32> to vector<16x1xf32>
      %cst_16 = arith.constant dense<0xFF800000> : vector<16xf32>
      %25 = vector.multi_reduction <maximumf>, %22, %cst_16 [1] : vector<16x16xf32> to vector<16xf32>
      %26 = vector.shape_cast %25 : vector<16xf32> to vector<16x1xf32>
      %27 = arith.maximumf %24, %26 : vector<16x1xf32>
      %28 = arith.subf %24, %27 : vector<16x1xf32>
      %29 = math.exp %28 : vector<16x1xf32>
      %30 = vector.broadcast %27 : vector<16x1xf32> to vector<16x16xf32>
      %31 = arith.subf %22, %30 : vector<16x16xf32>
      %32 = math.exp %31 : vector<16x16xf32>
      %c0_17 = arith.constant 0 : index
      %c0_18 = arith.constant 0 : index
      %c0_19 = arith.constant 0 : index
      %33 = vector.load %arg8[%c0_17, %c0_18, %c0_19] : memref<4x16x1xf32, #tpu.memory_space<vmem>>, vector<1x16x1xf32>
      %34 = vector.shape_cast %33 : vector<1x16x1xf32> to vector<16x1xf32>
      %35 = arith.mulf %29, %34 : vector<16x1xf32>
      %cst_20 = arith.constant dense<0.000000e+00> : vector<16xf32>
      %36 = vector.multi_reduction <add>, %32, %cst_20 [1] : vector<16x16xf32> to vector<16xf32>
      %37 = vector.shape_cast %36 : vector<16xf32> to vector<16x1xf32>
      %38 = arith.addf %35, %37 : vector<16x1xf32>
      %c0_21 = arith.constant 0 : index
      %c0_22 = arith.constant 0 : index
      %c0_23 = arith.constant 0 : index
      %39 = vector.load %arg8[%c0_21, %c0_22, %c0_23] : memref<4x16x1xf32, #tpu.memory_space<vmem>>, vector<1x16x1xf32>
      %40 = vector.shape_cast %39 : vector<1x16x1xf32> to vector<16x1xf32>
      %41 = vector.shape_cast %38 : vector<16x1xf32> to vector<1x16x1xf32>
      tpu.vector_store %arg8[%c0_21, %c0_22, %c0_23], %41 {strides = array<i32>} : memref<4x16x1xf32, #tpu.memory_space<vmem>>, vector<1x16x1xf32>,
      %c0_24 = arith.constant 0 : index
      %c0_25 = arith.constant 0 : index
      %c0_26 = arith.constant 0 : index
      %42 = vector.load %arg9[%c0_24, %c0_25, %c0_26] : memref<4x16x8xf32, #tpu.memory_space<vmem>>, vector<1x16x8xf32>
      %43 = vector.shape_cast %42 : vector<1x16x8xf32> to vector<16x8xf32>
      %44 = vector.broadcast %29 : vector<16x1xf32> to vector<16x8xf32>
      %45 = arith.mulf %44, %43 : vector<16x8xf32>
      %46 = arith.truncf %32 : vector<16x16xf32> to vector<16x16xbf16>
      %cst_27 = arith.constant dense<0.000000e+00> : vector<16x8xf32>
      %47 = tpu.matmul %46, %17, %cst_27 {dimension_numbers = #tpu.dot_dimension_numbers<[1], [0], [0], [1], [0, 0, 1, 1], [], []>} : vector<16x16xbf16>, vector<16x8xbf16>, vector<16x8xf32> -> vector<16x8xf32>
      %48 = arith.addf %45, %47 : vector<16x8xf32>
      %c0_28 = arith.constant 0 : index
      %c0_29 = arith.constant 0 : index
      %c0_30 = arith.constant 0 : index
      %49 = vector.load %arg9[%c0_28, %c0_29, %c0_30] : memref<4x16x8xf32, #tpu.memory_space<vmem>>, vector<1x16x8xf32>
      %50 = vector.shape_cast %49 : vector<1x16x8xf32> to vector<16x8xf32>
      %51 = vector.shape_cast %48 : vector<16x8xf32> to vector<1x16x8xf32>
      tpu.vector_store %arg9[%c0_28, %c0_29, %c0_30], %51 {strides = array<i32>} : memref<4x16x8xf32, #tpu.memory_space<vmem>>, vector<1x16x8xf32>,
      %c0_31 = arith.constant 0 : index
      %c0_32 = arith.constant 0 : index
      %c0_33 = arith.constant 0 : index
      %52 = vector.load %arg7[%c0_31, %c0_32, %c0_33] : memref<4x16x1xf32, #tpu.memory_space<vmem>>, vector<1x16x1xf32>
      %53 = vector.shape_cast %52 : vector<1x16x1xf32> to vector<16x1xf32>
      %54 = vector.shape_cast %27 : vector<16x1xf32> to vector<1x16x1xf32>
      tpu.vector_store %arg7[%c0_31, %c0_32, %c0_33], %54 {strides = array<i32>} : memref<4x16x1xf32, #tpu.memory_space<vmem>>, vector<1x16x1xf32>,
      %c0_34 = arith.constant 0 : index
      %c0_35 = arith.constant 0 : index
      %c8 = arith.constant 8 : index
      %55 = vector.load %arg3[%c0_34, %c0_35, %c8] : memref<1x16x128xbf16, #tpu.memory_space<vmem>>, vector<1x16x8xbf16>
      %56 = vector.shape_cast %55 : vector<1x16x8xbf16> to vector<16x8xbf16>
      %c0_36 = arith.constant 0 : index
      %c0_37 = arith.constant 0 : index
      %c8_38 = arith.constant 8 : index
      %57 = vector.load %arg4[%c0_36, %c0_37, %c8_38] : memref<1x16x128xbf16, #tpu.memory_space<vmem>>, vector<1x16x8xbf16>
      %58 = vector.shape_cast %57 : vector<1x16x8xbf16> to vector<16x8xbf16>
      %c0_39 = arith.constant 0 : index
      %c0_40 = arith.constant 0 : index
      %c8_41 = arith.constant 8 : index
      %59 = vector.load %arg5[%c0_39, %c0_40, %c8_41] : memref<1x16x128xbf16, #tpu.memory_space<vmem>>, vector<1x16x8xbf16>
      %60 = vector.shape_cast %59 : vector<1x16x8xbf16> to vector<16x8xbf16>
      %cst_42 = arith.constant dense<0.000000e+00> : vector<16x16xf32>
      %61 = tpu.matmul %56, %58, %cst_42 {dimension_numbers = #tpu.dot_dimension_numbers<[1], [1], [0], [0], [0, 0, 1, 0], [], []>} : vector<16x8xbf16>, vector<16x8xbf16>, vector<16x16xf32> -> vector<16x16xf32>
      %cst_43 = arith.constant 0.353553385 : f32
      %62 = vector.broadcast %cst_43 : f32 to vector<16x16xf32>
      %63 = arith.mulf %61, %62 : vector<16x16xf32>
      %cst_44 = arith.constant -1.000000e+30 : f32
      %64 = vector.broadcast %cst_44 : f32 to vector<16x16xf32>
      %65 = arith.select %11, %63, %64 : vector<16x16xi1>, vector<16x16xf32>
      %c1 = arith.constant 1 : index
      %c0_45 = arith.constant 0 : index
      %c0_46 = arith.constant 0 : index
      %66 = vector.load %arg7[%c1, %c0_45, %c0_46] : memref<4x16x1xf32, #tpu.memory_space<vmem>>, vector<1x16x1xf32>
      %67 = vector.shape_cast %66 : vector<1x16x1xf32> to vector<16x1xf32>
      %cst_47 = arith.constant dense<0xFF800000> : vector<16xf32>
      %68 = vector.multi_reduction <maximumf>, %65, %cst_47 [1] : vector<16x16xf32> to vector<16xf32>
      %69 = vector.shape_cast %68 : vector<16xf32> to vector<16x1xf32>
      %70 = arith.maximumf %67, %69 : vector<16x1xf32>
      %71 = arith.subf %67, %70 : vector<16x1xf32>
      %72 = math.exp %71 : vector<16x1xf32>
      %73 = vector.broadcast %70 : vector<16x1xf32> to vector<16x16xf32>
      %74 = arith.subf %65, %73 : vector<16x16xf32>
      %75 = math.exp %74 : vector<16x16xf32>
      %c1_48 = arith.constant 1 : index
      %c0_49 = arith.constant 0 : index
      %c0_50 = arith.constant 0 : index
      %76 = vector.load %arg8[%c1_48, %c0_49, %c0_50] : memref<4x16x1xf32, #tpu.memory_space<vmem>>, vector<1x16x1xf32>
      %77 = vector.shape_cast %76 : vector<1x16x1xf32> to vector<16x1xf32>
      %78 = arith.mulf %72, %77 : vector<16x1xf32>
      %cst_51 = arith.constant dense<0.000000e+00> : vector<16xf32>
      %79 = vector.multi_reduction <add>, %75, %cst_51 [1] : vector<16x16xf32> to vector<16xf32>
      %80 = vector.shape_cast %79 : vector<16xf32> to vector<16x1xf32>
      %81 = arith.addf %78, %80 : vector<16x1xf32>
      %c1_52 = arith.constant 1 : index
      %c0_53 = arith.constant 0 : index
      %c0_54 = arith.constant 0 : index
      %82 = vector.load %arg8[%c1_52, %c0_53, %c0_54] : memref<4x16x1xf32, #tpu.memory_space<vmem>>, vector<1x16x1xf32>
      %83 = vector.shape_cast %82 : vector<1x16x1xf32> to vector<16x1xf32>
      %84 = vector.shape_cast %81 : vector<16x1xf32> to vector<1x16x1xf32>
      tpu.vector_store %arg8[%c1_52, %c0_53, %c0_54], %84 {strides = array<i32>} : memref<4x16x1xf32, #tpu.memory_space<vmem>>, vector<1x16x1xf32>,
      %c1_55 = arith.constant 1 : index
      %c0_56 = arith.constant 0 : index
      %c0_57 = arith.constant 0 : index
      %85 = vector.load %arg9[%c1_55, %c0_56, %c0_57] : memref<4x16x8xf32, #tpu.memory_space<vmem>>, vector<1x16x8xf32>
      %86 = vector.shape_cast %85 : vector<1x16x8xf32> to vector<16x8xf32>
      %87 = vector.broadcast %72 : vector<16x1xf32> to vector<16x8xf32>
      %88 = arith.mulf %87, %86 : vector<16x8xf32>
      %89 = arith.truncf %75 : vector<16x16xf32> to vector<16x16xbf16>
      %cst_58 = arith.constant dense<0.000000e+00> : vector<16x8xf32>
      %90 = tpu.matmul %89, %60, %cst_58 {dimension_numbers = #tpu.dot_dimension_numbers<[1], [0], [0], [1], [0, 0, 1, 1], [], []>} : vector<16x16xbf16>, vector<16x8xbf16>, vector<16x8xf32> -> vector<16x8xf32>
      %91 = arith.addf %88, %90 : vector<16x8xf32>
      %c1_59 = arith.constant 1 : index
      %c0_60 = arith.constant 0 : index
      %c0_61 = arith.constant 0 : index
      %92 = vector.load %arg9[%c1_59, %c0_60, %c0_61] : memref<4x16x8xf32, #tpu.memory_space<vmem>>, vector<1x16x8xf32>
      %93 = vector.shape_cast %92 : vector<1x16x8xf32> to vector<16x8xf32>
      %94 = vector.shape_cast %91 : vector<16x8xf32> to vector<1x16x8xf32>
      tpu.vector_store %arg9[%c1_59, %c0_60, %c0_61], %94 {strides = array<i32>} : memref<4x16x8xf32, #tpu.memory_space<vmem>>, vector<1x16x8xf32>,
      %c1_62 = arith.constant 1 : index
      %c0_63 = arith.constant 0 : index
      %c0_64 = arith.constant 0 : index
      %95 = vector.load %arg7[%c1_62, %c0_63, %c0_64] : memref<4x16x1xf32, #tpu.memory_space<vmem>>, vector<1x16x1xf32>
      %96 = vector.shape_cast %95 : vector<1x16x1xf32> to vector<16x1xf32>
      %97 = vector.shape_cast %70 : vector<16x1xf32> to vector<1x16x1xf32>
      tpu.vector_store %arg7[%c1_62, %c0_63, %c0_64], %97 {strides = array<i32>} : memref<4x16x1xf32, #tpu.memory_space<vmem>>, vector<1x16x1xf32>,
      %c0_65 = arith.constant 0 : index
      %c0_66 = arith.constant 0 : index
      %c16 = arith.constant 16 : index
      %98 = vector.load %arg3[%c0_65, %c0_66, %c16] : memref<1x16x128xbf16, #tpu.memory_space<vmem>>, vector<1x16x8xbf16>
      %99 = vector.shape_cast %98 : vector<1x16x8xbf16> to vector<16x8xbf16>
      %c0_67 = arith.constant 0 : index
      %c0_68 = arith.constant 0 : index
      %c16_69 = arith.constant 16 : index
      %100 = vector.load %arg4[%c0_67, %c0_68, %c16_69] : memref<1x16x128xbf16, #tpu.memory_space<vmem>>, vector<1x16x8xbf16>
      %101 = vector.shape_cast %100 : vector<1x16x8xbf16> to vector<16x8xbf16>
      %c0_70 = arith.constant 0 : index
      %c0_71 = arith.constant 0 : index
      %c16_72 = arith.constant 16 : index
      %102 = vector.load %arg5[%c0_70, %c0_71, %c16_72] : memref<1x16x128xbf16, #tpu.memory_space<vmem>>, vector<1x16x8xbf16>
      %103 = vector.shape_cast %102 : vector<1x16x8xbf16> to vector<16x8xbf16>
      %cst_73 = arith.constant dense<0.000000e+00> : vector<16x16xf32>
      %104 = tpu.matmul %99, %101, %cst_73 {dimension_numbers = #tpu.dot_dimension_numbers<[1], [1], [0], [0], [0, 0, 1, 0], [], []>} : vector<16x8xbf16>, vector<16x8xbf16>, vector<16x16xf32> -> vector<16x16xf32>
      %cst_74 = arith.constant 0.353553385 : f32
      %105 = vector.broadcast %cst_74 : f32 to vector<16x16xf32>
      %106 = arith.mulf %104, %105 : vector<16x16xf32>
      %cst_75 = arith.constant -1.000000e+30 : f32
      %107 = vector.broadcast %cst_75 : f32 to vector<16x16xf32>
      %108 = arith.select %11, %106, %107 : vector<16x16xi1>, vector<16x16xf32>
      %c2 = arith.constant 2 : index
      %c0_76 = arith.constant 0 : index
      %c0_77 = arith.constant 0 : index
      %109 = vector.load %arg7[%c2, %c0_76, %c0_77] : memref<4x16x1xf32, #tpu.memory_space<vmem>>, vector<1x16x1xf32>
      %110 = vector.shape_cast %109 : vector<1x16x1xf32> to vector<16x1xf32>
      %cst_78 = arith.constant dense<0xFF800000> : vector<16xf32>
      %111 = vector.multi_reduction <maximumf>, %108, %cst_78 [1] : vector<16x16xf32> to vector<16xf32>
      %112 = vector.shape_cast %111 : vector<16xf32> to vector<16x1xf32>
      %113 = arith.maximumf %110, %112 : vector<16x1xf32>
      %114 = arith.subf %110, %113 : vector<16x1xf32>
      %115 = math.exp %114 : vector<16x1xf32>
      %116 = vector.broadcast %113 : vector<16x1xf32> to vector<16x16xf32>
      %117 = arith.subf %108, %116 : vector<16x16xf32>
      %118 = math.exp %117 : vector<16x16xf32>
      %c2_79 = arith.constant 2 : index
      %c0_80 = arith.constant 0 : index
      %c0_81 = arith.constant 0 : index
      %119 = vector.load %arg8[%c2_79, %c0_80, %c0_81] : memref<4x16x1xf32, #tpu.memory_space<vmem>>, vector<1x16x1xf32>
      %120 = vector.shape_cast %119 : vector<1x16x1xf32> to vector<16x1xf32>
      %121 = arith.mulf %115, %120 : vector<16x1xf32>
      %cst_82 = arith.constant dense<0.000000e+00> : vector<16xf32>
      %122 = vector.multi_reduction <add>, %118, %cst_82 [1] : vector<16x16xf32> to vector<16xf32>
      %123 = vector.shape_cast %122 : vector<16xf32> to vector<16x1xf32>
      %124 = arith.addf %121, %123 : vector<16x1xf32>
      %c2_83 = arith.constant 2 : index
      %c0_84 = arith.constant 0 : index
      %c0_85 = arith.constant 0 : index
      %125 = vector.load %arg8[%c2_83, %c0_84, %c0_85] : memref<4x16x1xf32, #tpu.memory_space<vmem>>, vector<1x16x1xf32>
      %126 = vector.shape_cast %125 : vector<1x16x1xf32> to vector<16x1xf32>
      %127 = vector.shape_cast %124 : vector<16x1xf32> to vector<1x16x1xf32>
      tpu.vector_store %arg8[%c2_83, %c0_84, %c0_85], %127 {strides = array<i32>} : memref<4x16x1xf32, #tpu.memory_space<vmem>>, vector<1x16x1xf32>,
      %c2_86 = arith.constant 2 : index
      %c0_87 = arith.constant 0 : index
      %c0_88 = arith.constant 0 : index
      %128 = vector.load %arg9[%c2_86, %c0_87, %c0_88] : memref<4x16x8xf32, #tpu.memory_space<vmem>>, vector<1x16x8xf32>
      %129 = vector.shape_cast %128 : vector<1x16x8xf32> to vector<16x8xf32>
      %130 = vector.broadcast %115 : vector<16x1xf32> to vector<16x8xf32>
      %131 = arith.mulf %130, %129 : vector<16x8xf32>
      %132 = arith.truncf %118 : vector<16x16xf32> to vector<16x16xbf16>
      %cst_89 = arith.constant dense<0.000000e+00> : vector<16x8xf32>
      %133 = tpu.matmul %132, %103, %cst_89 {dimension_numbers = #tpu.dot_dimension_numbers<[1], [0], [0], [1], [0, 0, 1, 1], [], []>} : vector<16x16xbf16>, vector<16x8xbf16>, vector<16x8xf32> -> vector<16x8xf32>
      %134 = arith.addf %131, %133 : vector<16x8xf32>
      %c2_90 = arith.constant 2 : index
      %c0_91 = arith.constant 0 : index
      %c0_92 = arith.constant 0 : index
      %135 = vector.load %arg9[%c2_90, %c0_91, %c0_92] : memref<4x16x8xf32, #tpu.memory_space<vmem>>, vector<1x16x8xf32>
      %136 = vector.shape_cast %135 : vector<1x16x8xf32> to vector<16x8xf32>
      %137 = vector.shape_cast %134 : vector<16x8xf32> to vector<1x16x8xf32>
      tpu.vector_store %arg9[%c2_90, %c0_91, %c0_92], %137 {strides = array<i32>} : memref<4x16x8xf32, #tpu.memory_space<vmem>>, vector<1x16x8xf32>,
      %c2_93 = arith.constant 2 : index
      %c0_94 = arith.constant 0 : index
      %c0_95 = arith.constant 0 : index
      %138 = vector.load %arg7[%c2_93, %c0_94, %c0_95] : memref<4x16x1xf32, #tpu.memory_space<vmem>>, vector<1x16x1xf32>
      %139 = vector.shape_cast %138 : vector<1x16x1xf32> to vector<16x1xf32>
      %140 = vector.shape_cast %113 : vector<16x1xf32> to vector<1x16x1xf32>
      tpu.vector_store %arg7[%c2_93, %c0_94, %c0_95], %140 {strides = array<i32>} : memref<4x16x1xf32, #tpu.memory_space<vmem>>, vector<1x16x1xf32>,
      %c0_96 = arith.constant 0 : index
      %c0_97 = arith.constant 0 : index
      %c24 = arith.constant 24 : index
      %141 = vector.load %arg3[%c0_96, %c0_97, %c24] : memref<1x16x128xbf16, #tpu.memory_space<vmem>>, vector<1x16x8xbf16>
      %142 = vector.shape_cast %141 : vector<1x16x8xbf16> to vector<16x8xbf16>
      %c0_98 = arith.constant 0 : index
      %c0_99 = arith.constant 0 : index
      %c24_100 = arith.constant 24 : index
      %143 = vector.load %arg4[%c0_98, %c0_99, %c24_100] : memref<1x16x128xbf16, #tpu.memory_space<vmem>>, vector<1x16x8xbf16>
      %144 = vector.shape_cast %143 : vector<1x16x8xbf16> to vector<16x8xbf16>
      %c0_101 = arith.constant 0 : index
      %c0_102 = arith.constant 0 : index
      %c24_103 = arith.constant 24 : index
      %145 = vector.load %arg5[%c0_101, %c0_102, %c24_103] : memref<1x16x128xbf16, #tpu.memory_space<vmem>>, vector<1x16x8xbf16>
      %146 = vector.shape_cast %145 : vector<1x16x8xbf16> to vector<16x8xbf16>
      %cst_104 = arith.constant dense<0.000000e+00> : vector<16x16xf32>
      %147 = tpu.matmul %142, %144, %cst_104 {dimension_numbers = #tpu.dot_dimension_numbers<[1], [1], [0], [0], [0, 0, 1, 0], [], []>} : vector<16x8xbf16>, vector<16x8xbf16>, vector<16x16xf32> -> vector<16x16xf32>
      %cst_105 = arith.constant 0.353553385 : f32
      %148 = vector.broadcast %cst_105 : f32 to vector<16x16xf32>
      %149 = arith.mulf %147, %148 : vector<16x16xf32>
      %cst_106 = arith.constant -1.000000e+30 : f32
      %150 = vector.broadcast %cst_106 : f32 to vector<16x16xf32>
      %151 = arith.select %11, %149, %150 : vector<16x16xi1>, vector<16x16xf32>
      %c3 = arith.constant 3 : index
      %c0_107 = arith.constant 0 : index
      %c0_108 = arith.constant 0 : index
      %152 = vector.load %arg7[%c3, %c0_107, %c0_108] : memref<4x16x1xf32, #tpu.memory_space<vmem>>, vector<1x16x1xf32>
      %153 = vector.shape_cast %152 : vector<1x16x1xf32> to vector<16x1xf32>
      %cst_109 = arith.constant dense<0xFF800000> : vector<16xf32>
      %154 = vector.multi_reduction <maximumf>, %151, %cst_109 [1] : vector<16x16xf32> to vector<16xf32>
      %155 = vector.shape_cast %154 : vector<16xf32> to vector<16x1xf32>
      %156 = arith.maximumf %153, %155 : vector<16x1xf32>
      %157 = arith.subf %153, %156 : vector<16x1xf32>
      %158 = math.exp %157 : vector<16x1xf32>
      %159 = vector.broadcast %156 : vector<16x1xf32> to vector<16x16xf32>
      %160 = arith.subf %151, %159 : vector<16x16xf32>
      %161 = math.exp %160 : vector<16x16xf32>
      %c3_110 = arith.constant 3 : index
      %c0_111 = arith.constant 0 : index
      %c0_112 = arith.constant 0 : index
      %162 = vector.load %arg8[%c3_110, %c0_111, %c0_112] : memref<4x16x1xf32, #tpu.memory_space<vmem>>, vector<1x16x1xf32>
      %163 = vector.shape_cast %162 : vector<1x16x1xf32> to vector<16x1xf32>
      %164 = arith.mulf %158, %163 : vector<16x1xf32>
      %cst_113 = arith.constant dense<0.000000e+00> : vector<16xf32>
      %165 = vector.multi_reduction <add>, %161, %cst_113 [1] : vector<16x16xf32> to vector<16xf32>
      %166 = vector.shape_cast %165 : vector<16xf32> to vector<16x1xf32>
      %167 = arith.addf %164, %166 : vector<16x1xf32>
      %c3_114 = arith.constant 3 : index
      %c0_115 = arith.constant 0 : index
      %c0_116 = arith.constant 0 : index
      %168 = vector.load %arg8[%c3_114, %c0_115, %c0_116] : memref<4x16x1xf32, #tpu.memory_space<vmem>>, vector<1x16x1xf32>
      %169 = vector.shape_cast %168 : vector<1x16x1xf32> to vector<16x1xf32>
      %170 = vector.shape_cast %167 : vector<16x1xf32> to vector<1x16x1xf32>
      tpu.vector_store %arg8[%c3_114, %c0_115, %c0_116], %170 {strides = array<i32>} : memref<4x16x1xf32, #tpu.memory_space<vmem>>, vector<1x16x1xf32>,
      %c3_117 = arith.constant 3 : index
      %c0_118 = arith.constant 0 : index
      %c0_119 = arith.constant 0 : index
      %171 = vector.load %arg9[%c3_117, %c0_118, %c0_119] : memref<4x16x8xf32, #tpu.memory_space<vmem>>, vector<1x16x8xf32>
      %172 = vector.shape_cast %171 : vector<1x16x8xf32> to vector<16x8xf32>
      %173 = vector.broadcast %158 : vector<16x1xf32> to vector<16x8xf32>
      %174 = arith.mulf %173, %172 : vector<16x8xf32>
      %175 = arith.truncf %161 : vector<16x16xf32> to vector<16x16xbf16>
      %cst_120 = arith.constant dense<0.000000e+00> : vector<16x8xf32>
      %176 = tpu.matmul %175, %146, %cst_120 {dimension_numbers = #tpu.dot_dimension_numbers<[1], [0], [0], [1], [0, 0, 1, 1], [], []>} : vector<16x16xbf16>, vector<16x8xbf16>, vector<16x8xf32> -> vector<16x8xf32>
      %177 = arith.addf %174, %176 : vector<16x8xf32>
      %c3_121 = arith.constant 3 : index
      %c0_122 = arith.constant 0 : index
      %c0_123 = arith.constant 0 : index
      %178 = vector.load %arg9[%c3_121, %c0_122, %c0_123] : memref<4x16x8xf32, #tpu.memory_space<vmem>>, vector<1x16x8xf32>
      %179 = vector.shape_cast %178 : vector<1x16x8xf32> to vector<16x8xf32>
      %180 = vector.shape_cast %177 : vector<16x8xf32> to vector<1x16x8xf32>
      tpu.vector_store %arg9[%c3_121, %c0_122, %c0_123], %180 {strides = array<i32>} : memref<4x16x8xf32, #tpu.memory_space<vmem>>, vector<1x16x8xf32>,
      %c3_124 = arith.constant 3 : index
      %c0_125 = arith.constant 0 : index
      %c0_126 = arith.constant 0 : index
      %181 = vector.load %arg7[%c3_124, %c0_125, %c0_126] : memref<4x16x1xf32, #tpu.memory_space<vmem>>, vector<1x16x1xf32>
      %182 = vector.shape_cast %181 : vector<1x16x1xf32> to vector<16x1xf32>
      %183 = vector.shape_cast %156 : vector<16x1xf32> to vector<1x16x1xf32>
      tpu.vector_store %arg7[%c3_124, %c0_125, %c0_126], %183 {strides = array<i32>} : memref<4x16x1xf32, #tpu.memory_space<vmem>>, vector<1x16x1xf32>,
      %c0_127 = arith.constant 0 : index
      %c0_128 = arith.constant 0 : index
      %c0_129 = arith.constant 0 : index
      %184 = vector.load %arg9[%c0_127, %c0_128, %c0_129] : memref<4x16x8xf32, #tpu.memory_space<vmem>>, vector<1x16x8xf32>
      %185 = vector.shape_cast %184 : vector<1x16x8xf32> to vector<16x8xf32>
      %c0_130 = arith.constant 0 : index
      %c0_131 = arith.constant 0 : index
      %c0_132 = arith.constant 0 : index
      %186 = vector.load %arg8[%c0_130, %c0_131, %c0_132] : memref<4x16x1xf32, #tpu.memory_space<vmem>>, vector<1x16x1xf32>
      %187 = vector.shape_cast %186 : vector<1x16x1xf32> to vector<16x1xf32>
      %188 = tpu.reciprocal %187 {approx = true} : vector<16x1xf32> -> vector<16x1xf32>
      %189 = vector.broadcast %188 : vector<16x1xf32> to vector<16x8xf32>
      %190 = arith.mulf %185, %189 : vector<16x8xf32>
      %c1_133 = arith.constant 1 : index
      %c0_134 = arith.constant 0 : index
      %c0_135 = arith.constant 0 : index
      %191 = vector.load %arg9[%c1_133, %c0_134, %c0_135] : memref<4x16x8xf32, #tpu.memory_space<vmem>>, vector<1x16x8xf32>
      %192 = vector.shape_cast %191 : vector<1x16x8xf32> to vector<16x8xf32>
      %c1_136 = arith.constant 1 : index
      %c0_137 = arith.constant 0 : index
      %c0_138 = arith.constant 0 : index
      %193 = vector.load %arg8[%c1_136, %c0_137, %c0_138] : memref<4x16x1xf32, #tpu.memory_space<vmem>>, vector<1x16x1xf32>
      %194 = vector.shape_cast %193 : vector<1x16x1xf32> to vector<16x1xf32>
      %195 = tpu.reciprocal %194 {approx = true} : vector<16x1xf32> -> vector<16x1xf32>
      %196 = vector.broadcast %195 : vector<16x1xf32> to vector<16x8xf32>
      %197 = arith.mulf %192, %196 : vector<16x8xf32>
      %c2_139 = arith.constant 2 : index
      %c0_140 = arith.constant 0 : index
      %c0_141 = arith.constant 0 : index
      %198 = vector.load %arg9[%c2_139, %c0_140, %c0_141] : memref<4x16x8xf32, #tpu.memory_space<vmem>>, vector<1x16x8xf32>
      %199 = vector.shape_cast %198 : vector<1x16x8xf32> to vector<16x8xf32>
      %c2_142 = arith.constant 2 : index
      %c0_143 = arith.constant 0 : index
      %c0_144 = arith.constant 0 : index
      %200 = vector.load %arg8[%c2_142, %c0_143, %c0_144] : memref<4x16x1xf32, #tpu.memory_space<vmem>>, vector<1x16x1xf32>
      %201 = vector.shape_cast %200 : vector<1x16x1xf32> to vector<16x1xf32>
      %202 = tpu.reciprocal %201 {approx = true} : vector<16x1xf32> -> vector<16x1xf32>
      %203 = vector.broadcast %202 : vector<16x1xf32> to vector<16x8xf32>
      %204 = arith.mulf %199, %203 : vector<16x8xf32>
      %c3_145 = arith.constant 3 : index
      %c0_146 = arith.constant 0 : index
      %c0_147 = arith.constant 0 : index
      %205 = vector.load %arg9[%c3_145, %c0_146, %c0_147] : memref<4x16x8xf32, #tpu.memory_space<vmem>>, vector<1x16x8xf32>
      %206 = vector.shape_cast %205 : vector<1x16x8xf32> to vector<16x8xf32>
      %c3_148 = arith.constant 3 : index
      %c0_149 = arith.constant 0 : index
      %c0_150 = arith.constant 0 : index
      %207 = vector.load %arg8[%c3_148, %c0_149, %c0_150] : memref<4x16x1xf32, #tpu.memory_space<vmem>>, vector<1x16x1xf32>
      %208 = vector.shape_cast %207 : vector<1x16x1xf32> to vector<16x1xf32>
      %209 = tpu.reciprocal %208 {approx = true} : vector<16x1xf32> -> vector<16x1xf32>
      %210 = vector.broadcast %209 : vector<16x1xf32> to vector<16x8xf32>
      %211 = arith.mulf %206, %210 : vector<16x8xf32>
      %212 = tpu.concatenate %190, %197, %204, %211 in 1 : vector<16x8xf32>, vector<16x8xf32>, vector<16x8xf32>, vector<16x8xf32> -> vector<16x32xf32>
      %cst_151 = arith.constant 0.000000e+00 : f32
      %213 = vector.broadcast %cst_151 : f32 to vector<16x96xf32>
      %214 = tpu.concatenate %212, %213 in 1 : vector<16x32xf32>, vector<16x96xf32> -> vector<16x128xf32>
      %215 = arith.truncf %214 : vector<16x128xf32> to vector<16x128xbf16>
      %c0_152 = arith.constant 0 : index
      %c0_153 = arith.constant 0 : index
      %c0_154 = arith.constant 0 : index
      %216 = vector.load %arg6[%c0_152, %c0_153, %c0_154] : memref<1x16x128xbf16, #tpu.memory_space<vmem>>, vector<1x16x128xbf16>
      %217 = vector.shape_cast %216 : vector<1x16x128xbf16> to vector<16x128xbf16>
      %218 = vector.shape_cast %215 : vector<16x128xbf16> to vector<1x16x128xbf16>
      tpu.vector_store %arg6[%c0_152, %c0_153, %c0_154], %218 {strides = array<i32>} : memref<1x16x128xbf16, #tpu.memory_space<vmem>>, vector<1x16x128xbf16>,
    } else {
    }
    return
  }
  func.func @transform_0(%arg0: i32, %arg1: i32, %arg2: i32) -> (i32, i32, i32) {
    %c0_i32 = arith.constant 0 : i32
    %c0_i32_0 = arith.constant 0 : i32
    return %arg0, %arg1, %c0_i32 : i32, i32, i32
  }
  func.func @transform_1(%arg0: i32, %arg1: i32, %arg2: i32) -> (i32, i32, i32) {
    %0 = arith.minsi %arg2, %arg1 : i32
    %c1_i32 = arith.constant 1 : i32
    %c0_i32 = arith.constant 0 : i32
    return %arg0, %0, %c1_i32 : i32, i32, i32
  }
  func.func @transform_2(%arg0: i32, %arg1: i32, %arg2: i32) -> (i32, i32, i32) {
    %0 = arith.minsi %arg2, %arg1 : i32
    %c2_i32 = arith.constant 2 : i32
    %c0_i32 = arith.constant 0 : i32
    return %arg0, %0, %c2_i32 : i32, i32, i32
  }
  func.func @transform_3(%arg0: i32, %arg1: i32, %arg2: i32) -> (i32, i32, i32) {
    %c0_i32 = arith.constant 0 : i32
    %c0_i32_0 = arith.constant 0 : i32
    return %arg0, %arg1, %c0_i32 : i32, i32, i32
  }
}

module attributes {stable_mosaic.version = 11 : i64} {
  func.func @_matmul_kernel(%arg0: i32, %arg1: i32, %arg2: i32, %arg3: memref<32x128xbf16, #tpu.memory_space<vmem>>, %arg4: memref<128x128xbf16, #tpu.memory_space<vmem>>, %arg5: memref<1x128xf32, #tpu.memory_space<vmem>>, %arg6: memref<32x128xf32, #tpu.memory_space<vmem>>, %arg7: memref<32x128xf32, #tpu.memory_space<vmem>>) attributes {dimension_semantics = [#tpu.dimension_semantics<parallel>, #tpu.dimension_semantics<parallel>, #tpu.dimension_semantics<arbitrary>], iteration_bounds = array<i64: 1, 1, 1>, scalar_prefetch = 0 : i64, scratch_operands = 1 : i64, tpu.core_type = #tpu.core_type<tc>, window_params = [{transform_indices = @transform_0, window_bounds = array<i64: 32, 128>}, {transform_indices = @transform_1, window_bounds = array<i64: 128, 128>}, {transform_indices = @transform_2, window_bounds = array<i64: 1, 128>}, {transform_indices = @transform_3, window_bounds = array<i64: 32, 128>}]} {
    %c0_i32 = arith.constant 0 : i32
    %0 = arith.cmpi eq, %arg2, %c0_i32 : i32
    %1 = arith.extui %0 : i1 to i32
    %c0_i32_0 = arith.constant 0 : i32
    %2 = arith.cmpi ne, %1, %c0_i32_0 : i32
    scf.if %2 {
      %cst_10 = arith.constant 0.000000e+00 : f32
      %12 = vector.broadcast %cst_10 : f32 to vector<32x128xf32>
      %c0_11 = arith.constant 0 : index
      %c0_12 = arith.constant 0 : index
      %13 = vector.load %arg7[%c0_11, %c0_12] : memref<32x128xf32, #tpu.memory_space<vmem>>, vector<32x128xf32>
      tpu.vector_store %arg7[%c0_11, %c0_12], %12 {strides = array<i32>} : memref<32x128xf32, #tpu.memory_space<vmem>>, vector<32x128xf32>,
    } else {
    }
    %c0 = arith.constant 0 : index
    %c0_1 = arith.constant 0 : index
    %3 = vector.load %arg7[%c0, %c0_1] : memref<32x128xf32, #tpu.memory_space<vmem>>, vector<32x128xf32>
    %c0_2 = arith.constant 0 : index
    %c0_3 = arith.constant 0 : index
    %4 = vector.load %arg3[%c0_2, %c0_3] : memref<32x128xbf16, #tpu.memory_space<vmem>>, vector<32x128xbf16>
    %c0_4 = arith.constant 0 : index
    %c0_5 = arith.constant 0 : index
    %5 = vector.load %arg4[%c0_4, %c0_5] : memref<128x128xbf16, #tpu.memory_space<vmem>>, vector<128x128xbf16>
    %cst = arith.constant dense<0.000000e+00> : vector<32x128xf32>
    %6 = tpu.matmul %4, %5, %cst {dimension_numbers = #tpu.dot_dimension_numbers<[1], [0], [0], [1], [0, 0, 1, 1], [], []>} : vector<32x128xbf16>, vector<128x128xbf16>, vector<32x128xf32> -> vector<32x128xf32>
    %7 = arith.addf %3, %6 : vector<32x128xf32>
    %c0_6 = arith.constant 0 : index
    %c0_7 = arith.constant 0 : index
    %8 = vector.load %arg7[%c0_6, %c0_7] : memref<32x128xf32, #tpu.memory_space<vmem>>, vector<32x128xf32>
    tpu.vector_store %arg7[%c0_6, %c0_7], %7 {strides = array<i32>} : memref<32x128xf32, #tpu.memory_space<vmem>>, vector<32x128xf32>,
    %c0_i32_8 = arith.constant 0 : i32
    %9 = arith.cmpi eq, %arg2, %c0_i32_8 : i32
    %10 = arith.extui %9 : i1 to i32
    %c0_i32_9 = arith.constant 0 : i32
    %11 = arith.cmpi ne, %10, %c0_i32_9 : i32
    scf.if %11 {
      %c0_10 = arith.constant 0 : index
      %c0_11 = arith.constant 0 : index
      %12 = vector.load %arg7[%c0_10, %c0_11] : memref<32x128xf32, #tpu.memory_space<vmem>>, vector<32x128xf32>
      %c0_12 = arith.constant 0 : index
      %c0_13 = arith.constant 0 : index
      %13 = vector.load %arg5[%c0_12, %c0_13] : memref<1x128xf32, #tpu.memory_space<vmem>>, vector<1x128xf32>
      %14 = vector.broadcast %13 : vector<1x128xf32> to vector<32x128xf32>
      %15 = arith.addf %12, %14 : vector<32x128xf32>
      %c0_14 = arith.constant 0 : index
      %c0_15 = arith.constant 0 : index
      %16 = vector.load %arg6[%c0_14, %c0_15] : memref<32x128xf32, #tpu.memory_space<vmem>>, vector<32x128xf32>
      tpu.vector_store %arg6[%c0_14, %c0_15], %15 {strides = array<i32>} : memref<32x128xf32, #tpu.memory_space<vmem>>, vector<32x128xf32>,
    } else {
    }
    return
  }
  func.func @transform_0(%arg0: i32, %arg1: i32, %arg2: i32) -> (i32, i32) {
    %c0_i32 = arith.constant 0 : i32
    return %arg0, %arg2 : i32, i32
  }
  func.func @transform_1(%arg0: i32, %arg1: i32, %arg2: i32) -> (i32, i32) {
    %c0_i32 = arith.constant 0 : i32
    return %arg2, %arg1 : i32, i32
  }
  func.func @transform_2(%arg0: i32, %arg1: i32, %arg2: i32) -> (i32, i32) {
    %c0_i32 = arith.constant 0 : i32
    %c0_i32_0 = arith.constant 0 : i32
    return %c0_i32, %arg1 : i32, i32
  }
  func.func @transform_3(%arg0: i32, %arg1: i32, %arg2: i32) -> (i32, i32) {
    %c0_i32 = arith.constant 0 : i32
    return %arg0, %arg1 : i32, i32
  }
}

</mosaic_0001>

<llo_original>
// kernel: gpt_forward.9
$region0: #{gpt_forward.9}
  #allocation0 [shape = 'u32[]', space=smem, size = 0x4, offset = 0x4, fixed_abs, tag = 'smem constant byte address 0x4 - core index']
  #allocation1 [shape = 'u32[144,128]{1,0:T(1,128)}', space=vmem, size = 0x12000, scoped, tag = 'internal scratch']
  #allocation2 [shape = 'bf16[32,128]{1,0:T(8,128)(2,1)}', space=vmem, size = 0x2000, scoped, tag = 'scratch operand']
  %s0 = inlined_call_operand.vmem [shape: bf16[32,128], index: 0, kind: input, shape index: {}]
  %s1 = inlined_call_operand.vmem [shape: f32[1,128], index: 1, kind: input, shape index: {}]
  %s2 = inlined_call_operand.vmem [shape: f32[1,128], index: 2, kind: input, shape index: {}]
  %s3 = inlined_call_operand.vmem [shape: bf16[128,384], index: 3, kind: input, shape index: {}]
  %s4 = inlined_call_operand.vmem [shape: f32[1,384], index: 4, kind: input, shape index: {}]
  %s5 = inlined_call_operand.vmem [shape: bf16[32,384], index: 5, kind: output, shape index: {}]
  %s6 = sld [smem:[#allocation0]]
  $region34: #{gpt_forward.9} parent=0
    _
  %s8 = ssub.s32 1, %s6
  %s9 = scalar_select 0, %s8, %s6
  // Predicated region
  $region2: #{gpt_forward.9} parent=0 // pred_check
    _
  $region3: #{gpt_forward.9} parent=0 // pred_check_branch
    %11 = sbr.rel (0) target = $region5
  $region4: #{gpt_forward.9} parent=0 // pred_region
    _
  $region5: #{gpt_forward.9} parent=0 // pred_fallthru
    _
  // Predicated region
  $region6: #{gpt_forward.9} parent=0 // pred_check
    _
  $region7: #{gpt_forward.9} parent=0 // pred_check_branch
    %13 = sbr.rel (0) target = $region9
  $region8: #{gpt_forward.9} parent=0 // pred_region
    _
  $region9: #{gpt_forward.9} parent=0 // pred_fallthru
    _
  // Predicated region
  $region10: #{gpt_forward.9} parent=0 // pred_check
    _
  $region11: #{gpt_forward.9} parent=0 // pred_check_branch
    %15 = sbr.rel (0) target = $region13
  $region12: #{gpt_forward.9} parent=0 // pred_region
    _
  $region13: #{gpt_forward.9} parent=0 // pred_fallthru
    _
  // Predicated region
  $region14: #{gpt_forward.9} parent=0 // pred_check
    _
  $region15: #{gpt_forward.9} parent=0 // pred_check_branch
    %17 = sbr.rel (0) target = $region17
  $region16: #{gpt_forward.9} parent=0 // pred_region
    _
  $region17: #{gpt_forward.9} parent=0 // pred_fallthru
    _
  // Predicated region
  $region18: #{gpt_forward.9} parent=0 // pred_check
    _
  $region19: #{gpt_forward.9} parent=0 // pred_check_branch
    %19 = sbr.rel (0) target = $region21
  $region20: #{gpt_forward.9} parent=0 // pred_region
    _
  $region21: #{gpt_forward.9} parent=0 // pred_fallthru
    _
  %p21 = scmp.eq.s32.totalorder 0, 0
  // Predicated region
  $region22: #{gpt_forward.9} parent=0 // pred_check
    %p22 = pneg %p21
  $region23: #{gpt_forward.9} parent=0 // pred_check_branch
    %24 = sbr.rel (%p22) target = $region25
  $region24: #{gpt_forward.9} parent=0 // pred_region
    %v25 = vld [vmem:[%s0] sm:$0xf]
    %v26 = vld [vmem:[%s0 + $0x4] sm:$0xf]
    %v27 = vld [vmem:[%s0 + $0x8] sm:$0xf]
    %v28 = vld [vmem:[%s0 + $0xc] sm:$0xf]
    %v29 = vunpack.c.l.bf16 %v25
    %v30 = vunpack.c.l.bf16 %v26
    %v31 = vunpack.c.l.bf16 %v27
    %v32 = vunpack.c.l.bf16 %v28
    %v33 = vlaneseq
    %v34 = vand.u32 %v33, 127
    %35 = vadd.xlane.f32.xlu0 %v29
    %v36 = vpop.xlane.xlu0 %35
    %37 = vadd.xlane.f32.xlu0 %v30
    %v38 = vpop.xlane.xlu0 %37
    %39 = vadd.xlane.f32.xlu0 %v31
    %v40 = vpop.xlane.xlu0 %39
    %41 = vadd.xlane.f32.xlu0 %v32
    %v42 = vpop.xlane.xlu0 %41
    %v43 = vmul.f32 %v36, 0.03125
    %v44 = vmul.f32 %v38, 0.03125
    %v45 = vmul.f32 %v40, 0.03125
    %v46 = vmul.f32 %v42, 0.03125
    %vm47 = vcmp.lt.s32.totalorder %v34, 32
    %v48 = vsub.f32 %v29, %v43
    %v49 = vsub.f32 %v30, %v44
    %v50 = vsub.f32 %v31, %v45
    %v51 = vsub.f32 %v32, %v46
    %v52 = vsel %vm47, %v48, 0.0
    %v53 = vsel %vm47, %v49, 0.0
    %v54 = vsel %vm47, %v50, 0.0
    %v55 = vsel %vm47, %v51, 0.0
    %v56 = vmul.f32 %v52, %v52
    %v57 = vmul.f32 %v53, %v53
    %v58 = vmul.f32 %v54, %v54
    %v59 = vmul.f32 %v55, %v55
    %60 = vadd.xlane.f32.xlu0 %v56
    %v61 = vpop.xlane.xlu0 %60
    %62 = vadd.xlane.f32.xlu0 %v57
    %v63 = vpop.xlane.xlu0 %62
    %64 = vadd.xlane.f32.xlu0 %v58
    %v65 = vpop.xlane.xlu0 %64
    %66 = vadd.xlane.f32.xlu0 %v59
    %v67 = vpop.xlane.xlu0 %66
    %v68 = vmul.f32 %v61, 0.03125
    %v69 = vmul.f32 %v63, 0.03125
    %v70 = vmul.f32 %v65, 0.03125
    %v71 = vmul.f32 %v67, 0.03125
    %v72 = vadd.f32 %v68, 1e-05
    %v73 = vadd.f32 %v69, 1e-05
    %v74 = vadd.f32 %v70, 1e-05
    %v75 = vadd.f32 %v71, 1e-05
    %v76 = vrsqrt.pop %v72
    %v77 = vrsqrt.pop %v73
    %v78 = vrsqrt.pop %v74
    %v79 = vrsqrt.pop %v75
    %v80 = vmul.f32 %v52, %v76
    %v81 = vmul.f32 %v53, %v77
    %v82 = vmul.f32 %v54, %v78
    %v83 = vmul.f32 %v55, %v79
    %v84 = vld [vmem:[%s1] sm:$0x1]
    %v86 = vlaneseq
    %v87 = vshrl.u32 %v86, 7
    %v88 = vsub.s32 0, %v87
    %v89 = vrot.slane %v84, %v88
    %v91 = vmul.f32 %v80, %v89
    %v92 = vmul.f32 %v81, %v89
    %v93 = vmul.f32 %v82, %v89
    %v94 = vmul.f32 %v83, %v89
    %v95 = vld [vmem:[%s2] sm:$0x1]
    %v97 = vlaneseq
    %v98 = vshrl.u32 %v97, 7
    %v99 = vsub.s32 0, %v98
    %v100 = vrot.slane %v95, %v99
    %v102 = vadd.f32 %v91, %v100
    %v103 = vadd.f32 %v92, %v100
    %v104 = vadd.f32 %v93, %v100
    %v105 = vadd.f32 %v94, %v100
    %v106 = vpack.c.bf16 %v103, %v102
    %v107 = vpack.c.bf16 %v105, %v104
    %v110 = vunpack.c.l.b16 %v106
    %v111 = vunpack.c.h.b16 %v106
    %v112 = vunpack.c.l.b16 %v107
    %v113 = vunpack.c.h.b16 %v107
    %v114 = vpack.c.b16 %v110, %v110
    %v115 = vpack.c.b16 %v111, %v111
    %v116 = vpack.c.b16 %v112, %v112
    %v117 = vpack.c.b16 %v113, %v113
    %122 = vst [vmem:[#allocation2] sm:$0xf] %v114
    %123 = vst [vmem:[#allocation2 + $0x4] sm:$0xf] %v115
    %124 = vst [vmem:[#allocation2 + $0x8] sm:$0xf] %v116
    %125 = vst [vmem:[#allocation2 + $0xc] sm:$0xf] %v117
  $region25: #{gpt_forward.9} parent=0 // pred_fallthru
    _
  %v126 = vld [vmem:[#allocation2] sm:$0xf]
  %v127 = vld [vmem:[#allocation2 + $0x4] sm:$0xf]
  %v128 = vld [vmem:[#allocation2 + $0x8] sm:$0xf]
  %v129 = vld [vmem:[#allocation2 + $0xc] sm:$0xf]
  %v130 = vld [vmem:[%s3] sm:$0xff]
  %v131 = vld [vmem:[%s3 + $0x8] sm:$0xf]
  %v132 = vld [vmem:[%s3 + $0xc] sm:$0xff]
  %v133 = vld [vmem:[%s3 + $0x14] sm:$0xf]
  %v134 = vld [vmem:[%s3 + $0x18] sm:$0xff]
  %v135 = vld [vmem:[%s3 + $0x20] sm:$0xf]
  %v136 = vld [vmem:[%s3 + $0x24] sm:$0xff]
  %v137 = vld [vmem:[%s3 + $0x2c] sm:$0xf]
  %v138 = vld [vmem:[%s3 + $0x30] sm:$0xff]
  %v139 = vld [vmem:[%s3 + $0x38] sm:$0xf]
  %v140 = vld [vmem:[%s3 + $0x3c] sm:$0xff]
  %v141 = vld [vmem:[%s3 + $0x44] sm:$0xf]
  %v142 = vld [vmem:[%s3 + $0x48] sm:$0xff]
  %v143 = vld [vmem:[%s3 + $0x50] sm:$0xf]
  %v144 = vld [vmem:[%s3 + $0x54] sm:$0xff]
  %v145 = vld [vmem:[%s3 + $0x5c] sm:$0xf]
  %v146 = vld [vmem:[%s3 + $0x60] sm:$0xff]
  %v147 = vld [vmem:[%s3 + $0x68] sm:$0xf]
  %v148 = vld [vmem:[%s3 + $0x6c] sm:$0xff]
  %v149 = vld [vmem:[%s3 + $0x74] sm:$0xf]
  %v150 = vld [vmem:[%s3 + $0x78] sm:$0xff]
  %v151 = vld [vmem:[%s3 + $0x80] sm:$0xf]
  %v152 = vld [vmem:[%s3 + $0x84] sm:$0xff]
  %v153 = vld [vmem:[%s3 + $0x8c] sm:$0xf]
  %v154 = vld [vmem:[%s3 + $0x90] sm:$0xff]
  %v155 = vld [vmem:[%s3 + $0x98] sm:$0xf]
  %v156 = vld [vmem:[%s3 + $0x9c] sm:$0xff]
  %v157 = vld [vmem:[%s3 + $0xa4] sm:$0xf]
  %v158 = vld [vmem:[%s3 + $0xa8] sm:$0xff]
  %v159 = vld [vmem:[%s3 + $0xb0] sm:$0xf]
  %v160 = vld [vmem:[%s3 + $0xb4] sm:$0xff]
  %v161 = vld [vmem:[%s3 + $0xbc] sm:$0xf]
  %v162 = vld [vmem:[%s4] sm:$0x7]
  %v164 = vlaneseq
  %v165 = vshrl.u32 %v164, 7
  %v166 = vsub.s32 0, %v165
  %v167 = vrot.slane %v162, %v166
  %v168 = vlaneseq
  %v169 = vshrl.u32 %v168, 7
  %v170 = vsub.s32 1, %v169
  %v171 = vrot.slane %v162, %v170
  %v172 = vlaneseq
  %v173 = vshrl.u32 %v172, 7
  %v174 = vsub.s32 2, %v173
  %v175 = vrot.slane %v162, %v174
  %v183 = vunpack.c.l.b16 %v126
  %v184 = vunpack.c.l.b16 %v127
  %v185 = vunpack.c.l.b16 %v128
  %v186 = vunpack.c.l.b16 %v129
  %v187 = vpack.c.b16 %v184, %v183
  %v188 = vpack.c.b16 %v186, %v185
  %v223 = vunpack.c.l.b16 %v130
  %v224 = vunpack.c.h.b16 %v130
  %v225 = vunpack.c.l.b16 %v131
  %v226 = vunpack.c.l.b16 %v132
  %v227 = vunpack.c.h.b16 %v132
  %v228 = vunpack.c.l.b16 %v133
  %v229 = vunpack.c.l.b16 %v134
  %v230 = vunpack.c.h.b16 %v134
  %v231 = vunpack.c.l.b16 %v135
  %v232 = vunpack.c.l.b16 %v136
  %v233 = vunpack.c.h.b16 %v136
  %v234 = vunpack.c.l.b16 %v137
  %v235 = vunpack.c.l.b16 %v138
  %v236 = vunpack.c.h.b16 %v138
  %v237 = vunpack.c.l.b16 %v139
  %v238 = vunpack.c.l.b16 %v140
  %v239 = vunpack.c.h.b16 %v140
  %v240 = vunpack.c.l.b16 %v141
  %v241 = vunpack.c.l.b16 %v142
  %v242 = vunpack.c.h.b16 %v142
  %v243 = vunpack.c.l.b16 %v143
  %v244 = vunpack.c.l.b16 %v144
  %v245 = vunpack.c.h.b16 %v144
  %v246 = vunpack.c.l.b16 %v145
  %v247 = vunpack.c.l.b16 %v146
  %v248 = vunpack.c.h.b16 %v146
  %v249 = vunpack.c.l.b16 %v147
  %v250 = vunpack.c.l.b16 %v148
  %v251 = vunpack.c.h.b16 %v148
  %v252 = vunpack.c.l.b16 %v149
  %v253 = vunpack.c.l.b16 %v150
  %v254 = vunpack.c.h.b16 %v150
  %v255 = vunpack.c.l.b16 %v151
  %v256 = vunpack.c.l.b16 %v152
  %v257 = vunpack.c.h.b16 %v152
  %v258 = vunpack.c.l.b16 %v153
  %v259 = vunpack.c.l.b16 %v154
  %v260 = vunpack.c.h.b16 %v154
  %v261 = vunpack.c.l.b16 %v155
  %v262 = vunpack.c.l.b16 %v156
  %v263 = vunpack.c.h.b16 %v156
  %v264 = vunpack.c.l.b16 %v157
  %v265 = vunpack.c.l.b16 %v158
  %v266 = vunpack.c.h.b16 %v158
  %v267 = vunpack.c.l.b16 %v159
  %v268 = vunpack.c.l.b16 %v160
  %v269 = vunpack.c.h.b16 %v160
  %v270 = vunpack.c.l.b16 %v161
  %v271 = vpack.c.b16 %v226, %v223
  %v272 = vpack.c.b16 %v227, %v224
  %v273 = vpack.c.b16 %v228, %v225
  %v274 = vpack.c.b16 %v232, %v229
  %v275 = vpack.c.b16 %v233, %v230
  %v276 = vpack.c.b16 %v234, %v231
  %v277 = vpack.c.b16 %v238, %v235
  %v278 = vpack.c.b16 %v239, %v236
  %v279 = vpack.c.b16 %v240, %v237
  %v280 = vpack.c.b16 %v244, %v241
  %v281 = vpack.c.b16 %v245, %v242
  %v282 = vpack.c.b16 %v246, %v243
  %v283 = vpack.c.b16 %v250, %v247
  %v284 = vpack.c.b16 %v251, %v248
  %v285 = vpack.c.b16 %v252, %v249
  %v286 = vpack.c.b16 %v256, %v253
  %v287 = vpack.c.b16 %v257, %v254
  %v288 = vpack.c.b16 %v258, %v255
  %v289 = vpack.c.b16 %v262, %v259
  %v290 = vpack.c.b16 %v263, %v260
  %v291 = vpack.c.b16 %v264, %v261
  %v292 = vpack.c.b16 %v268, %v265
  %v293 = vpack.c.b16 %v269, %v266
  %v294 = vpack.c.b16 %v270, %v267
  %319 = vmatprep.subr.bf16.mxu0 %v293
  %320 = vmatpush1.bf16.msra.mxu0 %v292
  %321 = vmatprep.subr.bf16.mxu0 %v290
  %322 = vmatpush1.bf16.msra.mxu0 %v289
  %323 = vmatprep.subr.bf16.mxu0 %v287
  %324 = vmatpush1.bf16.msra.mxu0 %v286
  %325 = vmatprep.subr.bf16.mxu0 %v284
  %326 = vmatpush1.bf16.msra.mxu0 %v283
  %327 = vmatprep.subr.bf16.mxu0 %v281
  %328 = vmatpush1.bf16.msra.mxu0 %v280
  %329 = vmatprep.subr.bf16.mxu0 %v278
  %330 = vmatpush1.bf16.msra.mxu0 %v277
  %331 = vmatprep.subr.bf16.mxu0 %v275
  %332 = vmatpush1.bf16.msra.mxu0 %v274
  %333 = vmatprep.subr.bf16.mxu0 %v272
  %334 = vmatpush1.bf16.msra.mxu0 %v271
  %335 = vmatprep.subr.bf16.mxu0 0
  %336 = vmatpush2.bf16.msra.mxu0 0
  %337 = vmatprep.subr.bf16.mxu0 0
  %338 = vmatpush2.bf16.msra.mxu0 0
  %339 = vmatprep.subr.bf16.mxu0 0
  %340 = vmatpush2.bf16.msra.mxu0 0
  %341 = vmatprep.subr.bf16.mxu0 0
  %342 = vmatpush2.bf16.msra.mxu0 0
  %343 = vmatprep.subr.bf16.mxu0 0
  %344 = vmatpush2.bf16.msra.mxu0 0
  %345 = vmatprep.subr.bf16.mxu0 0
  %346 = vmatpush2.bf16.msra.mxu0 0
  %347 = vmatprep.subr.bf16.mxu0 0
  %348 = vmatpush2.bf16.msra.mxu0 0
  %349 = vmatprep.subr.bf16.mxu0 0
  %350 = vmatpush2.bf16.msra.mxu0 0
  %351 = vmatprep.mubr.bf16.mxu0 0
  %352 = vmatmul.mubr.bf16.gmra.mxu0 %v187
  %v353 = vpop.f32.mrf.mxu0
  %v354 = vadd.f32 %v167, %v353
  %v355 = vpop.f32.mrf.mxu0
  %v356 = vadd.f32 %v171, %v355
  %v357 = vpop.f32.mrf.mxu0
  %v358 = vadd.f32 %v167, %v357
  %v359 = vpop.f32.mrf.mxu0
  %v360 = vadd.f32 %v171, %v359
  %361 = vmatprep.mubr.bf16.mxu0 0
  %362 = vmatmul.mubr.bf16.gmra.mxu0 %v188
  %v363 = vpop.f32.mrf.mxu0
  %v364 = vadd.f32 %v167, %v363
  %v365 = vpop.f32.mrf.mxu0
  %v366 = vadd.f32 %v171, %v365
  %v367 = vpop.f32.mrf.mxu0
  %v368 = vadd.f32 %v167, %v367
  %v369 = vpop.f32.mrf.mxu0
  %v370 = vadd.f32 %v171, %v369
  %371 = vdwg.mxu0
  %372 = vmatprep.subr.bf16.mxu0 0
  %373 = vmatpush1.bf16.msra.mxu0 %v294
  %374 = vmatprep.subr.bf16.mxu0 0
  %375 = vmatpush1.bf16.msra.mxu0 %v291
  %376 = vmatprep.subr.bf16.mxu0 0
  %377 = vmatpush1.bf16.msra.mxu0 %v288
  %378 = vmatprep.subr.bf16.mxu0 0
  %379 = vmatpush1.bf16.msra.mxu0 %v285
  %380 = vmatprep.subr.bf16.mxu0 0
  %381 = vmatpush1.bf16.msra.mxu0 %v282
  %382 = vmatprep.subr.bf16.mxu0 0
  %383 = vmatpush1.bf16.msra.mxu0 %v279
  %384 = vmatprep.subr.bf16.mxu0 0
  %385 = vmatpush1.bf16.msra.mxu0 %v276
  %386 = vmatprep.subr.bf16.mxu0 0
  %387 = vmatpush1.bf16.msra.mxu0 %v273
  %388 = vmatprep.subr.bf16.mxu0 0
  %389 = vmatpush2.bf16.msra.mxu0 0
  %390 = vmatprep.subr.bf16.mxu0 0
  %391 = vmatpush2.bf16.msra.mxu0 0
  %392 = vmatprep.subr.bf16.mxu0 0
  %393 = vmatpush2.bf16.msra.mxu0 0
  %394 = vmatprep.subr.bf16.mxu0 0
  %395 = vmatpush2.bf16.msra.mxu0 0
  %396 = vmatprep.subr.bf16.mxu0 0
  %397 = vmatpush2.bf16.msra.mxu0 0
  %398 = vmatprep.subr.bf16.mxu0 0
  %399 = vmatpush2.bf16.msra.mxu0 0
  %400 = vmatprep.subr.bf16.mxu0 0
  %401 = vmatpush2.bf16.msra.mxu0 0
  %402 = vmatprep.subr.bf16.mxu0 0
  %403 = vmatpush2.bf16.msra.mxu0 0
  %404 = vmatprep.mubr.bf16.mxu0 0
  %405 = vmatmul.mubr.bf16.gmra.mxu0 %v187
  %v406 = vpop.f32.mrf.mxu0
  %v407 = vadd.f32 %v175, %v406
  %v408 = vpop.f32.mrf.mxu0
  %v409 = vpop.f32.mrf.mxu0
  %v410 = vadd.f32 %v175, %v409
  %v411 = vpop.f32.mrf.mxu0
  %412 = vmatprep.mubr.bf16.mxu0 0
  %413 = vmatmul.mubr.bf16.gmra.mxu0 %v188
  %v414 = vpop.f32.mrf.mxu0
  %v415 = vadd.f32 %v175, %v414
  %v416 = vpop.f32.mrf.mxu0
  %v417 = vpop.f32.mrf.mxu0
  %v418 = vadd.f32 %v175, %v417
  %v419 = vpop.f32.mrf.mxu0
  %420 = vdwg.mxu0
  %v421 = vpack.c.bf16 %v358, %v354
  %v422 = vpack.c.bf16 %v360, %v356
  %v423 = vpack.c.bf16 %v410, %v407
  %v424 = vpack.c.bf16 %v368, %v364
  %v425 = vpack.c.bf16 %v370, %v366
  %v426 = vpack.c.bf16 %v418, %v415
  %v433 = vunpack.c.l.b16 %v421
  %v434 = vunpack.c.l.b16 %v422
  %v435 = vunpack.c.l.b16 %v423
  %v436 = vunpack.c.h.b16 %v421
  %v437 = vunpack.c.h.b16 %v422
  %v438 = vunpack.c.h.b16 %v423
  %v439 = vunpack.c.l.b16 %v424
  %v440 = vunpack.c.l.b16 %v425
  %v441 = vunpack.c.l.b16 %v426
  %v442 = vunpack.c.h.b16 %v424
  %v443 = vunpack.c.h.b16 %v425
  %v444 = vunpack.c.h.b16 %v426
  %v445 = vpack.c.b16 %v434, %v433
  %v446 = vpack.c.b16 %v435, %v435
  %v447 = vpack.c.b16 %v437, %v436
  %v448 = vpack.c.b16 %v438, %v438
  %v449 = vpack.c.b16 %v440, %v439
  %v450 = vpack.c.b16 %v441, %v441
  %v451 = vpack.c.b16 %v443, %v442
  %v452 = vpack.c.b16 %v444, %v444
  %461 = vst [vmem:[%s5] sm:$0xff] %v445
  %462 = vst [vmem:[%s5 + $0x8] sm:$0xf] %v446
  %463 = vst [vmem:[%s5 + $0xc] sm:$0xff] %v447
  %464 = vst [vmem:[%s5 + $0x14] sm:$0xf] %v448
  %465 = vst [vmem:[%s5 + $0x18] sm:$0xff] %v449
  %466 = vst [vmem:[%s5 + $0x20] sm:$0xf] %v450
  %467 = vst [vmem:[%s5 + $0x24] sm:$0xff] %v451
  %468 = vst [vmem:[%s5 + $0x2c] sm:$0xf] %v452
  // Predicated region
  $region26: #{gpt_forward.9} parent=0 // pred_check
    _
  $region27: #{gpt_forward.9} parent=0 // pred_check_branch
    %470 = sbr.rel (0) target = $region29
  $region28: #{gpt_forward.9} parent=0 // pred_region
    _
  $region29: #{gpt_forward.9} parent=0 // pred_fallthru
    _
  // Predicated region
  $region30: #{gpt_forward.9} parent=0 // pred_check
    _
  $region31: #{gpt_forward.9} parent=0 // pred_check_branch
    %472 = sbr.rel (0) target = $region33
  $region32: #{gpt_forward.9} parent=0 // pred_region
    _
  $region33: #{gpt_forward.9} parent=0 // pred_fallthru
    _

// kernel: gpt_forward.12
$region0: #{gpt_forward.12}
  #allocation0 [shape = 'u32[]', space=smem, size = 0x4, offset = 0x4, fixed_abs, tag = 'smem constant byte address 0x4 - core index']
  #allocation1 [shape = 'u32[144,128]{1,0:T(1,128)}', space=vmem, size = 0x12000, scoped, tag = 'internal scratch']
  #allocation2 [shape = 'bf16[32,128]{1,0:T(8,128)(2,1)}', space=vmem, size = 0x2000, scoped, tag = 'scratch operand']
  #allocation3 [shape = 'f32[32,128]{1,0:T(8,128)}', space=vmem, size = 0x4000, scoped, tag = 'scratch operand']
  %s0 = inlined_call_operand.vmem [shape: bf16[32,128], index: 0, kind: input, shape index: {}]
  %s1 = inlined_call_operand.vmem [shape: f32[1,128], index: 1, kind: input, shape index: {}]
  %s2 = inlined_call_operand.vmem [shape: f32[1,128], index: 2, kind: input, shape index: {}]
  %s3 = inlined_call_operand.vmem [shape: bf16[128,128], index: 3, kind: input, shape index: {}]
  %s4 = inlined_call_operand.vmem [shape: f32[1,128], index: 4, kind: input, shape index: {}]
  %s5 = inlined_call_operand.vmem [shape: bf16[128,128], index: 5, kind: input, shape index: {}]
  %s6 = inlined_call_operand.vmem [shape: f32[1,128], index: 6, kind: input, shape index: {}]
  %s7 = inlined_call_operand.vmem [shape: bf16[32,128], index: 7, kind: output, shape index: {}]
  %s8 = sld [smem:[#allocation0]]
  $region46: #{gpt_forward.12} parent=0
    _
  %s10 = ssub.s32 1, %s8
  %s11 = scalar_select 0, %s10, %s8
  // Predicated region
  $region2: #{gpt_forward.12} parent=0 // pred_check
    _
  $region3: #{gpt_forward.12} parent=0 // pred_check_branch
    %13 = sbr.rel (0) target = $region5
  $region4: #{gpt_forward.12} parent=0 // pred_region
    _
  $region5: #{gpt_forward.12} parent=0 // pred_fallthru
    _
  // Predicated region
  $region6: #{gpt_forward.12} parent=0 // pred_check
    _
  $region7: #{gpt_forward.12} parent=0 // pred_check_branch
    %15 = sbr.rel (0) target = $region9
  $region8: #{gpt_forward.12} parent=0 // pred_region
    _
  $region9: #{gpt_forward.12} parent=0 // pred_fallthru
    _
  // Predicated region
  $region10: #{gpt_forward.12} parent=0 // pred_check
    _
  $region11: #{gpt_forward.12} parent=0 // pred_check_branch
    %17 = sbr.rel (0) target = $region13
  $region12: #{gpt_forward.12} parent=0 // pred_region
    _
  $region13: #{gpt_forward.12} parent=0 // pred_fallthru
    _
  // Predicated region
  $region14: #{gpt_forward.12} parent=0 // pred_check
    _
  $region15: #{gpt_forward.12} parent=0 // pred_check_branch
    %19 = sbr.rel (0) target = $region17
  $region16: #{gpt_forward.12} parent=0 // pred_region
    _
  $region17: #{gpt_forward.12} parent=0 // pred_fallthru
    _
  // Predicated region
  $region18: #{gpt_forward.12} parent=0 // pred_check
    _
  $region19: #{gpt_forward.12} parent=0 // pred_check_branch
    %21 = sbr.rel (0) target = $region21
  $region20: #{gpt_forward.12} parent=0 // pred_region
    _
  $region21: #{gpt_forward.12} parent=0 // pred_fallthru
    _
  // Predicated region
  $region22: #{gpt_forward.12} parent=0 // pred_check
    _
  $region23: #{gpt_forward.12} parent=0 // pred_check_branch
    %23 = sbr.rel (0) target = $region25
  $region24: #{gpt_forward.12} parent=0 // pred_region
    _
  $region25: #{gpt_forward.12} parent=0 // pred_fallthru
    _
  // Predicated region
  $region26: #{gpt_forward.12} parent=0 // pred_check
    _
  $region27: #{gpt_forward.12} parent=0 // pred_check_branch
    %25 = sbr.rel (0) target = $region29
  $region28: #{gpt_forward.12} parent=0 // pred_region
    _
  $region29: #{gpt_forward.12} parent=0 // pred_fallthru
    _
  %p27 = scmp.eq.s32.totalorder 0, 0
  // Predicated region
  $region30: #{gpt_forward.12} parent=0 // pred_check
    %p28 = pneg %p27
  $region31: #{gpt_forward.12} parent=0 // pred_check_branch
    %30 = sbr.rel (%p28) target = $region33
  $region32: #{gpt_forward.12} parent=0 // pred_region
    %v31 = vld [vmem:[%s0] sm:$0xf]
    %v32 = vld [vmem:[%s0 + $0x4] sm:$0xf]
    %v33 = vld [vmem:[%s0 + $0x8] sm:$0xf]
    %v34 = vld [vmem:[%s0 + $0xc] sm:$0xf]
    %v35 = vunpack.c.l.bf16 %v31
    %v36 = vunpack.c.l.bf16 %v32
    %v37 = vunpack.c.l.bf16 %v33
    %v38 = vunpack.c.l.bf16 %v34
    %v39 = vlaneseq
    %v40 = vand.u32 %v39, 127
    %41 = vadd.xlane.f32.xlu0 %v35
    %v42 = vpop.xlane.xlu0 %41
    %43 = vadd.xlane.f32.xlu0 %v36
    %v44 = vpop.xlane.xlu0 %43
    %45 = vadd.xlane.f32.xlu0 %v37
    %v46 = vpop.xlane.xlu0 %45
    %47 = vadd.xlane.f32.xlu0 %v38
    %v48 = vpop.xlane.xlu0 %47
    %v49 = vmul.f32 %v42, 0.03125
    %v50 = vmul.f32 %v44, 0.03125
    %v51 = vmul.f32 %v46, 0.03125
    %v52 = vmul.f32 %v48, 0.03125
    %vm53 = vcmp.lt.s32.totalorder %v40, 32
    %v54 = vsub.f32 %v35, %v49
    %v55 = vsub.f32 %v36, %v50
    %v56 = vsub.f32 %v37, %v51
    %v57 = vsub.f32 %v38, %v52
    %v58 = vsel %vm53, %v54, 0.0
    %v59 = vsel %vm53, %v55, 0.0
    %v60 = vsel %vm53, %v56, 0.0
    %v61 = vsel %vm53, %v57, 0.0
    %v62 = vmul.f32 %v58, %v58
    %v63 = vmul.f32 %v59, %v59
    %v64 = vmul.f32 %v60, %v60
    %v65 = vmul.f32 %v61, %v61
    %66 = vadd.xlane.f32.xlu0 %v62
    %v67 = vpop.xlane.xlu0 %66
    %68 = vadd.xlane.f32.xlu0 %v63
    %v69 = vpop.xlane.xlu0 %68
    %70 = vadd.xlane.f32.xlu0 %v64
    %v71 = vpop.xlane.xlu0 %70
    %72 = vadd.xlane.f32.xlu0 %v65
    %v73 = vpop.xlane.xlu0 %72
    %v74 = vmul.f32 %v67, 0.03125
    %v75 = vmul.f32 %v69, 0.03125
    %v76 = vmul.f32 %v71, 0.03125
    %v77 = vmul.f32 %v73, 0.03125
    %v78 = vadd.f32 %v74, 1e-05
    %v79 = vadd.f32 %v75, 1e-05
    %v80 = vadd.f32 %v76, 1e-05
    %v81 = vadd.f32 %v77, 1e-05
    %v82 = vrsqrt.pop %v78
    %v83 = vrsqrt.pop %v79
    %v84 = vrsqrt.pop %v80
    %v85 = vrsqrt.pop %v81
    %v86 = vmul.f32 %v58, %v82
    %v87 = vmul.f32 %v59, %v83
    %v88 = vmul.f32 %v60, %v84
    %v89 = vmul.f32 %v61, %v85
    %v90 = vld [vmem:[%s1] sm:$0x1]
    %v92 = vlaneseq
    %v93 = vshrl.u32 %v92, 7
    %v94 = vsub.s32 0, %v93
    %v95 = vrot.slane %v90, %v94
    %v97 = vmul.f32 %v86, %v95
    %v98 = vmul.f32 %v87, %v95
    %v99 = vmul.f32 %v88, %v95
    %v100 = vmul.f32 %v89, %v95
    %v101 = vld [vmem:[%s2] sm:$0x1]
    %v103 = vlaneseq
    %v104 = vshrl.u32 %v103, 7
    %v105 = vsub.s32 0, %v104
    %v106 = vrot.slane %v101, %v105
    %v108 = vadd.f32 %v97, %v106
    %v109 = vadd.f32 %v98, %v106
    %v110 = vadd.f32 %v99, %v106
    %v111 = vadd.f32 %v100, %v106
    %v112 = vpack.c.bf16 %v109, %v108
    %v113 = vpack.c.bf16 %v111, %v110
    %v116 = vunpack.c.l.b16 %v112
    %v117 = vunpack.c.h.b16 %v112
    %v118 = vunpack.c.l.b16 %v113
    %v119 = vunpack.c.h.b16 %v113
    %v120 = vpack.c.b16 %v116, %v116
    %v121 = vpack.c.b16 %v117, %v117
    %v122 = vpack.c.b16 %v118, %v118
    %v123 = vpack.c.b16 %v119, %v119
    %128 = vst [vmem:[#allocation2] sm:$0xf] %v120
    %129 = vst [vmem:[#allocation2 + $0x4] sm:$0xf] %v121
    %130 = vst [vmem:[#allocation2 + $0x8] sm:$0xf] %v122
    %131 = vst [vmem:[#allocation2 + $0xc] sm:$0xf] %v123
    %132 = vst [vmem:[#allocation3] sm:$0xff] 0.0
    %133 = vst [vmem:[#allocation3 + $0x8] sm:$0xff] 0.0
    %134 = vst [vmem:[#allocation3 + $0x10] sm:$0xff] 0.0
    %135 = vst [vmem:[#allocation3 + $0x18] sm:$0xff] 0.0
  $region33: #{gpt_forward.12} parent=0 // pred_fallthru
    _
  %v136 = vld [vmem:[#allocation2] sm:$0xf]
  %v137 = vld [vmem:[#allocation2 + $0x4] sm:$0xf]
  %v138 = vld [vmem:[#allocation2 + $0x8] sm:$0xf]
  %v139 = vld [vmem:[#allocation2 + $0xc] sm:$0xf]
  %v140 = vld [vmem:[%s3] sm:$0xf]
  %v141 = vld [vmem:[%s3 + $0x4] sm:$0xf]
  %v142 = vld [vmem:[%s3 + $0x8] sm:$0xf]
  %v143 = vld [vmem:[%s3 + $0xc] sm:$0xf]
  %v144 = vld [vmem:[%s3 + $0x10] sm:$0xf]
  %v145 = vld [vmem:[%s3 + $0x14] sm:$0xf]
  %v146 = vld [vmem:[%s3 + $0x18] sm:$0xf]
  %v147 = vld [vmem:[%s3 + $0x1c] sm:$0xf]
  %v148 = vld [vmem:[%s3 + $0x20] sm:$0xf]
  %v149 = vld [vmem:[%s3 + $0x24] sm:$0xf]
  %v150 = vld [vmem:[%s3 + $0x28] sm:$0xf]
  %v151 = vld [vmem:[%s3 + $0x2c] sm:$0xf]
  %v152 = vld [vmem:[%s3 + $0x30] sm:$0xf]
  %v153 = vld [vmem:[%s3 + $0x34] sm:$0xf]
  %v154 = vld [vmem:[%s3 + $0x38] sm:$0xf]
  %v155 = vld [vmem:[%s3 + $0x3c] sm:$0xf]
  %v156 = vld [vmem:[%s4] sm:$0x1]
  %v158 = vlaneseq
  %v159 = vshrl.u32 %v158, 7
  %v160 = vsub.s32 0, %v159
  %v161 = vrot.slane %v156, %v160
  %v167 = vunpack.c.l.b16 %v136
  %v168 = vunpack.c.l.b16 %v137
  %v169 = vunpack.c.l.b16 %v138
  %v170 = vunpack.c.l.b16 %v139
  %v171 = vpack.c.b16 %v168, %v167
  %v172 = vpack.c.b16 %v170, %v169
  %v191 = vunpack.c.l.b16 %v140
  %v192 = vunpack.c.l.b16 %v141
  %v193 = vunpack.c.l.b16 %v142
  %v194 = vunpack.c.l.b16 %v143
  %v195 = vunpack.c.l.b16 %v144
  %v196 = vunpack.c.l.b16 %v145
  %v197 = vunpack.c.l.b16 %v146
  %v198 = vunpack.c.l.b16 %v147
  %v199 = vunpack.c.l.b16 %v148
  %v200 = vunpack.c.l.b16 %v149
  %v201 = vunpack.c.l.b16 %v150
  %v202 = vunpack.c.l.b16 %v151
  %v203 = vunpack.c.l.b16 %v152
  %v204 = vunpack.c.l.b16 %v153
  %v205 = vunpack.c.l.b16 %v154
  %v206 = vunpack.c.l.b16 %v155
  %v207 = vpack.c.b16 %v192, %v191
  %v208 = vpack.c.b16 %v194, %v193
  %v209 = vpack.c.b16 %v196, %v195
  %v210 = vpack.c.b16 %v198, %v197
  %v211 = vpack.c.b16 %v200, %v199
  %v212 = vpack.c.b16 %v202, %v201
  %v213 = vpack.c.b16 %v204, %v203
  %v214 = vpack.c.b16 %v206, %v205
  %223 = vmatprep.subr.bf16.mxu0 0
  %224 = vmatpush1.bf16.msra.mxu0 %v214
  %225 = vmatprep.subr.bf16.mxu0 0
  %226 = vmatpush1.bf16.msra.mxu0 %v213
  %227 = vmatprep.subr.bf16.mxu0 0
  %228 = vmatpush1.bf16.msra.mxu0 %v212
  %229 = vmatprep.subr.bf16.mxu0 0
  %230 = vmatpush1.bf16.msra.mxu0 %v211
  %231 = vmatprep.subr.bf16.mxu0 0
  %232 = vmatpush1.bf16.msra.mxu0 %v210
  %233 = vmatprep.subr.bf16.mxu0 0
  %234 = vmatpush1.bf16.msra.mxu0 %v209
  %235 = vmatprep.subr.bf16.mxu0 0
  %236 = vmatpush1.bf16.msra.mxu0 %v208
  %237 = vmatprep.subr.bf16.mxu0 0
  %238 = vmatpush1.bf16.msra.mxu0 %v207
  %239 = vmatprep.subr.bf16.mxu0 0
  %240 = vmatpush2.bf16.msra.mxu0 0
  %241 = vmatprep.subr.bf16.mxu0 0
  %242 = vmatpush2.bf16.msra.mxu0 0
  %243 = vmatprep.subr.bf16.mxu0 0
  %244 = vmatpush2.bf16.msra.mxu0 0
  %245 = vmatprep.subr.bf16.mxu0 0
  %246 = vmatpush2.bf16.msra.mxu0 0
  %247 = vmatprep.subr.bf16.mxu0 0
  %248 = vmatpush2.bf16.msra.mxu0 0
  %249 = vmatprep.subr.bf16.mxu0 0
  %250 = vmatpush2.bf16.msra.mxu0 0
  %251 = vmatprep.subr.bf16.mxu0 0
  %252 = vmatpush2.bf16.msra.mxu0 0
  %253 = vmatprep.subr.bf16.mxu0 0
  %254 = vmatpush2.bf16.msra.mxu0 0
  %255 = vmatprep.mubr.bf16.mxu0 0
  %256 = vmatmul.mubr.bf16.gmra.mxu0 %v171
  %v257 = vpop.f32.mrf.mxu0
  %v258 = vadd.f32 %v161, %v257
  %v259 = vpop.f32.mrf.mxu0
  %v260 = vpop.f32.mrf.mxu0
  %v261 = vadd.f32 %v161, %v260
  %v262 = vpop.f32.mrf.mxu0
  %263 = vmatprep.mubr.bf16.mxu0 0
  %264 = vmatmul.mubr.bf16.gmra.mxu0 %v172
  %v265 = vpop.f32.mrf.mxu0
  %v266 = vadd.f32 %v161, %v265
  %v267 = vpop.f32.mrf.mxu0
  %v268 = vpop.f32.mrf.mxu0
  %v269 = vadd.f32 %v161, %v268
  %v270 = vpop.f32.mrf.mxu0
  %271 = vdwg.mxu0
  %v272 = vmax.f32 %v258, 0.0
  %v273 = vmax.f32 %v261, 0.0
  %v274 = vmax.f32 %v266, 0.0
  %v275 = vmax.f32 %v269, 0.0
  %v276 = vld [vmem:[#allocation3] sm:$0xff]
  %v277 = vld [vmem:[#allocation3 + $0x8] sm:$0xff]
  %v278 = vld [vmem:[#allocation3 + $0x10] sm:$0xff]
  %v279 = vld [vmem:[#allocation3 + $0x18] sm:$0xff]
  %v280 = vpack.c.bf16 %v273, %v272
  %v281 = vpack.c.bf16 %v275, %v274
  %v282 = vld [vmem:[%s5] sm:$0xf]
  %v283 = vld [vmem:[%s5 + $0x4] sm:$0xf]
  %v284 = vld [vmem:[%s5 + $0x8] sm:$0xf]
  %v285 = vld [vmem:[%s5 + $0xc] sm:$0xf]
  %v286 = vld [vmem:[%s5 + $0x10] sm:$0xf]
  %v287 = vld [vmem:[%s5 + $0x14] sm:$0xf]
  %v288 = vld [vmem:[%s5 + $0x18] sm:$0xf]
  %v289 = vld [vmem:[%s5 + $0x1c] sm:$0xf]
  %v290 = vld [vmem:[%s5 + $0x20] sm:$0xf]
  %v291 = vld [vmem:[%s5 + $0x24] sm:$0xf]
  %v292 = vld [vmem:[%s5 + $0x28] sm:$0xf]
  %v293 = vld [vmem:[%s5 + $0x2c] sm:$0xf]
  %v294 = vld [vmem:[%s5 + $0x30] sm:$0xf]
  %v295 = vld [vmem:[%s5 + $0x34] sm:$0xf]
  %v296 = vld [vmem:[%s5 + $0x38] sm:$0xf]
  %v297 = vld [vmem:[%s5 + $0x3c] sm:$0xf]
  %v314 = vunpack.c.l.b16 %v282
  %v315 = vunpack.c.l.b16 %v283
  %v316 = vunpack.c.l.b16 %v284
  %v317 = vunpack.c.l.b16 %v285
  %v318 = vunpack.c.l.b16 %v286
  %v319 = vunpack.c.l.b16 %v287
  %v320 = vunpack.c.l.b16 %v288
  %v321 = vunpack.c.l.b16 %v289
  %v322 = vunpack.c.l.b16 %v290
  %v323 = vunpack.c.l.b16 %v291
  %v324 = vunpack.c.l.b16 %v292
  %v325 = vunpack.c.l.b16 %v293
  %v326 = vunpack.c.l.b16 %v294
  %v327 = vunpack.c.l.b16 %v295
  %v328 = vunpack.c.l.b16 %v296
  %v329 = vunpack.c.l.b16 %v297
  %v330 = vpack.c.b16 %v315, %v314
  %v331 = vpack.c.b16 %v317, %v316
  %v332 = vpack.c.b16 %v319, %v318
  %v333 = vpack.c.b16 %v321, %v320
  %v334 = vpack.c.b16 %v323, %v322
  %v335 = vpack.c.b16 %v325, %v324
  %v336 = vpack.c.b16 %v327, %v326
  %v337 = vpack.c.b16 %v329, %v328
  %346 = vmatprep.subr.bf16.mxu0 0
  %347 = vmatpush1.bf16.msra.mxu0 %v337
  %348 = vmatprep.subr.bf16.mxu0 0
  %349 = vmatpush1.bf16.msra.mxu0 %v336
  %350 = vmatprep.subr.bf16.mxu0 0
  %351 = vmatpush1.bf16.msra.mxu0 %v335
  %352 = vmatprep.subr.bf16.mxu0 0
  %353 = vmatpush1.bf16.msra.mxu0 %v334
  %354 = vmatprep.subr.bf16.mxu0 0
  %355 = vmatpush1.bf16.msra.mxu0 %v333
  %356 = vmatprep.subr.bf16.mxu0 0
  %357 = vmatpush1.bf16.msra.mxu0 %v332
  %358 = vmatprep.subr.bf16.mxu0 0
  %359 = vmatpush1.bf16.msra.mxu0 %v331
  %360 = vmatprep.subr.bf16.mxu0 0
  %361 = vmatpush1.bf16.msra.mxu0 %v330
  %362 = vmatprep.subr.bf16.mxu0 0
  %363 = vmatpush2.bf16.msra.mxu0 0
  %364 = vmatprep.subr.bf16.mxu0 0
  %365 = vmatpush2.bf16.msra.mxu0 0
  %366 = vmatprep.subr.bf16.mxu0 0
  %367 = vmatpush2.bf16.msra.mxu0 0
  %368 = vmatprep.subr.bf16.mxu0 0
  %369 = vmatpush2.bf16.msra.mxu0 0
  %370 = vmatprep.subr.bf16.mxu0 0
  %371 = vmatpush2.bf16.msra.mxu0 0
  %372 = vmatprep.subr.bf16.mxu0 0
  %373 = vmatpush2.bf16.msra.mxu0 0
  %374 = vmatprep.subr.bf16.mxu0 0
  %375 = vmatpush2.bf16.msra.mxu0 0
  %376 = vmatprep.subr.bf16.mxu0 0
  %377 = vmatpush2.bf16.msra.mxu0 0
  %378 = vmatprep.mubr.bf16.mxu0 0
  %379 = vmatmul.mubr.bf16.gmra.mxu0 %v280
  %v380 = vpop.f32.mrf.mxu0
  %v381 = vadd.f32 0.0, %v380
  %v382 = vpop.f32.mrf.mxu0
  %v383 = vpop.f32.mrf.mxu0
  %v384 = vadd.f32 0.0, %v383
  %v385 = vpop.f32.mrf.mxu0
  %386 = vmatprep.mubr.bf16.mxu0 0
  %387 = vmatmul.mubr.bf16.gmra.mxu0 %v281
  %v388 = vpop.f32.mrf.mxu0
  %v389 = vadd.f32 0.0, %v388
  %v390 = vpop.f32.mrf.mxu0
  %v391 = vpop.f32.mrf.mxu0
  %v392 = vadd.f32 0.0, %v391
  %v393 = vpop.f32.mrf.mxu0
  %394 = vdwg.mxu0
  %v395 = vadd.f32 %v276, %v381
  %v396 = vadd.f32 %v277, %v384
  %v397 = vadd.f32 %v278, %v389
  %v398 = vadd.f32 %v279, %v392
  %399 = vst [vmem:[#allocation3] sm:$0xff] %v395
  %400 = vst [vmem:[#allocation3 + $0x8] sm:$0xff] %v396
  %401 = vst [vmem:[#allocation3 + $0x10] sm:$0xff] %v397
  %402 = vst [vmem:[#allocation3 + $0x18] sm:$0xff] %v398
  // Predicated region
  $region34: #{gpt_forward.12} parent=0 // pred_check
    %p403 = pneg %p27
  $region35: #{gpt_forward.12} parent=0 // pred_check_branch
    %405 = sbr.rel (%p403) target = $region37
  $region36: #{gpt_forward.12} parent=0 // pred_region
    %v406 = vld [vmem:[#allocation3] sm:$0xff]
    %v407 = vld [vmem:[#allocation3 + $0x8] sm:$0xff]
    %v408 = vld [vmem:[#allocation3 + $0x10] sm:$0xff]
    %v409 = vld [vmem:[#allocation3 + $0x18] sm:$0xff]
    %v410 = vld [vmem:[%s6] sm:$0x1]
    %v412 = vlaneseq
    %v413 = vshrl.u32 %v412, 7
    %v414 = vsub.s32 0, %v413
    %v415 = vrot.slane %v410, %v414
    %v417 = vadd.f32 %v406, %v415
    %v418 = vadd.f32 %v407, %v415
    %v419 = vadd.f32 %v408, %v415
    %v420 = vadd.f32 %v409, %v415
    %v421 = vld [vmem:[%s0] sm:$0xf]
    %v422 = vld [vmem:[%s0 + $0x4] sm:$0xf]
    %v423 = vld [vmem:[%s0 + $0x8] sm:$0xf]
    %v424 = vld [vmem:[%s0 + $0xc] sm:$0xf]
    %v425 = vunpack.c.l.bf16 %v421
    %v426 = vunpack.c.l.bf16 %v422
    %v427 = vunpack.c.l.bf16 %v423
    %v428 = vunpack.c.l.bf16 %v424
    %v429 = vadd.f32 %v417, %v425
    %v430 = vadd.f32 %v418, %v426
    %v431 = vadd.f32 %v419, %v427
    %v432 = vadd.f32 %v420, %v428
    %v433 = vpack.c.bf16 %v430, %v429
    %v434 = vpack.c.bf16 %v432, %v431
    %v437 = vunpack.c.l.b16 %v433
    %v438 = vunpack.c.h.b16 %v433
    %v439 = vunpack.c.l.b16 %v434
    %v440 = vunpack.c.h.b16 %v434
    %v441 = vpack.c.b16 %v437, %v437
    %v442 = vpack.c.b16 %v438, %v438
    %v443 = vpack.c.b16 %v439, %v439
    %v444 = vpack.c.b16 %v440, %v440
    %449 = vst [vmem:[%s7] sm:$0xf] %v441
    %450 = vst [vmem:[%s7 + $0x4] sm:$0xf] %v442
    %451 = vst [vmem:[%s7 + $0x8] sm:$0xf] %v443
    %452 = vst [vmem:[%s7 + $0xc] sm:$0xf] %v444
  $region37: #{gpt_forward.12} parent=0 // pred_fallthru
    _
  // Predicated region
  $region38: #{gpt_forward.12} parent=0 // pred_check
    _
  $region39: #{gpt_forward.12} parent=0 // pred_check_branch
    %454 = sbr.rel (0) target = $region41
  $region40: #{gpt_forward.12} parent=0 // pred_region
    _
  $region41: #{gpt_forward.12} parent=0 // pred_fallthru
    _
  // Predicated region
  $region42: #{gpt_forward.12} parent=0 // pred_check
    _
  $region43: #{gpt_forward.12} parent=0 // pred_check_branch
    %456 = sbr.rel (0) target = $region45
  $region44: #{gpt_forward.12} parent=0 // pred_region
    _
  $region45: #{gpt_forward.12} parent=0 // pred_fallthru
    _

// kernel: gpt_forward.11
$region0: #{gpt_forward.11}
  #allocation0 [shape = 'u32[]', space=smem, size = 0x4, offset = 0x4, fixed_abs, tag = 'smem constant byte address 0x4 - core index']
  #allocation1 [shape = 'u32[144,128]{1,0:T(1,128)}', space=vmem, size = 0x12000, scoped, tag = 'internal scratch']
  #allocation2 [shape = 'f32[32,128]{1,0:T(8,128)}', space=vmem, size = 0x4000, scoped, tag = 'scratch operand']
  %s0 = inlined_call_operand.vmem [shape: bf16[32,128], index: 0, kind: input, shape index: {}]
  %s1 = inlined_call_operand.vmem [shape: bf16[128,128], index: 1, kind: input, shape index: {}]
  %s2 = inlined_call_operand.vmem [shape: f32[1,128], index: 2, kind: input, shape index: {}]
  %s3 = inlined_call_operand.vmem [shape: bf16[32,128], index: 3, kind: input, shape index: {}]
  %s4 = inlined_call_operand.vmem [shape: bf16[32,128], index: 4, kind: output, shape index: {}]
  %s5 = sld [smem:[#allocation0]]
  $region34: #{gpt_forward.11} parent=0
    _
  %s7 = ssub.s32 1, %s5
  %s8 = scalar_select 0, %s7, %s5
  // Predicated region
  $region2: #{gpt_forward.11} parent=0 // pred_check
    _
  $region3: #{gpt_forward.11} parent=0 // pred_check_branch
    %10 = sbr.rel (0) target = $region5
  $region4: #{gpt_forward.11} parent=0 // pred_region
    _
  $region5: #{gpt_forward.11} parent=0 // pred_fallthru
    _
  // Predicated region
  $region6: #{gpt_forward.11} parent=0 // pred_check
    _
  $region7: #{gpt_forward.11} parent=0 // pred_check_branch
    %12 = sbr.rel (0) target = $region9
  $region8: #{gpt_forward.11} parent=0 // pred_region
    _
  $region9: #{gpt_forward.11} parent=0 // pred_fallthru
    _
  // Predicated region
  $region10: #{gpt_forward.11} parent=0 // pred_check
    _
  $region11: #{gpt_forward.11} parent=0 // pred_check_branch
    %14 = sbr.rel (0) target = $region13
  $region12: #{gpt_forward.11} parent=0 // pred_region
    _
  $region13: #{gpt_forward.11} parent=0 // pred_fallthru
    _
  // Predicated region
  $region14: #{gpt_forward.11} parent=0 // pred_check
    _
  $region15: #{gpt_forward.11} parent=0 // pred_check_branch
    %16 = sbr.rel (0) target = $region17
  $region16: #{gpt_forward.11} parent=0 // pred_region
    _
  $region17: #{gpt_forward.11} parent=0 // pred_fallthru
    _
  %p18 = scmp.eq.s32.totalorder 0, 0
  // Predicated region
  $region18: #{gpt_forward.11} parent=0 // pred_check
    %p19 = pneg %p18
  $region19: #{gpt_forward.11} parent=0 // pred_check_branch
    %21 = sbr.rel (%p19) target = $region21
  $region20: #{gpt_forward.11} parent=0 // pred_region
    %22 = vst [vmem:[#allocation2] sm:$0xff] 0.0
    %23 = vst [vmem:[#allocation2 + $0x8] sm:$0xff] 0.0
    %24 = vst [vmem:[#allocation2 + $0x10] sm:$0xff] 0.0
    %25 = vst [vmem:[#allocation2 + $0x18] sm:$0xff] 0.0
  $region21: #{gpt_forward.11} parent=0 // pred_fallthru
    _
  %v26 = vld [vmem:[#allocation2] sm:$0xff]
  %v27 = vld [vmem:[#allocation2 + $0x8] sm:$0xff]
  %v28 = vld [vmem:[#allocation2 + $0x10] sm:$0xff]
  %v29 = vld [vmem:[#allocation2 + $0x18] sm:$0xff]
  %v30 = vld [vmem:[%s0] sm:$0xf]
  %v31 = vld [vmem:[%s0 + $0x4] sm:$0xf]
  %v32 = vld [vmem:[%s0 + $0x8] sm:$0xf]
  %v33 = vld [vmem:[%s0 + $0xc] sm:$0xf]
  %v34 = vld [vmem:[%s1] sm:$0xf]
  %v35 = vld [vmem:[%s1 + $0x4] sm:$0xf]
  %v36 = vld [vmem:[%s1 + $0x8] sm:$0xf]
  %v37 = vld [vmem:[%s1 + $0xc] sm:$0xf]
  %v38 = vld [vmem:[%s1 + $0x10] sm:$0xf]
  %v39 = vld [vmem:[%s1 + $0x14] sm:$0xf]
  %v40 = vld [vmem:[%s1 + $0x18] sm:$0xf]
  %v41 = vld [vmem:[%s1 + $0x1c] sm:$0xf]
  %v42 = vld [vmem:[%s1 + $0x20] sm:$0xf]
  %v43 = vld [vmem:[%s1 + $0x24] sm:$0xf]
  %v44 = vld [vmem:[%s1 + $0x28] sm:$0xf]
  %v45 = vld [vmem:[%s1 + $0x2c] sm:$0xf]
  %v46 = vld [vmem:[%s1 + $0x30] sm:$0xf]
  %v47 = vld [vmem:[%s1 + $0x34] sm:$0xf]
  %v48 = vld [vmem:[%s1 + $0x38] sm:$0xf]
  %v49 = vld [vmem:[%s1 + $0x3c] sm:$0xf]
  %v54 = vunpack.c.l.b16 %v30
  %v55 = vunpack.c.l.b16 %v31
  %v56 = vunpack.c.l.b16 %v32
  %v57 = vunpack.c.l.b16 %v33
  %v58 = vpack.c.b16 %v55, %v54
  %v59 = vpack.c.b16 %v57, %v56
  %v78 = vunpack.c.l.b16 %v34
  %v79 = vunpack.c.l.b16 %v35
  %v80 = vunpack.c.l.b16 %v36
  %v81 = vunpack.c.l.b16 %v37
  %v82 = vunpack.c.l.b16 %v38
  %v83 = vunpack.c.l.b16 %v39
  %v84 = vunpack.c.l.b16 %v40
  %v85 = vunpack.c.l.b16 %v41
  %v86 = vunpack.c.l.b16 %v42
  %v87 = vunpack.c.l.b16 %v43
  %v88 = vunpack.c.l.b16 %v44
  %v89 = vunpack.c.l.b16 %v45
  %v90 = vunpack.c.l.b16 %v46
  %v91 = vunpack.c.l.b16 %v47
  %v92 = vunpack.c.l.b16 %v48
  %v93 = vunpack.c.l.b16 %v49
  %v94 = vpack.c.b16 %v79, %v78
  %v95 = vpack.c.b16 %v81, %v80
  %v96 = vpack.c.b16 %v83, %v82
  %v97 = vpack.c.b16 %v85, %v84
  %v98 = vpack.c.b16 %v87, %v86
  %v99 = vpack.c.b16 %v89, %v88
  %v100 = vpack.c.b16 %v91, %v90
  %v101 = vpack.c.b16 %v93, %v92
  %110 = vmatprep.subr.bf16.mxu0 0
  %111 = vmatpush1.bf16.msra.mxu0 %v101
  %112 = vmatprep.subr.bf16.mxu0 0
  %113 = vmatpush1.bf16.msra.mxu0 %v100
  %114 = vmatprep.subr.bf16.mxu0 0
  %115 = vmatpush1.bf16.msra.mxu0 %v99
  %116 = vmatprep.subr.bf16.mxu0 0
  %117 = vmatpush1.bf16.msra.mxu0 %v98
  %118 = vmatprep.subr.bf16.mxu0 0
  %119 = vmatpush1.bf16.msra.mxu0 %v97
  %120 = vmatprep.subr.bf16.mxu0 0
  %121 = vmatpush1.bf16.msra.mxu0 %v96
  %122 = vmatprep.subr.bf16.mxu0 0
  %123 = vmatpush1.bf16.msra.mxu0 %v95
  %124 = vmatprep.subr.bf16.mxu0 0
  %125 = vmatpush1.bf16.msra.mxu0 %v94
  %126 = vmatprep.subr.bf16.mxu0 0
  %127 = vmatpush2.bf16.msra.mxu0 0
  %128 = vmatprep.subr.bf16.mxu0 0
  %129 = vmatpush2.bf16.msra.mxu0 0
  %130 = vmatprep.subr.bf16.mxu0 0
  %131 = vmatpush2.bf16.msra.mxu0 0
  %132 = vmatprep.subr.bf16.mxu0 0
  %133 = vmatpush2.bf16.msra.mxu0 0
  %134 = vmatprep.subr.bf16.mxu0 0
  %135 = vmatpush2.bf16.msra.mxu0 0
  %136 = vmatprep.subr.bf16.mxu0 0
  %137 = vmatpush2.bf16.msra.mxu0 0
  %138 = vmatprep.subr.bf16.mxu0 0
  %139 = vmatpush2.bf16.msra.mxu0 0
  %140 = vmatprep.subr.bf16.mxu0 0
  %141 = vmatpush2.bf16.msra.mxu0 0
  %142 = vmatprep.mubr.bf16.mxu0 0
  %143 = vmatmul.mubr.bf16.gmra.mxu0 %v58
  %v144 = vpop.f32.mrf.mxu0
  %v145 = vadd.f32 0.0, %v144
  %v146 = vpop.f32.mrf.mxu0
  %v147 = vpop.f32.mrf.mxu0
  %v148 = vadd.f32 0.0, %v147
  %v149 = vpop.f32.mrf.mxu0
  %150 = vmatprep.mubr.bf16.mxu0 0
  %151 = vmatmul.mubr.bf16.gmra.mxu0 %v59
  %v152 = vpop.f32.mrf.mxu0
  %v153 = vadd.f32 0.0, %v152
  %v154 = vpop.f32.mrf.mxu0
  %v155 = vpop.f32.mrf.mxu0
  %v156 = vadd.f32 0.0, %v155
  %v157 = vpop.f32.mrf.mxu0
  %158 = vdwg.mxu0
  %v159 = vadd.f32 %v26, %v145
  %v160 = vadd.f32 %v27, %v148
  %v161 = vadd.f32 %v28, %v153
  %v162 = vadd.f32 %v29, %v156
  %163 = vst [vmem:[#allocation2] sm:$0xff] %v159
  %164 = vst [vmem:[#allocation2 + $0x8] sm:$0xff] %v160
  %165 = vst [vmem:[#allocation2 + $0x10] sm:$0xff] %v161
  %166 = vst [vmem:[#allocation2 + $0x18] sm:$0xff] %v162
  // Predicated region
  $region22: #{gpt_forward.11} parent=0 // pred_check
    %p167 = pneg %p18
  $region23: #{gpt_forward.11} parent=0 // pred_check_branch
    %169 = sbr.rel (%p167) target = $region25
  $region24: #{gpt_forward.11} parent=0 // pred_region
    %v170 = vld [vmem:[#allocation2] sm:$0xff]
    %v171 = vld [vmem:[#allocation2 + $0x8] sm:$0xff]
    %v172 = vld [vmem:[#allocation2 + $0x10] sm:$0xff]
    %v173 = vld [vmem:[#allocation2 + $0x18] sm:$0xff]
    %v174 = vld [vmem:[%s2] sm:$0x1]
    %v176 = vlaneseq
    %v177 = vshrl.u32 %v176, 7
    %v178 = vsub.s32 0, %v177
    %v179 = vrot.slane %v174, %v178
    %v181 = vadd.f32 %v170, %v179
    %v182 = vadd.f32 %v171, %v179
    %v183 = vadd.f32 %v172, %v179
    %v184 = vadd.f32 %v173, %v179
    %v185 = vld [vmem:[%s3] sm:$0xf]
    %v186 = vld [vmem:[%s3 + $0x4] sm:$0xf]
    %v187 = vld [vmem:[%s3 + $0x8] sm:$0xf]
    %v188 = vld [vmem:[%s3 + $0xc] sm:$0xf]
    %v189 = vunpack.c.l.bf16 %v185
    %v190 = vunpack.c.l.bf16 %v186
    %v191 = vunpack.c.l.bf16 %v187
    %v192 = vunpack.c.l.bf16 %v188
    %v193 = vadd.f32 %v181, %v189
    %v194 = vadd.f32 %v182, %v190
    %v195 = vadd.f32 %v183, %v191
    %v196 = vadd.f32 %v184, %v192
    %v197 = vpack.c.bf16 %v194, %v193
    %v198 = vpack.c.bf16 %v196, %v195
    %v201 = vunpack.c.l.b16 %v197
    %v202 = vunpack.c.h.b16 %v197
    %v203 = vunpack.c.l.b16 %v198
    %v204 = vunpack.c.h.b16 %v198
    %v205 = vpack.c.b16 %v201, %v201
    %v206 = vpack.c.b16 %v202, %v202
    %v207 = vpack.c.b16 %v203, %v203
    %v208 = vpack.c.b16 %v204, %v204
    %213 = vst [vmem:[%s4] sm:$0xf] %v205
    %214 = vst [vmem:[%s4 + $0x4] sm:$0xf] %v206
    %215 = vst [vmem:[%s4 + $0x8] sm:$0xf] %v207
    %216 = vst [vmem:[%s4 + $0xc] sm:$0xf] %v208
  $region25: #{gpt_forward.11} parent=0 // pred_fallthru
    _
  // Predicated region
  $region26: #{gpt_forward.11} parent=0 // pred_check
    _
  $region27: #{gpt_forward.11} parent=0 // pred_check_branch
    %218 = sbr.rel (0) target = $region29
  $region28: #{gpt_forward.11} parent=0 // pred_region
    _
  $region29: #{gpt_forward.11} parent=0 // pred_fallthru
    _
  // Predicated region
  $region30: #{gpt_forward.11} parent=0 // pred_check
    _
  $region31: #{gpt_forward.11} parent=0 // pred_check_branch
    %220 = sbr.rel (0) target = $region33
  $region32: #{gpt_forward.11} parent=0 // pred_region
    _
  $region33: #{gpt_forward.11} parent=0 // pred_fallthru
    _

// kernel: gpt_forward.10
$region0: #{gpt_forward.10}
  #allocation0 [shape = 'u32[]', space=smem, size = 0x4, offset = 0x4, fixed_abs, tag = 'smem constant byte address 0x4 - core index']
  #allocation1 [shape = 'u32[144,128]{1,0:T(1,128)}', space=vmem, size = 0x12000, scoped, tag = 'internal scratch']
  #allocation2 [shape = 'f32[4,16,1]{2,1,0:T(8,128)}', space=vmem, size = 0x8000, scoped, tag = 'scratch operand']
  #allocation3 [shape = 'f32[4,16,1]{2,1,0:T(8,128)}', space=vmem, size = 0x8000, scoped, tag = 'scratch operand']
  #allocation4 [shape = 'f32[4,16,8]{2,1,0:T(8,128)}', space=vmem, size = 0x8000, scoped, tag = 'scratch operand']
  %s0 = inlined_call_operand.vmem [shape: bf16[2,16,384], index: 0, kind: input, shape index: {}, may-alias: {0,1,2}]
  %s1 = inlined_call_operand.vmem [shape: bf16[2,16,384], index: 1, kind: input, shape index: {}, may-alias: {0,1,2}]
  %s2 = inlined_call_operand.vmem [shape: bf16[2,16,384], index: 2, kind: input, shape index: {}, may-alias: {0,1,2}]
  %s3 = inlined_call_operand.vmem [shape: bf16[2,16,128], index: 3, kind: output, shape index: {}]
  %s4 = sld [smem:[#allocation0]]
  $region180: #{gpt_forward.10} parent=0
    _
  %s6 = ssub.s32 1, %s4
  %s7 = scalar_select 0, %s6, %s4
  $region1: #{gpt_forward.10} parent=0
    #allocation5 [shape = 'u8[8192]{0}', space=vmem, size = 0x2000, scoped, tag = 'input window, operand 0']
    #allocation6 [shape = 'u8[8192]{0}', space=vmem, size = 0x2000, scoped, tag = 'input window, operand 1']
    #allocation7 [shape = 'u8[8192]{0}', space=vmem, size = 0x2000, scoped, tag = 'input window, operand 2']
    loop: start=0, step=1, limit=4
    $region2: #{gpt_forward.10} parent=1 // loop_pre_header
      _
    $region3: #{gpt_forward.10} parent=1 // loop_header
      %s9 = sphi 0, %s13
      %p10 = scmp.ge.s32.totalorder %s9, 4
      %s16 = sphi 0, %s35
      %s17 = sphi 0, %s31
      %s18 = sphi 0, %s27
      %s19 = sphi 0, %s16
      %s20 = sphi 0, %s17
      %s21 = sphi 0, %s18
      %s22 = sphi 0, %s19
      %s23 = sphi 0, %s20
      %s24 = sphi 0, %s21
      %s40 = sphi 0, %s42
      %s43 = sphi 0, %s40
      %s44 = sphi 0, %s43
      %s60 = sphi 0, %s44
      %s72 = sphi 0, %s74
      %s75 = sphi 0, %s72
      %s76 = sphi 0, %s75
      %s92 = sphi 0, %s76
      %s104 = sphi 0, %s106
      %s107 = sphi 0, %s104
      %s108 = sphi 0, %s107
      %s124 = sphi 0, %s108
      %s132 = sphi 0, %s134
      %s135 = sphi 0, %s132
      %s136 = sphi 0, %s135
      %s152 = sphi 0, %s136
    $region4: #{gpt_forward.10} parent=1 // loop_header_branch
      %12 = sbr.rel (%p10) target = $region8
    $region5: #{gpt_forward.10} parent=1 // loop_body
      %s14 = ssub.s32 %s9, 1
      %s15 = ssub.s32 %s9, 2
      %s25 = sadd.s32 1, %s18
      %p26 = scmp.ge.s32.totalorder %s25, 1
      %s27 = scalar_select %p26, 0, %s25
      %s28 = sadd.s32 1, %s17
      %s29 = scalar_select %p26, %s28, %s17
      %p30 = scmp.ge.s32.totalorder %s29, 1
      %s31 = scalar_select %p30, 0, %s29
      %s32 = sadd.s32 1, %s16
      %s33 = scalar_select %p30, %s32, %s16
      %p34 = scmp.ge.s32.totalorder %s33, 2
      %s35 = scalar_select %p34, 0, %s33
      %s36 = ssub.s32 %s16, %s35
      %s37 = ssub.s32 %s17, %s31
      %s38 = sor.u32 %s36, %s37
      %p39 = scmp.eq.s32.totalorder %s38, 0
      %s41 = sadd.s32 %s40, 1
      %s42 = scalar_select %p39, %s40, %s41
      %p45 = pneg %p39
      %p46 = scmp.eq.s32.totalorder %s9, 1
      %p47 = por %p45, %p46
      %p48 = scmp.ne.s32.totalorder %s40, %s43
      %p49 = scmp.eq.s32.totalorder %s9, 0
      %p50 = por %p48, %p49
      %p51 = scmp.ne.s32.totalorder %s40, %s43
      %p52 = scmp.eq.s32.totalorder %s14, 1
      %p53 = por %p51, %p52
      %p54 = scmp.ne.s32.totalorder %s43, %s44
      %p55 = scmp.eq.s32.totalorder %s14, 0
      %p56 = por %p54, %p55
      %p57 = scmp.ne.s32.totalorder %s43, %s44
      %p58 = scmp.eq.s32.totalorder %s15, 1
      %p59 = por %p57, %p58
      %p61 = scmp.ne.s32.totalorder %s44, %s60
      %p62 = scmp.eq.s32.totalorder %s15, 0
      %p63 = por %p61, %p62
      %p64 = scmp.lt.s32.totalorder %s18, %s17
      %s65 = scalar_select %p64, %s18, %s17
      %p66 = scmp.lt.s32.totalorder %s27, %s31
      %s67 = scalar_select %p66, %s27, %s31
      %s68 = ssub.s32 %s16, %s35
      %s69 = ssub.s32 %s65, %s67
      %s70 = sor.u32 %s68, %s69
      %p71 = scmp.eq.s32.totalorder %s70, 0
      %s73 = sadd.s32 %s72, 1
      %s74 = scalar_select %p71, %s72, %s73
      %p77 = pneg %p71
      %p78 = scmp.eq.s32.totalorder %s9, 1
      %p79 = por %p77, %p78
      %p80 = scmp.ne.s32.totalorder %s72, %s75
      %p81 = scmp.eq.s32.totalorder %s9, 0
      %p82 = por %p80, %p81
      %p83 = scmp.ne.s32.totalorder %s72, %s75
      %p84 = scmp.eq.s32.totalorder %s14, 1
      %p85 = por %p83, %p84
      %p86 = scmp.ne.s32.totalorder %s75, %s76
      %p87 = scmp.eq.s32.totalorder %s14, 0
      %p88 = por %p86, %p87
      %p89 = scmp.ne.s32.totalorder %s75, %s76
      %p90 = scmp.eq.s32.totalorder %s15, 1
      %p91 = por %p89, %p90
      %p93 = scmp.ne.s32.totalorder %s76, %s92
      %p94 = scmp.eq.s32.totalorder %s15, 0
      %p95 = por %p93, %p94
      %p96 = scmp.lt.s32.totalorder %s18, %s17
      %s97 = scalar_select %p96, %s18, %s17
      %p98 = scmp.lt.s32.totalorder %s27, %s31
      %s99 = scalar_select %p98, %s27, %s31
      %s100 = ssub.s32 %s16, %s35
      %s101 = ssub.s32 %s97, %s99
      %s102 = sor.u32 %s100, %s101
      %p103 = scmp.eq.s32.totalorder %s102, 0
      %s105 = sadd.s32 %s104, 1
      %s106 = scalar_select %p103, %s104, %s105
      %p109 = pneg %p103
      %p110 = scmp.eq.s32.totalorder %s9, 1
      %p111 = por %p109, %p110
      %p112 = scmp.ne.s32.totalorder %s104, %s107
      %p113 = scmp.eq.s32.totalorder %s9, 0
      %p114 = por %p112, %p113
      %p115 = scmp.ne.s32.totalorder %s104, %s107
      %p116 = scmp.eq.s32.totalorder %s14, 1
      %p117 = por %p115, %p116
      %p118 = scmp.ne.s32.totalorder %s107, %s108
      %p119 = scmp.eq.s32.totalorder %s14, 0
      %p120 = por %p118, %p119
      %p121 = scmp.ne.s32.totalorder %s107, %s108
      %p122 = scmp.eq.s32.totalorder %s15, 1
      %p123 = por %p121, %p122
      %p125 = scmp.ne.s32.totalorder %s108, %s124
      %p126 = scmp.eq.s32.totalorder %s15, 0
      %p127 = por %p125, %p126
      %s128 = ssub.s32 %s16, %s35
      %s129 = ssub.s32 %s17, %s31
      %s130 = sor.u32 %s128, %s129
      %p131 = scmp.eq.s32.totalorder %s130, 0
      %s133 = sadd.s32 %s132, 1
      %s134 = scalar_select %p131, %s132, %s133
      %p137 = pneg %p131
      %p138 = scmp.eq.s32.totalorder %s9, 1
      %p139 = por %p137, %p138
      %p140 = scmp.ne.s32.totalorder %s132, %s135
      %p141 = scmp.eq.s32.totalorder %s9, 0
      %p142 = por %p140, %p141
      %p143 = scmp.ne.s32.totalorder %s132, %s135
      %p144 = scmp.eq.s32.totalorder %s14, 1
      %p145 = por %p143, %p144
      %p146 = scmp.ne.s32.totalorder %s135, %s136
      %p147 = scmp.eq.s32.totalorder %s14, 0
      %p148 = por %p146, %p147
      %p149 = scmp.ne.s32.totalorder %s135, %s136
      %p150 = scmp.eq.s32.totalorder %s15, 1
      %p151 = por %p149, %p150
      %p153 = scmp.ne.s32.totalorder %s136, %s152
      %p154 = scmp.eq.s32.totalorder %s15, 0
      %p155 = por %p153, %p154
      %p156 = scmp.le.s32.totalorder 1, %s9
      %p157 = scmp.lt.s32.totalorder %s9, 3
      %p158 = pnand %p156, %p157
      %p159 = pneg %p158
      // Predicated region
      $region9: #{gpt_forward.10} parent=5 // pred_check
        _
      $region10: #{gpt_forward.10} parent=5 // pred_check_branch
        %161 = sbr.rel (%p158) target = $region12
      $region11: #{gpt_forward.10} parent=5 // pred_region
        %s162 = ssub.s32 %s9, 1
      $region12: #{gpt_forward.10} parent=5 // pred_fallthru
        _
      %p163 = scmp.lt.s32.totalorder %s9, 2
      // Predicated region
      $region13: #{gpt_forward.10} parent=5 // pred_check
        %p164 = pneg %p163
      $region14: #{gpt_forward.10} parent=5 // pred_check_branch
        %166 = sbr.rel (%p164) target = $region16
      $region15: #{gpt_forward.10} parent=5 // pred_region
        // Predicated region
        $region17: #{gpt_forward.10} parent=15 // pred_check
          %p167 = pneg %p50
        $region18: #{gpt_forward.10} parent=15 // pred_check_branch
          %169 = sbr.rel (%p167) target = $region20
        $region19: #{gpt_forward.10} parent=15 // pred_region
          %s170 = sand.u32 %s40, 1
          %s171 = sand.u32 %s40, 1
          %s172 = smul.addr %s171, 8
          %s173 = scalar_lea.vmem [#allocation5], %s172
          %s174 = smul.u32 2, %s17
          %s175 = smul.addr %s174, 3
          %s176 = smul.addr %s16, 6
          %s177 = sadd.s32 %s175, %s176
          %s178 = smul.addr %s177, 4
          %s179 = scalar_lea.vmem %s0, %s178
          // Predicated region
          $region21: #{gpt_forward.10} parent=19 // pred_check
            _
          $region22: #{gpt_forward.10} parent=19 // pred_check_branch
            %181 = sbr.rel (0) target = $region24
          $region23: #{gpt_forward.10} parent=19 // pred_region
            // Predicated region
            $region25: #{gpt_forward.10} parent=23 // pred_check
              _
            $region26: #{gpt_forward.10} parent=23 // pred_check_branch
              %183 = sbr.rel target = $region28
            $region27: #{gpt_forward.10} parent=23 // pred_region
              // Predicated region
              $region40: #{gpt_forward.10} parent=27 // pred_check
                _
              $region41: #{gpt_forward.10} parent=27 // pred_check_branch
                %201 = sbr.rel (0) target = $region43
              $region42: #{gpt_forward.10} parent=27 // pred_region
                loop: start=0, step=1, limit=1
                $region44: #{gpt_forward.10} parent=42 // loop_pre_header
                  _
                $region45: #{gpt_forward.10} parent=42 // loop_header
                  %s203 = sphi 0, %s207
                  %p204 = scmp.ge.s32.totalorder %s203, 1
                  %s208 = sphi %s179, %s179
                  %s209 = sphi %s173, %s173
                $region46: #{gpt_forward.10} parent=42 // loop_header_branch
                  %206 = sbr.rel (%p204) target = $region50
                $region47: #{gpt_forward.10} parent=42 // loop_body
                  _
                $region48: #{gpt_forward.10} parent=42 // loop_footer
                  %s207 = sadd.s32 1, %s203
                $region49: #{gpt_forward.10} parent=42 // loop_footer_branch
                  %202 = sbr.rel target = $region45
                $region50: #{gpt_forward.10} parent=42 // loop_exit
                  _
                %s211 = ssub.s32 16, 1
                loop: start=0, step=1, limit=1
                $region51: #{gpt_forward.10} parent=42 // loop_pre_header
                  _
                $region52: #{gpt_forward.10} parent=42 // loop_header
                  %s213 = sphi 0, %s217
                  %p214 = scmp.ge.s32.totalorder %s213, 1
                  %s218 = sphi %s179, %s179
                  %s219 = sphi %s173, %s173
                $region53: #{gpt_forward.10} parent=42 // loop_header_branch
                  %216 = sbr.rel (%p214) target = $region57
                $region54: #{gpt_forward.10} parent=42 // loop_body
                  %v220 = vld [vmem:[%s218] sm:%s211]
                  %221 = vst [vmem:[%s219] sm:%s211] %v220
                  %v222 = vld [vmem:[%s218 + $0xc] sm:%s211]
                  %223 = vst [vmem:[%s219 + $0x4] sm:%s211] %v222
                $region55: #{gpt_forward.10} parent=42 // loop_footer
                  %s217 = sadd.s32 1, %s213
                $region56: #{gpt_forward.10} parent=42 // loop_footer_branch
                  %212 = sbr.rel target = $region52
                $region57: #{gpt_forward.10} parent=42 // loop_exit
                  _
              $region43: #{gpt_forward.10} parent=27 // pred_fallthru
                _
            $region28: #{gpt_forward.10} parent=23 // pred_fallthru
              _
            // Predicated region
            $region29: #{gpt_forward.10} parent=23 // pred_check
              _
            $region30: #{gpt_forward.10} parent=23 // pred_check_branch
              %185 = sbr.rel (0) target = $region32
            $region31: #{gpt_forward.10} parent=23 // pred_region
              %s187 = ssub.s32 16, 1
              loop: start=0, step=1, limit=1
              $region33: #{gpt_forward.10} parent=31 // loop_pre_header
                _
              $region34: #{gpt_forward.10} parent=31 // loop_header
                %s189 = sphi 0, %s193
                %p190 = scmp.ge.s32.totalorder %s189, 1
                %s194 = sphi %s179, %s179
                %s195 = sphi %s173, %s173
              $region35: #{gpt_forward.10} parent=31 // loop_header_branch
                %192 = sbr.rel (%p190) target = $region39
              $region36: #{gpt_forward.10} parent=31 // loop_body
                %v196 = vld [vmem:[%s194] sm:%s187]
                %197 = vst [vmem:[%s195] sm:%s187] %v196
                %v198 = vld [vmem:[%s194 + $0xc] sm:%s187]
                %199 = vst [vmem:[%s195 + $0x4] sm:%s187] %v198
              $region37: #{gpt_forward.10} parent=31 // loop_footer
                %s193 = sadd.s32 1, %s189
              $region38: #{gpt_forward.10} parent=31 // loop_footer_branch
                %188 = sbr.rel target = $region34
              $region39: #{gpt_forward.10} parent=31 // loop_exit
                _
            $region32: #{gpt_forward.10} parent=23 // pred_fallthru
              _
          $region24: #{gpt_forward.10} parent=19 // pred_fallthru
            _
          %224 = vnop
        $region20: #{gpt_forward.10} parent=15 // pred_fallthru
          _
        // Predicated region
        $region58: #{gpt_forward.10} parent=15 // pred_check
          %p225 = pneg %p82
        $region59: #{gpt_forward.10} parent=15 // pred_check_branch
          %227 = sbr.rel (%p225) target = $region61
        $region60: #{gpt_forward.10} parent=15 // pred_region
          %s228 = sand.u32 %s72, 1
          %s229 = sand.u32 %s72, 1
          %s230 = smul.addr %s229, 8
          %s231 = scalar_lea.vmem [#allocation6], %s230
          %p232 = scmp.lt.s32.totalorder %s18, %s17
          %s233 = scalar_select %p232, %s18, %s17
          %s234 = smul.u32 2, %s233
          %s235 = smul.addr %s234, 3
          %s236 = sadd.s32 1, %s235
          %s237 = smul.addr %s16, 6
          %s238 = sadd.s32 %s236, %s237
          %s239 = smul.addr %s238, 4
          %s240 = scalar_lea.vmem %s1, %s239
          // Predicated region
          $region62: #{gpt_forward.10} parent=60 // pred_check
            _
          $region63: #{gpt_forward.10} parent=60 // pred_check_branch
            %242 = sbr.rel (0) target = $region65
          $region64: #{gpt_forward.10} parent=60 // pred_region
            // Predicated region
            $region66: #{gpt_forward.10} parent=64 // pred_check
              _
            $region67: #{gpt_forward.10} parent=64 // pred_check_branch
              %244 = sbr.rel target = $region69
            $region68: #{gpt_forward.10} parent=64 // pred_region
              // Predicated region
              $region81: #{gpt_forward.10} parent=68 // pred_check
                _
              $region82: #{gpt_forward.10} parent=68 // pred_check_branch
                %262 = sbr.rel (0) target = $region84
              $region83: #{gpt_forward.10} parent=68 // pred_region
                loop: start=0, step=1, limit=1
                $region85: #{gpt_forward.10} parent=83 // loop_pre_header
                  _
                $region86: #{gpt_forward.10} parent=83 // loop_header
                  %s264 = sphi 0, %s268
                  %p265 = scmp.ge.s32.totalorder %s264, 1
                  %s269 = sphi %s240, %s240
                  %s270 = sphi %s231, %s231
                $region87: #{gpt_forward.10} parent=83 // loop_header_branch
                  %267 = sbr.rel (%p265) target = $region91
                $region88: #{gpt_forward.10} parent=83 // loop_body
                  _
                $region89: #{gpt_forward.10} parent=83 // loop_footer
                  %s268 = sadd.s32 1, %s264
                $region90: #{gpt_forward.10} parent=83 // loop_footer_branch
                  %263 = sbr.rel target = $region86
                $region91: #{gpt_forward.10} parent=83 // loop_exit
                  _
                %s272 = ssub.s32 16, 1
                loop: start=0, step=1, limit=1
                $region92: #{gpt_forward.10} parent=83 // loop_pre_header
                  _
                $region93: #{gpt_forward.10} parent=83 // loop_header
                  %s274 = sphi 0, %s278
                  %p275 = scmp.ge.s32.totalorder %s274, 1
                  %s279 = sphi %s240, %s240
                  %s280 = sphi %s231, %s231
                $region94: #{gpt_forward.10} parent=83 // loop_header_branch
                  %277 = sbr.rel (%p275) target = $region98
                $region95: #{gpt_forward.10} parent=83 // loop_body
                  %v281 = vld [vmem:[%s279] sm:%s272]
                  %282 = vst [vmem:[%s280] sm:%s272] %v281
                  %v283 = vld [vmem:[%s279 + $0xc] sm:%s272]
                  %284 = vst [vmem:[%s280 + $0x4] sm:%s272] %v283
                $region96: #{gpt_forward.10} parent=83 // loop_footer
                  %s278 = sadd.s32 1, %s274
                $region97: #{gpt_forward.10} parent=83 // loop_footer_branch
                  %273 = sbr.rel target = $region93
                $region98: #{gpt_forward.10} parent=83 // loop_exit
                  _
              $region84: #{gpt_forward.10} parent=68 // pred_fallthru
                _
            $region69: #{gpt_forward.10} parent=64 // pred_fallthru
              _
            // Predicated region
            $region70: #{gpt_forward.10} parent=64 // pred_check
              _
            $region71: #{gpt_forward.10} parent=64 // pred_check_branch
              %246 = sbr.rel (0) target = $region73
            $region72: #{gpt_forward.10} parent=64 // pred_region
              %s248 = ssub.s32 16, 1
              loop: start=0, step=1, limit=1
              $region74: #{gpt_forward.10} parent=72 // loop_pre_header
                _
              $region75: #{gpt_forward.10} parent=72 // loop_header
                %s250 = sphi 0, %s254
                %p251 = scmp.ge.s32.totalorder %s250, 1
                %s255 = sphi %s240, %s240
                %s256 = sphi %s231, %s231
              $region76: #{gpt_forward.10} parent=72 // loop_header_branch
                %253 = sbr.rel (%p251) target = $region80
              $region77: #{gpt_forward.10} parent=72 // loop_body
                %v257 = vld [vmem:[%s255] sm:%s248]
                %258 = vst [vmem:[%s256] sm:%s248] %v257
                %v259 = vld [vmem:[%s255 + $0xc] sm:%s248]
                %260 = vst [vmem:[%s256 + $0x4] sm:%s248] %v259
              $region78: #{gpt_forward.10} parent=72 // loop_footer
                %s254 = sadd.s32 1, %s250
              $region79: #{gpt_forward.10} parent=72 // loop_footer_branch
                %249 = sbr.rel target = $region75
              $region80: #{gpt_forward.10} parent=72 // loop_exit
                _
            $region73: #{gpt_forward.10} parent=64 // pred_fallthru
              _
          $region65: #{gpt_forward.10} parent=60 // pred_fallthru
            _
          %285 = vnop
        $region61: #{gpt_forward.10} parent=15 // pred_fallthru
          _
        // Predicated region
        $region99: #{gpt_forward.10} parent=15 // pred_check
          %p286 = pneg %p114
        $region100: #{gpt_forward.10} parent=15 // pred_check_branch
          %288 = sbr.rel (%p286) target = $region102
        $region101: #{gpt_forward.10} parent=15 // pred_region
          %s289 = sand.u32 %s104, 1
          %s290 = sand.u32 %s104, 1
          %s291 = smul.addr %s290, 8
          %s292 = scalar_lea.vmem [#allocation7], %s291
          %p293 = scmp.lt.s32.totalorder %s18, %s17
          %s294 = scalar_select %p293, %s18, %s17
          %s295 = smul.u32 2, %s294
          %s296 = smul.addr %s295, 3
          %s297 = sadd.s32 2, %s296
          %s298 = smul.addr %s16, 6
          %s299 = sadd.s32 %s297, %s298
          %s300 = smul.addr %s299, 4
          %s301 = scalar_lea.vmem %s2, %s300
          // Predicated region
          $region103: #{gpt_forward.10} parent=101 // pred_check
            _
          $region104: #{gpt_forward.10} parent=101 // pred_check_branch
            %303 = sbr.rel (0) target = $region106
          $region105: #{gpt_forward.10} parent=101 // pred_region
            // Predicated region
            $region107: #{gpt_forward.10} parent=105 // pred_check
              _
            $region108: #{gpt_forward.10} parent=105 // pred_check_branch
              %305 = sbr.rel target = $region110
            $region109: #{gpt_forward.10} parent=105 // pred_region
              // Predicated region
              $region122: #{gpt_forward.10} parent=109 // pred_check
                _
              $region123: #{gpt_forward.10} parent=109 // pred_check_branch
                %323 = sbr.rel (0) target = $region125
              $region124: #{gpt_forward.10} parent=109 // pred_region
                loop: start=0, step=1, limit=1
                $region126: #{gpt_forward.10} parent=124 // loop_pre_header
                  _
                $region127: #{gpt_forward.10} parent=124 // loop_header
                  %s325 = sphi 0, %s329
                  %p326 = scmp.ge.s32.totalorder %s325, 1
                  %s330 = sphi %s301, %s301
                  %s331 = sphi %s292, %s292
                $region128: #{gpt_forward.10} parent=124 // loop_header_branch
                  %328 = sbr.rel (%p326) target = $region132
                $region129: #{gpt_forward.10} parent=124 // loop_body
                  _
                $region130: #{gpt_forward.10} parent=124 // loop_footer
                  %s329 = sadd.s32 1, %s325
                $region131: #{gpt_forward.10} parent=124 // loop_footer_branch
                  %324 = sbr.rel target = $region127
                $region132: #{gpt_forward.10} parent=124 // loop_exit
                  _
                %s333 = ssub.s32 16, 1
                loop: start=0, step=1, limit=1
                $region133: #{gpt_forward.10} parent=124 // loop_pre_header
                  _
                $region134: #{gpt_forward.10} parent=124 // loop_header
                  %s335 = sphi 0, %s339
                  %p336 = scmp.ge.s32.totalorder %s335, 1
                  %s340 = sphi %s301, %s301
                  %s341 = sphi %s292, %s292
                $region135: #{gpt_forward.10} parent=124 // loop_header_branch
                  %338 = sbr.rel (%p336) target = $region139
                $region136: #{gpt_forward.10} parent=124 // loop_body
                  %v342 = vld [vmem:[%s340] sm:%s333]
                  %343 = vst [vmem:[%s341] sm:%s333] %v342
                  %v344 = vld [vmem:[%s340 + $0xc] sm:%s333]
                  %345 = vst [vmem:[%s341 + $0x4] sm:%s333] %v344
                $region137: #{gpt_forward.10} parent=124 // loop_footer
                  %s339 = sadd.s32 1, %s335
                $region138: #{gpt_forward.10} parent=124 // loop_footer_branch
                  %334 = sbr.rel target = $region134
                $region139: #{gpt_forward.10} parent=124 // loop_exit
                  _
              $region125: #{gpt_forward.10} parent=109 // pred_fallthru
                _
            $region110: #{gpt_forward.10} parent=105 // pred_fallthru
              _
            // Predicated region
            $region111: #{gpt_forward.10} parent=105 // pred_check
              _
            $region112: #{gpt_forward.10} parent=105 // pred_check_branch
              %307 = sbr.rel (0) target = $region114
            $region113: #{gpt_forward.10} parent=105 // pred_region
              %s309 = ssub.s32 16, 1
              loop: start=0, step=1, limit=1
              $region115: #{gpt_forward.10} parent=113 // loop_pre_header
                _
              $region116: #{gpt_forward.10} parent=113 // loop_header
                %s311 = sphi 0, %s315
                %p312 = scmp.ge.s32.totalorder %s311, 1
                %s316 = sphi %s301, %s301
                %s317 = sphi %s292, %s292
              $region117: #{gpt_forward.10} parent=113 // loop_header_branch
                %314 = sbr.rel (%p312) target = $region121
              $region118: #{gpt_forward.10} parent=113 // loop_body
                %v318 = vld [vmem:[%s316] sm:%s309]
                %319 = vst [vmem:[%s317] sm:%s309] %v318
                %v320 = vld [vmem:[%s316 + $0xc] sm:%s309]
                %321 = vst [vmem:[%s317 + $0x4] sm:%s309] %v320
              $region119: #{gpt_forward.10} parent=113 // loop_footer
                %s315 = sadd.s32 1, %s311
              $region120: #{gpt_forward.10} parent=113 // loop_footer_branch
                %310 = sbr.rel target = $region116
              $region121: #{gpt_forward.10} parent=113 // loop_exit
                _
            $region114: #{gpt_forward.10} parent=105 // pred_fallthru
              _
          $region106: #{gpt_forward.10} parent=101 // pred_fallthru
            _
          %346 = vnop
        $region102: #{gpt_forward.10} parent=15 // pred_fallthru
          _
      $region16: #{gpt_forward.10} parent=5 // pred_fallthru
        _
      %p347 = scmp.le.s32.totalorder 1, %s9
      %p348 = scmp.lt.s32.totalorder %s9, 3
      %p349 = pnand %p347, %p348
      %p350 = pneg %p349
      // Predicated region
      $region140: #{gpt_forward.10} parent=5 // pred_check
        _
      $region141: #{gpt_forward.10} parent=5 // pred_check_branch
        %352 = sbr.rel (%p349) target = $region143
      $region142: #{gpt_forward.10} parent=5 // pred_region
        %s353 = ssub.s32 %s9, 1
        %s354 = sand.u32 %s43, 1
        %s355 = sand.u32 %s43, 1
        %s356 = smul.addr %s355, 8
        %s357 = scalar_lea.vmem [#allocation5], %s356
        // Predicated region
        $region144: #{gpt_forward.10} parent=142 // pred_check
          %p358 = pneg %p56
        $region145: #{gpt_forward.10} parent=142 // pred_check_branch
          %360 = sbr.rel (%p358) target = $region147
        $region146: #{gpt_forward.10} parent=142 // pred_region
          _
        $region147: #{gpt_forward.10} parent=142 // pred_fallthru
          _
        %s361 = sand.u32 %s75, 1
        %s362 = sand.u32 %s75, 1
        %s363 = smul.addr %s362, 8
        %s364 = scalar_lea.vmem [#allocation6], %s363
        // Predicated region
        $region148: #{gpt_forward.10} parent=142 // pred_check
          %p365 = pneg %p88
        $region149: #{gpt_forward.10} parent=142 // pred_check_branch
          %367 = sbr.rel (%p365) target = $region151
        $region150: #{gpt_forward.10} parent=142 // pred_region
          _
        $region151: #{gpt_forward.10} parent=142 // pred_fallthru
          _
        %s368 = sand.u32 %s107, 1
        %s369 = sand.u32 %s107, 1
        %s370 = smul.addr %s369, 8
        %s371 = scalar_lea.vmem [#allocation7], %s370
        // Predicated region
        $region152: #{gpt_forward.10} parent=142 // pred_check
          %p372 = pneg %p120
        $region153: #{gpt_forward.10} parent=142 // pred_check_branch
          %374 = sbr.rel (%p372) target = $region155
        $region154: #{gpt_forward.10} parent=142 // pred_region
          _
        $region155: #{gpt_forward.10} parent=142 // pred_fallthru
          _
        %s375 = sand.u32 %s43, 1
        %s376 = sand.u32 %s43, 1
        %s377 = smul.addr %s376, 8
        %s378 = scalar_lea.vmem [#allocation5], %s377
        %p379 = pneg %p56
        %p380 = pneg %p53
        %s381 = sand.u32 %s75, 1
        %s382 = sand.u32 %s75, 1
        %s383 = smul.addr %s382, 8
        %s384 = scalar_lea.vmem [#allocation6], %s383
        %p385 = pneg %p88
        %p386 = pneg %p85
        %s387 = sand.u32 %s107, 1
        %s388 = sand.u32 %s107, 1
        %s389 = smul.addr %s388, 8
        %s390 = scalar_lea.vmem [#allocation7], %s389
        %p391 = pneg %p120
        %p392 = pneg %p117
        %p393 = pneg %p148
        %p394 = pneg %p145
        %s395 = smul.u32 2, %s20
        %p396 = scmp.lt.s32.totalorder %s19, 1
        %s397 = scalar_select %p396, %s19, 1
        %p398 = scmp.lt.s32.totalorder %s395, 1
        %s399 = scalar_select %p398, %s395, 1
        %s400 = smul.addr %s397, 2
        %s401 = sadd.s32 %s399, %s400
        %s402 = smul.addr %s401, 4
        %s403 = scalar_lea.vmem %s3, %s402
        %s404 = smul.u32 2, %s20
        %p405 = scmp.lt.s32.totalorder %s21, %s20
        %s406 = scalar_select %p405, %s21, %s20
        %s407 = smul.u32 2, %s406
        %p408 = scmp.lt.s32.totalorder %s21, %s20
        %s409 = scalar_select %p408, %s21, %s20
        %s410 = smul.u32 2, %s409
        %s411 = smul.u32 2, %s20
        %p412 = scmp.lt.s32.totalorder %s19, 1
        %s413 = scalar_select %p412, %s19, 1
        %p414 = scmp.lt.s32.totalorder %s411, 1
        %s415 = scalar_select %p414, %s411, 1
        %s416 = smul.addr %s413, 2
        %s417 = sadd.s32 %s415, %s416
        %s418 = smul.addr %s417, 4
        %s419 = scalar_lea.vmem %s3, %s418
        %s420 = smul.u32 2, %s20
        %p422 = scmp.eq.s32.totalorder %s21, 0
        // Predicated region
        $region156: #{gpt_forward.10} parent=142 // pred_check
          %p423 = pneg %p422
        $region157: #{gpt_forward.10} parent=142 // pred_check_branch
          %425 = sbr.rel (%p423) target = $region159
        $region158: #{gpt_forward.10} parent=142 // pred_region
          %vm426 = vcmask 7168
          %427 = vst.msk [vmem:[#allocation2] sm:$0xff] %vm426, -inf
          %428 = vst.msk [vmem:[#allocation2 + $0x8] sm:$0xff] %vm426, -inf
          %429 = vst.msk [vmem:[#allocation2 + $0x10] sm:$0xff] %vm426, -inf
          %430 = vst.msk [vmem:[#allocation2 + $0x18] sm:$0xff] %vm426, -inf
          %431 = vst.msk [vmem:[#allocation2 + $0x20] sm:$0xff] %vm426, -inf
          %432 = vst.msk [vmem:[#allocation2 + $0x28] sm:$0xff] %vm426, -inf
          %433 = vst.msk [vmem:[#allocation2 + $0x30] sm:$0xff] %vm426, -inf
          %434 = vst.msk [vmem:[#allocation2 + $0x38] sm:$0xff] %vm426, -inf
          %435 = vst.msk [vmem:[#allocation3] sm:$0xff] %vm426, 0.0
          %436 = vst.msk [vmem:[#allocation3 + $0x8] sm:$0xff] %vm426, 0.0
          %437 = vst.msk [vmem:[#allocation3 + $0x10] sm:$0xff] %vm426, 0.0
          %438 = vst.msk [vmem:[#allocation3 + $0x18] sm:$0xff] %vm426, 0.0
          %439 = vst.msk [vmem:[#allocation3 + $0x20] sm:$0xff] %vm426, 0.0
          %440 = vst.msk [vmem:[#allocation3 + $0x28] sm:$0xff] %vm426, 0.0
          %441 = vst.msk [vmem:[#allocation3 + $0x30] sm:$0xff] %vm426, 0.0
          %442 = vst.msk [vmem:[#allocation3 + $0x38] sm:$0xff] %vm426, 0.0
          %vm443 = vcmask 64512
          %444 = vst.msk [vmem:[#allocation4] sm:$0xff] %vm443, 0.0
          %445 = vst.msk [vmem:[#allocation4 + $0x8] sm:$0xff] %vm443, 0.0
          %446 = vst.msk [vmem:[#allocation4 + $0x10] sm:$0xff] %vm443, 0.0
          %447 = vst.msk [vmem:[#allocation4 + $0x18] sm:$0xff] %vm443, 0.0
          %448 = vst.msk [vmem:[#allocation4 + $0x20] sm:$0xff] %vm443, 0.0
          %449 = vst.msk [vmem:[#allocation4 + $0x28] sm:$0xff] %vm443, 0.0
          %450 = vst.msk [vmem:[#allocation4 + $0x30] sm:$0xff] %vm443, 0.0
          %451 = vst.msk [vmem:[#allocation4 + $0x38] sm:$0xff] %vm443, 0.0
        $region159: #{gpt_forward.10} parent=142 // pred_fallthru
          _
        %p452 = scmp.lt.s32.totalorder %s21, %s20
        // Predicated region
        $region160: #{gpt_forward.10} parent=142 // pred_check
          %p453 = pneg %p452
        $region161: #{gpt_forward.10} parent=142 // pred_check_branch
          %455 = sbr.rel (%p453) target = $region163
        $region162: #{gpt_forward.10} parent=142 // pred_region
          %v456 = vld [vmem:[%s357] sm:$0xf]
          %v457 = vld [vmem:[%s357 + $0x4] sm:$0xf]
          %v458 = vld [vmem:[%s364] sm:$0xf]
          %v459 = vld [vmem:[%s364 + $0x4] sm:$0xf]
          %v460 = vld [vmem:[%s371] sm:$0xf]
          %v461 = vld [vmem:[%s371 + $0x4] sm:$0xf]
          %v464 = vunpack.c.l.b16 %v456
          %v465 = vunpack.c.l.b16 %v457
          %v466 = vpack.c.b16 %v465, %v464
          %v469 = vunpack.c.l.b16 %v458
          %v470 = vunpack.c.l.b16 %v459
          %v471 = vpack.c.b16 %v470, %v469
          %vm472 = vcmask 64512
          %v474 = vsel %vm472, %v466, 0
          %v477 = vsel %vm472, %v471, 0
          %479 = vmatprep.subr.bf16.mxu0 0
          %480 = vmatpush1.bf16.xpose.msra.mxu0 0
          %481 = vmatprep.subr.bf16.mxu0 0
          %482 = vmatpush1.bf16.xpose.msra.mxu0 0
          %483 = vmatprep.subr.bf16.mxu0 0
          %484 = vmatpush1.bf16.xpose.msra.mxu0 0
          %485 = vmatprep.subr.bf16.mxu0 0
          %486 = vmatpush1.bf16.xpose.msra.mxu0 0
          %487 = vmatprep.subr.bf16.mxu0 0
          %488 = vmatpush1.bf16.xpose.msra.mxu0 0
          %489 = vmatprep.subr.bf16.mxu0 0
          %490 = vmatpush1.bf16.xpose.msra.mxu0 0
          %491 = vmatprep.subr.bf16.mxu0 0
          %492 = vmatpush1.bf16.xpose.msra.mxu0 0
          %493 = vmatprep.subr.bf16.mxu0 0
          %494 = vmatpush1.bf16.xpose.msra.mxu0 %v477
          %495 = vmatprep.subr.bf16.mxu0 0
          %496 = vmatpush2.bf16.xpose.msra.mxu0 0
          %497 = vmatprep.subr.bf16.mxu0 0
          %498 = vmatpush2.bf16.xpose.msra.mxu0 0
          %499 = vmatprep.subr.bf16.mxu0 0
          %500 = vmatpush2.bf16.xpose.msra.mxu0 0
          %501 = vmatprep.subr.bf16.mxu0 0
          %502 = vmatpush2.bf16.xpose.msra.mxu0 0
          %503 = vmatprep.subr.bf16.mxu0 0
          %504 = vmatpush2.bf16.xpose.msra.mxu0 0
          %505 = vmatprep.subr.bf16.mxu0 0
          %506 = vmatpush2.bf16.xpose.msra.mxu0 0
          %507 = vmatprep.subr.bf16.mxu0 0
          %508 = vmatpush2.bf16.xpose.msra.mxu0 0
          %509 = vmatprep.subr.bf16.mxu0 0
          %510 = vmatpush2.bf16.xpose.msra.mxu0 0
          %511 = vmatprep.mubr.bf16.mxu0 0
          %512 = vmatmul.mubr.bf16.gmra.mxu0 %v474
          %v513 = vpop.f32.mrf.mxu0
          %v514 = vadd.f32 0.0, %v513
          %v515 = vpop.f32.mrf.mxu0
          %v516 = vpop.f32.mrf.mxu0
          %v517 = vadd.f32 0.0, %v516
          %v518 = vpop.f32.mrf.mxu0
          %519 = vdwg.mxu0
          %v520 = vmul.f32 %v514, 0.35355338
          %v521 = vmul.f32 %v517, 0.35355338
          %v522 = vld [vmem:[#allocation2] sm:$0xff]
          %v523 = vld [vmem:[#allocation2 + $0x8] sm:$0xff]
          %vm524 = vcmask 130048
          %v525 = vsel %vm524, %v520, -inf
          %526 = vmax.xlane.f32.xlu0 %v525
          %v527 = vpop.xlane.xlu0 %526
          %v528 = vsel %vm524, %v521, -inf
          %529 = vmax.xlane.f32.xlu0 %v528
          %v530 = vpop.xlane.xlu0 %529
          %v531 = vmax.f32 %v522, %v527
          %v532 = vmax.f32 %v523, %v530
          %v533 = vsub.f32 %v522, %v531
          %v534 = vsub.f32 %v523, %v532
          %v535 = vmul.f32 %v533, 1.442695
          %v536 = vpow.pop %v535
          %v537 = vmul.f32 %v534, 1.442695
          %v538 = vpow.pop %v537
          %540 = vset.pattern.permute.xlu0 0
          %541 = vperm.xlu0 %540, %v531
          %v542 = vpop.permute.xlu0 %541
          %545 = vset.pattern.permute.xlu0 0
          %546 = vperm.xlu0 %545, %v532
          %v547 = vpop.permute.xlu0 %546
          %v549 = vsub.f32 %v520, %v542
          %v550 = vsub.f32 %v521, %v547
          %v551 = vmul.f32 %v549, 1.442695
          %v552 = vpow.pop %v551
          %v553 = vmul.f32 %v550, 1.442695
          %v554 = vpow.pop %v553
          %v555 = vld [vmem:[#allocation3] sm:$0xff]
          %v556 = vld [vmem:[#allocation3 + $0x8] sm:$0xff]
          %v557 = vmul.f32 %v536, %v555
          %v558 = vmul.f32 %v538, %v556
          %v559 = vsel %vm524, %v552, 0.0
          %560 = vadd.xlane.f32.xlu0 %v559
          %v561 = vpop.xlane.xlu0 %560
          %v562 = vsel %vm524, %v554, 0.0
          %563 = vadd.xlane.f32.xlu0 %v562
          %v564 = vpop.xlane.xlu0 %563
          %v565 = vadd.f32 %v557, %v561
          %v566 = vadd.f32 %v558, %v564
          %vm567 = vcmask 7168
          %568 = vst.msk [vmem:[#allocation3] sm:$0xff] %vm567, %v565
          %569 = vst.msk [vmem:[#allocation3 + $0x8] sm:$0xff] %vm567, %v566
          %v570 = vld [vmem:[#allocation4] sm:$0xff]
          %v571 = vld [vmem:[#allocation4 + $0x8] sm:$0xff]
          %573 = vset.pattern.permute.xlu0 0
          %574 = vperm.xlu0 %573, %v536
          %v575 = vpop.permute.xlu0 %574
          %578 = vset.pattern.permute.xlu0 0
          %579 = vperm.xlu0 %578, %v538
          %v580 = vpop.permute.xlu0 %579
          %v582 = vmul.f32 %v575, %v570
          %v583 = vmul.f32 %v580, %v571
          %v584 = vpack.c.bf16 %v554, %v552
          %v587 = vunpack.c.l.b16 %v460
          %v588 = vunpack.c.l.b16 %v461
          %v589 = vpack.c.b16 %v588, %v587
          %v592 = vsel %vm524, %v584, 0
          %594 = vmatprep.subr.bf16.mxu0 0
          %595 = vmatpush1.bf16.msra.mxu0 0
          %596 = vmatprep.subr.bf16.mxu0 0
          %597 = vmatpush1.bf16.msra.mxu0 0
          %598 = vmatprep.subr.bf16.mxu0 0
          %599 = vmatpush1.bf16.msra.mxu0 0
          %600 = vmatprep.subr.bf16.mxu0 0
          %601 = vmatpush1.bf16.msra.mxu0 0
          %602 = vmatprep.subr.bf16.mxu0 0
          %603 = vmatpush1.bf16.msra.mxu0 0
          %604 = vmatprep.subr.bf16.mxu0 0
          %605 = vmatpush1.bf16.msra.mxu0 0
          %606 = vmatprep.subr.bf16.mxu0 0
          %607 = vmatpush1.bf16.msra.mxu0 0
          %608 = vmatprep.subr.bf16.mxu0 0
          %609 = vmatpush1.bf16.msra.mxu0 %v589
          %610 = vmatprep.subr.bf16.mxu0 0
          %611 = vmatpush2.bf16.msra.mxu0 0
          %612 = vmatprep.subr.bf16.mxu0 0
          %613 = vmatpush2.bf16.msra.mxu0 0
          %614 = vmatprep.subr.bf16.mxu0 0
          %615 = vmatpush2.bf16.msra.mxu0 0
          %616 = vmatprep.subr.bf16.mxu0 0
          %617 = vmatpush2.bf16.msra.mxu0 0
          %618 = vmatprep.subr.bf16.mxu0 0
          %619 = vmatpush2.bf16.msra.mxu0 0
          %620 = vmatprep.subr.bf16.mxu0 0
          %621 = vmatpush2.bf16.msra.mxu0 0
          %622 = vmatprep.subr.bf16.mxu0 0
          %623 = vmatpush2.bf16.msra.mxu0 0
          %624 = vmatprep.subr.bf16.mxu0 0
          %625 = vmatpush2.bf16.msra.mxu0 0
          %626 = vmatprep.mubr.bf16.mxu0 0
          %627 = vmatmul.mubr.bf16.gmra.mxu0 %v592
          %v628 = vpop.f32.mrf.mxu0
          %v629 = vadd.f32 0.0, %v628
          %v630 = vpop.f32.mrf.mxu0
          %v631 = vpop.f32.mrf.mxu0
          %v632 = vadd.f32 0.0, %v631
          %v633 = vpop.f32.mrf.mxu0
          %634 = vdwg.mxu0
          %v635 = vadd.f32 %v582, %v629
          %v636 = vadd.f32 %v583, %v632
          %637 = vst.msk [vmem:[#allocation4] sm:$0xff] %vm472, %v635
          %638 = vst.msk [vmem:[#allocation4 + $0x8] sm:$0xff] %vm472, %v636
          %639 = vst.msk [vmem:[#allocation2] sm:$0xff] %vm567, %v531
          %640 = vst.msk [vmem:[#allocation2 + $0x8] sm:$0xff] %vm567, %v532
          %v641 = vld [vmem:[%s357] sm:$0xf]
          %v642 = vld [vmem:[%s357 + $0x4] sm:$0xf]
          %v643 = vld [vmem:[%s364] sm:$0xf]
          %v644 = vld [vmem:[%s364 + $0x4] sm:$0xf]
          %v645 = vld [vmem:[%s371] sm:$0xf]
          %v646 = vld [vmem:[%s371 + $0x4] sm:$0xf]
          %v649 = vunpack.c.l.b16 %v641
          %v650 = vunpack.c.l.b16 %v642
          %v651 = vpack.c.b16 %v650, %v649
          %652 = vrot.lane.b32.xlu0 %v651, 120
          %v653 = vpop.permute.xlu0 %652
          %v656 = vunpack.c.l.b16 %v643
          %v657 = vunpack.c.l.b16 %v644
          %v658 = vpack.c.b16 %v657, %v656
          %659 = vrot.lane.b32.xlu0 %v658, 120
          %v660 = vpop.permute.xlu0 %659
          %v662 = vsel %vm472, %v653, 0
          %v665 = vsel %vm472, %v660, 0
          %667 = vmatprep.subr.bf16.mxu0 0
          %668 = vmatpush1.bf16.xpose.msra.mxu0 0
          %669 = vmatprep.subr.bf16.mxu0 0
          %670 = vmatpush1.bf16.xpose.msra.mxu0 0
          %671 = vmatprep.subr.bf16.mxu0 0
          %672 = vmatpush1.bf16.xpose.msra.mxu0 0
          %673 = vmatprep.subr.bf16.mxu0 0
          %674 = vmatpush1.bf16.xpose.msra.mxu0 0
          %675 = vmatprep.subr.bf16.mxu0 0
          %676 = vmatpush1.bf16.xpose.msra.mxu0 0
          %677 = vmatprep.subr.bf16.mxu0 0
          %678 = vmatpush1.bf16.xpose.msra.mxu0 0
          %679 = vmatprep.subr.bf16.mxu0 0
          %680 = vmatpush1.bf16.xpose.msra.mxu0 0
          %681 = vmatprep.subr.bf16.mxu0 0
          %682 = vmatpush1.bf16.xpose.msra.mxu0 %v665
          %683 = vmatprep.subr.bf16.mxu0 0
          %684 = vmatpush2.bf16.xpose.msra.mxu0 0
          %685 = vmatprep.subr.bf16.mxu0 0
          %686 = vmatpush2.bf16.xpose.msra.mxu0 0
          %687 = vmatprep.subr.bf16.mxu0 0
          %688 = vmatpush2.bf16.xpose.msra.mxu0 0
          %689 = vmatprep.subr.bf16.mxu0 0
          %690 = vmatpush2.bf16.xpose.msra.mxu0 0
          %691 = vmatprep.subr.bf16.mxu0 0
          %692 = vmatpush2.bf16.xpose.msra.mxu0 0
          %693 = vmatprep.subr.bf16.mxu0 0
          %694 = vmatpush2.bf16.xpose.msra.mxu0 0
          %695 = vmatprep.subr.bf16.mxu0 0
          %696 = vmatpush2.bf16.xpose.msra.mxu0 0
          %697 = vmatprep.subr.bf16.mxu0 0
          %698 = vmatpush2.bf16.xpose.msra.mxu0 0
          %699 = vmatprep.mubr.bf16.mxu0 0
          %700 = vmatmul.mubr.bf16.gmra.mxu0 %v662
          %v701 = vpop.f32.mrf.mxu0
          %v702 = vadd.f32 0.0, %v701
          %v703 = vpop.f32.mrf.mxu0
          %v704 = vpop.f32.mrf.mxu0
          %v705 = vadd.f32 0.0, %v704
          %v706 = vpop.f32.mrf.mxu0
          %707 = vdwg.mxu0
          %v708 = vmul.f32 %v702, 0.35355338
          %v709 = vmul.f32 %v705, 0.35355338
          %s710 = scalar_lea.vmem [#allocation2], 16
          %v711 = vld [vmem:[%s710] sm:$0xff]
          %v712 = vld [vmem:[%s710 + $0x8] sm:$0xff]
          %v713 = vsel %vm524, %v708, -inf
          %714 = vmax.xlane.f32.xlu0 %v713
          %v715 = vpop.xlane.xlu0 %714
          %v716 = vsel %vm524, %v709, -inf
          %717 = vmax.xlane.f32.xlu0 %v716
          %v718 = vpop.xlane.xlu0 %717
          %v719 = vmax.f32 %v711, %v715
          %v720 = vmax.f32 %v712, %v718
          %v721 = vsub.f32 %v711, %v719
          %v722 = vsub.f32 %v712, %v720
          %v723 = vmul.f32 %v721, 1.442695
          %v724 = vpow.pop %v723
          %v725 = vmul.f32 %v722, 1.442695
          %v726 = vpow.pop %v725
          %728 = vset.pattern.permute.xlu0 0
          %729 = vperm.xlu0 %728, %v719
          %v730 = vpop.permute.xlu0 %729
          %733 = vset.pattern.permute.xlu0 0
          %734 = vperm.xlu0 %733, %v720
          %v735 = vpop.permute.xlu0 %734
          %v737 = vsub.f32 %v708, %v730
          %v738 = vsub.f32 %v709, %v735
          %v739 = vmul.f32 %v737, 1.442695
          %v740 = vpow.pop %v739
          %v741 = vmul.f32 %v738, 1.442695
          %v742 = vpow.pop %v741
          %s743 = scalar_lea.vmem [#allocation3], 16
          %v744 = vld [vmem:[%s743] sm:$0xff]
          %v745 = vld [vmem:[%s743 + $0x8] sm:$0xff]
          %v746 = vmul.f32 %v724, %v744
          %v747 = vmul.f32 %v726, %v745
          %v748 = vsel %vm524, %v740, 0.0
          %749 = vadd.xlane.f32.xlu0 %v748
          %v750 = vpop.xlane.xlu0 %749
          %v751 = vsel %vm524, %v742, 0.0
          %752 = vadd.xlane.f32.xlu0 %v751
          %v753 = vpop.xlane.xlu0 %752
          %v754 = vadd.f32 %v746, %v750
          %v755 = vadd.f32 %v747, %v753
          %756 = vst.msk [vmem:[%s743] sm:$0xff] %vm567, %v754
          %757 = vst.msk [vmem:[%s743 + $0x8] sm:$0xff] %vm567, %v755
          %s758 = scalar_lea.vmem [#allocation4], 16
          %v759 = vld [vmem:[%s758] sm:$0xff]
          %v760 = vld [vmem:[%s758 + $0x8] sm:$0xff]
          %762 = vset.pattern.permute.xlu0 0
          %763 = vperm.xlu0 %762, %v724
          %v764 = vpop.permute.xlu0 %763
          %767 = vset.pattern.permute.xlu0 0
          %768 = vperm.xlu0 %767, %v726
          %v769 = vpop.permute.xlu0 %768
          %v771 = vmul.f32 %v764, %v759
          %v772 = vmul.f32 %v769, %v760
          %v773 = vpack.c.bf16 %v742, %v740
          %v776 = vunpack.c.l.b16 %v645
          %v777 = vunpack.c.l.b16 %v646
          %v778 = vpack.c.b16 %v777, %v776
          %779 = vrot.lane.b32.xlu0 %v778, 120
          %v780 = vpop.permute.xlu0 %779
          %v783 = vsel %vm524, %v773, 0
          %785 = vmatprep.subr.bf16.mxu0 0
          %786 = vmatpush1.bf16.msra.mxu0 0
          %787 = vmatprep.subr.bf16.mxu0 0
          %788 = vmatpush1.bf16.msra.mxu0 0
          %789 = vmatprep.subr.bf16.mxu0 0
          %790 = vmatpush1.bf16.msra.mxu0 0
          %791 = vmatprep.subr.bf16.mxu0 0
          %792 = vmatpush1.bf16.msra.mxu0 0
          %793 = vmatprep.subr.bf16.mxu0 0
          %794 = vmatpush1.bf16.msra.mxu0 0
          %795 = vmatprep.subr.bf16.mxu0 0
          %796 = vmatpush1.bf16.msra.mxu0 0
          %797 = vmatprep.subr.bf16.mxu0 0
          %798 = vmatpush1.bf16.msra.mxu0 0
          %799 = vmatprep.subr.bf16.mxu0 0
          %800 = vmatpush1.bf16.msra.mxu0 %v780
          %801 = vmatprep.subr.bf16.mxu0 0
          %802 = vmatpush2.bf16.msra.mxu0 0
          %803 = vmatprep.subr.bf16.mxu0 0
          %804 = vmatpush2.bf16.msra.mxu0 0
          %805 = vmatprep.subr.bf16.mxu0 0
          %806 = vmatpush2.bf16.msra.mxu0 0
          %807 = vmatprep.subr.bf16.mxu0 0
          %808 = vmatpush2.bf16.msra.mxu0 0
          %809 = vmatprep.subr.bf16.mxu0 0
          %810 = vmatpush2.bf16.msra.mxu0 0
          %811 = vmatprep.subr.bf16.mxu0 0
          %812 = vmatpush2.bf16.msra.mxu0 0
          %813 = vmatprep.subr.bf16.mxu0 0
          %814 = vmatpush2.bf16.msra.mxu0 0
          %815 = vmatprep.subr.bf16.mxu0 0
          %816 = vmatpush2.bf16.msra.mxu0 0
          %817 = vmatprep.mubr.bf16.mxu0 0
          %818 = vmatmul.mubr.bf16.gmra.mxu0 %v783
          %v819 = vpop.f32.mrf.mxu0
          %v820 = vadd.f32 0.0, %v819
          %v821 = vpop.f32.mrf.mxu0
          %v822 = vpop.f32.mrf.mxu0
          %v823 = vadd.f32 0.0, %v822
          %v824 = vpop.f32.mrf.mxu0
          %825 = vdwg.mxu0
          %v826 = vadd.f32 %v771, %v820
          %v827 = vadd.f32 %v772, %v823
          %828 = vst.msk [vmem:[%s758] sm:$0xff] %vm472, %v826
          %829 = vst.msk [vmem:[%s758 + $0x8] sm:$0xff] %vm472, %v827
          %830 = vst.msk [vmem:[%s710] sm:$0xff] %vm567, %v719
          %831 = vst.msk [vmem:[%s710 + $0x8] sm:$0xff] %vm567, %v720
          %v832 = vld [vmem:[%s357] sm:$0xf]
          %v833 = vld [vmem:[%s357 + $0x4] sm:$0xf]
          %v834 = vld [vmem:[%s364] sm:$0xf]
          %v835 = vld [vmem:[%s364 + $0x4] sm:$0xf]
          %v836 = vld [vmem:[%s371] sm:$0xf]
          %v837 = vld [vmem:[%s371 + $0x4] sm:$0xf]
          %v840 = vunpack.c.l.b16 %v832
          %v841 = vunpack.c.l.b16 %v833
          %v842 = vpack.c.b16 %v841, %v840
          %843 = vrot.lane.b32.xlu0 %v842, 112
          %v844 = vpop.permute.xlu0 %843
          %v847 = vunpack.c.l.b16 %v834
          %v848 = vunpack.c.l.b16 %v835
          %v849 = vpack.c.b16 %v848, %v847
          %850 = vrot.lane.b32.xlu0 %v849, 112
          %v851 = vpop.permute.xlu0 %850
          %v853 = vsel %vm472, %v844, 0
          %v856 = vsel %vm472, %v851, 0
          %858 = vmatprep.subr.bf16.mxu0 0
          %859 = vmatpush1.bf16.xpose.msra.mxu0 0
          %860 = vmatprep.subr.bf16.mxu0 0
          %861 = vmatpush1.bf16.xpose.msra.mxu0 0
          %862 = vmatprep.subr.bf16.mxu0 0
          %863 = vmatpush1.bf16.xpose.msra.mxu0 0
          %864 = vmatprep.subr.bf16.mxu0 0
          %865 = vmatpush1.bf16.xpose.msra.mxu0 0
          %866 = vmatprep.subr.bf16.mxu0 0
          %867 = vmatpush1.bf16.xpose.msra.mxu0 0
          %868 = vmatprep.subr.bf16.mxu0 0
          %869 = vmatpush1.bf16.xpose.msra.mxu0 0
          %870 = vmatprep.subr.bf16.mxu0 0
          %871 = vmatpush1.bf16.xpose.msra.mxu0 0
          %872 = vmatprep.subr.bf16.mxu0 0
          %873 = vmatpush1.bf16.xpose.msra.mxu0 %v856
          %874 = vmatprep.subr.bf16.mxu0 0
          %875 = vmatpush2.bf16.xpose.msra.mxu0 0
          %876 = vmatprep.subr.bf16.mxu0 0
          %877 = vmatpush2.bf16.xpose.msra.mxu0 0
          %878 = vmatprep.subr.bf16.mxu0 0
          %879 = vmatpush2.bf16.xpose.msra.mxu0 0
          %880 = vmatprep.subr.bf16.mxu0 0
          %881 = vmatpush2.bf16.xpose.msra.mxu0 0
          %882 = vmatprep.subr.bf16.mxu0 0
          %883 = vmatpush2.bf16.xpose.msra.mxu0 0
          %884 = vmatprep.subr.bf16.mxu0 0
          %885 = vmatpush2.bf16.xpose.msra.mxu0 0
          %886 = vmatprep.subr.bf16.mxu0 0
          %887 = vmatpush2.bf16.xpose.msra.mxu0 0
          %888 = vmatprep.subr.bf16.mxu0 0
          %889 = vmatpush2.bf16.xpose.msra.mxu0 0
          %890 = vmatprep.mubr.bf16.mxu0 0
          %891 = vmatmul.mubr.bf16.gmra.mxu0 %v853
          %v892 = vpop.f32.mrf.mxu0
          %v893 = vadd.f32 0.0, %v892
          %v894 = vpop.f32.mrf.mxu0
          %v895 = vpop.f32.mrf.mxu0
          %v896 = vadd.f32 0.0, %v895
          %v897 = vpop.f32.mrf.mxu0
          %898 = vdwg.mxu0
          %v899 = vmul.f32 %v893, 0.35355338
          %v900 = vmul.f32 %v896, 0.35355338
          %s901 = scalar_lea.vmem [#allocation2], 32
          %v902 = vld [vmem:[%s901] sm:$0xff]
          %v903 = vld [vmem:[%s901 + $0x8] sm:$0xff]
          %v904 = vsel %vm524, %v899, -inf
          %905 = vmax.xlane.f32.xlu0 %v904
          %v906 = vpop.xlane.xlu0 %905
          %v907 = vsel %vm524, %v900, -inf
          %908 = vmax.xlane.f32.xlu0 %v907
          %v909 = vpop.xlane.xlu0 %908
          %v910 = vmax.f32 %v902, %v906
          %v911 = vmax.f32 %v903, %v909
          %v912 = vsub.f32 %v902, %v910
          %v913 = vsub.f32 %v903, %v911
          %v914 = vmul.f32 %v912, 1.442695
          %v915 = vpow.pop %v914
          %v916 = vmul.f32 %v913, 1.442695
          %v917 = vpow.pop %v916
          %919 = vset.pattern.permute.xlu0 0
          %920 = vperm.xlu0 %919, %v910
          %v921 = vpop.permute.xlu0 %920
          %924 = vset.pattern.permute.xlu0 0
          %925 = vperm.xlu0 %924, %v911
          %v926 = vpop.permute.xlu0 %925
          %v928 = vsub.f32 %v899, %v921
          %v929 = vsub.f32 %v900, %v926
          %v930 = vmul.f32 %v928, 1.442695
          %v931 = vpow.pop %v930
          %v932 = vmul.f32 %v929, 1.442695
          %v933 = vpow.pop %v932
          %s934 = scalar_lea.vmem [#allocation3], 32
          %v935 = vld [vmem:[%s934] sm:$0xff]
          %v936 = vld [vmem:[%s934 + $0x8] sm:$0xff]
          %v937 = vmul.f32 %v915, %v935
          %v938 = vmul.f32 %v917, %v936
          %v939 = vsel %vm524, %v931, 0.0
          %940 = vadd.xlane.f32.xlu0 %v939
          %v941 = vpop.xlane.xlu0 %940
          %v942 = vsel %vm524, %v933, 0.0
          %943 = vadd.xlane.f32.xlu0 %v942
          %v944 = vpop.xlane.xlu0 %943
          %v945 = vadd.f32 %v937, %v941
          %v946 = vadd.f32 %v938, %v944
          %947 = vst.msk [vmem:[%s934] sm:$0xff] %vm567, %v945
          %948 = vst.msk [vmem:[%s934 + $0x8] sm:$0xff] %vm567, %v946
          %s949 = scalar_lea.vmem [#allocation4], 32
          %v950 = vld [vmem:[%s949] sm:$0xff]
          %v951 = vld [vmem:[%s949 + $0x8] sm:$0xff]
          %953 = vset.pattern.permute.xlu0 0
          %954 = vperm.xlu0 %953, %v915
          %v955 = vpop.permute.xlu0 %954
          %958 = vset.pattern.permute.xlu0 0
          %959 = vperm.xlu0 %958, %v917
          %v960 = vpop.permute.xlu0 %959
          %v962 = vmul.f32 %v955, %v950
          %v963 = vmul.f32 %v960, %v951
          %v964 = vpack.c.bf16 %v933, %v931
          %v967 = vunpack.c.l.b16 %v836
          %v968 = vunpack.c.l.b16 %v837
          %v969 = vpack.c.b16 %v968, %v967
          %970 = vrot.lane.b32.xlu0 %v969, 112
          %v971 = vpop.permute.xlu0 %970
          %v974 = vsel %vm524, %v964, 0
          %976 = vmatprep.subr.bf16.mxu0 0
          %977 = vmatpush1.bf16.msra.mxu0 0
          %978 = vmatprep.subr.bf16.mxu0 0
          %979 = vmatpush1.bf16.msra.mxu0 0
          %980 = vmatprep.subr.bf16.mxu0 0
          %981 = vmatpush1.bf16.msra.mxu0 0
          %982 = vmatprep.subr.bf16.mxu0 0
          %983 = vmatpush1.bf16.msra.mxu0 0
          %984 = vmatprep.subr.bf16.mxu0 0
          %985 = vmatpush1.bf16.msra.mxu0 0
          %986 = vmatprep.subr.bf16.mxu0 0
          %987 = vmatpush1.bf16.msra.mxu0 0
          %988 = vmatprep.subr.bf16.mxu0 0
          %989 = vmatpush1.bf16.msra.mxu0 0
          %990 = vmatprep.subr.bf16.mxu0 0
          %991 = vmatpush1.bf16.msra.mxu0 %v971
          %992 = vmatprep.subr.bf16.mxu0 0
          %993 = vmatpush2.bf16.msra.mxu0 0
          %994 = vmatprep.subr.bf16.mxu0 0
          %995 = vmatpush2.bf16.msra.mxu0 0
          %996 = vmatprep.subr.bf16.mxu0 0
          %997 = vmatpush2.bf16.msra.mxu0 0
          %998 = vmatprep.subr.bf16.mxu0 0
          %999 = vmatpush2.bf16.msra.mxu0 0
          %1000 = vmatprep.subr.bf16.mxu0 0
          %1001 = vmatpush2.bf16.msra.mxu0 0
          %1002 = vmatprep.subr.bf16.mxu0 0
          %1003 = vmatpush2.bf16.msra.mxu0 0
          %1004 = vmatprep.subr.bf16.mxu0 0
          %1005 = vmatpush2.bf16.msra.mxu0 0
          %1006 = vmatprep.subr.bf16.mxu0 0
          %1007 = vmatpush2.bf16.msra.mxu0 0
          %1008 = vmatprep.mubr.bf16.mxu0 0
          %1009 = vmatmul.mubr.bf16.gmra.mxu0 %v974
          %v1010 = vpop.f32.mrf.mxu0
          %v1011 = vadd.f32 0.0, %v1010
          %v1012 = vpop.f32.mrf.mxu0
          %v1013 = vpop.f32.mrf.mxu0
          %v1014 = vadd.f32 0.0, %v1013
          %v1015 = vpop.f32.mrf.mxu0
          %1016 = vdwg.mxu0
          %v1017 = vadd.f32 %v962, %v1011
          %v1018 = vadd.f32 %v963, %v1014
          %1019 = vst.msk [vmem:[%s949] sm:$0xff] %vm472, %v1017
          %1020 = vst.msk [vmem:[%s949 + $0x8] sm:$0xff] %vm472, %v1018
          %1021 = vst.msk [vmem:[%s901] sm:$0xff] %vm567, %v910
          %1022 = vst.msk [vmem:[%s901 + $0x8] sm:$0xff] %vm567, %v911
          %v1023 = vld [vmem:[%s357] sm:$0xf]
          %v1024 = vld [vmem:[%s357 + $0x4] sm:$0xf]
          %v1025 = vld [vmem:[%s364] sm:$0xf]
          %v1026 = vld [vmem:[%s364 + $0x4] sm:$0xf]
          %v1027 = vld [vmem:[%s371] sm:$0xf]
          %v1028 = vld [vmem:[%s371 + $0x4] sm:$0xf]
          %v1031 = vunpack.c.l.b16 %v1023
          %v1032 = vunpack.c.l.b16 %v1024
          %v1033 = vpack.c.b16 %v1032, %v1031
          %1034 = vrot.lane.b32.xlu0 %v1033, 104
          %v1035 = vpop.permute.xlu0 %1034
          %v1038 = vunpack.c.l.b16 %v1025
          %v1039 = vunpack.c.l.b16 %v1026
          %v1040 = vpack.c.b16 %v1039, %v1038
          %1041 = vrot.lane.b32.xlu0 %v1040, 104
          %v1042 = vpop.permute.xlu0 %1041
          %v1044 = vsel %vm472, %v1035, 0
          %v1047 = vsel %vm472, %v1042, 0
          %1049 = vmatprep.subr.bf16.mxu0 0
          %1050 = vmatpush1.bf16.xpose.msra.mxu0 0
          %1051 = vmatprep.subr.bf16.mxu0 0
          %1052 = vmatpush1.bf16.xpose.msra.mxu0 0
          %1053 = vmatprep.subr.bf16.mxu0 0
          %1054 = vmatpush1.bf16.xpose.msra.mxu0 0
          %1055 = vmatprep.subr.bf16.mxu0 0
          %1056 = vmatpush1.bf16.xpose.msra.mxu0 0
          %1057 = vmatprep.subr.bf16.mxu0 0
          %1058 = vmatpush1.bf16.xpose.msra.mxu0 0
          %1059 = vmatprep.subr.bf16.mxu0 0
          %1060 = vmatpush1.bf16.xpose.msra.mxu0 0
          %1061 = vmatprep.subr.bf16.mxu0 0
          %1062 = vmatpush1.bf16.xpose.msra.mxu0 0
          %1063 = vmatprep.subr.bf16.mxu0 0
          %1064 = vmatpush1.bf16.xpose.msra.mxu0 %v1047
          %1065 = vmatprep.subr.bf16.mxu0 0
          %1066 = vmatpush2.bf16.xpose.msra.mxu0 0
          %1067 = vmatprep.subr.bf16.mxu0 0
          %1068 = vmatpush2.bf16.xpose.msra.mxu0 0
          %1069 = vmatprep.subr.bf16.mxu0 0
          %1070 = vmatpush2.bf16.xpose.msra.mxu0 0
          %1071 = vmatprep.subr.bf16.mxu0 0
          %1072 = vmatpush2.bf16.xpose.msra.mxu0 0
          %1073 = vmatprep.subr.bf16.mxu0 0
          %1074 = vmatpush2.bf16.xpose.msra.mxu0 0
          %1075 = vmatprep.subr.bf16.mxu0 0
          %1076 = vmatpush2.bf16.xpose.msra.mxu0 0
          %1077 = vmatprep.subr.bf16.mxu0 0
          %1078 = vmatpush2.bf16.xpose.msra.mxu0 0
          %1079 = vmatprep.subr.bf16.mxu0 0
          %1080 = vmatpush2.bf16.xpose.msra.mxu0 0
          %1081 = vmatprep.mubr.bf16.mxu0 0
          %1082 = vmatmul.mubr.bf16.gmra.mxu0 %v1044
          %v1083 = vpop.f32.mrf.mxu0
          %v1084 = vadd.f32 0.0, %v1083
          %v1085 = vpop.f32.mrf.mxu0
          %v1086 = vpop.f32.mrf.mxu0
          %v1087 = vadd.f32 0.0, %v1086
          %v1088 = vpop.f32.mrf.mxu0
          %1089 = vdwg.mxu0
          %v1090 = vmul.f32 %v1084, 0.35355338
          %v1091 = vmul.f32 %v1087, 0.35355338
          %s1092 = scalar_lea.vmem [#allocation2], 48
          %v1093 = vld [vmem:[%s1092] sm:$0xff]
          %v1094 = vld [vmem:[%s1092 + $0x8] sm:$0xff]
          %v1095 = vsel %vm524, %v1090, -inf
          %1096 = vmax.xlane.f32.xlu0 %v1095
          %v1097 = vpop.xlane.xlu0 %1096
          %v1098 = vsel %vm524, %v1091, -inf
          %1099 = vmax.xlane.f32.xlu0 %v1098
          %v1100 = vpop.xlane.xlu0 %1099
          %v1101 = vmax.f32 %v1093, %v1097
          %v1102 = vmax.f32 %v1094, %v1100
          %v1103 = vsub.f32 %v1093, %v1101
          %v1104 = vsub.f32 %v1094, %v1102
          %v1105 = vmul.f32 %v1103, 1.442695
          %v1106 = vpow.pop %v1105
          %v1107 = vmul.f32 %v1104, 1.442695
          %v1108 = vpow.pop %v1107
          %1110 = vset.pattern.permute.xlu0 0
          %1111 = vperm.xlu0 %1110, %v1101
          %v1112 = vpop.permute.xlu0 %1111
          %1115 = vset.pattern.permute.xlu0 0
          %1116 = vperm.xlu0 %1115, %v1102
          %v1117 = vpop.permute.xlu0 %1116
          %v1119 = vsub.f32 %v1090, %v1112
          %v1120 = vsub.f32 %v1091, %v1117
          %v1121 = vmul.f32 %v1119, 1.442695
          %v1122 = vpow.pop %v1121
          %v1123 = vmul.f32 %v1120, 1.442695
          %v1124 = vpow.pop %v1123
          %s1125 = scalar_lea.vmem [#allocation3], 48
          %v1126 = vld [vmem:[%s1125] sm:$0xff]
          %v1127 = vld [vmem:[%s1125 + $0x8] sm:$0xff]
          %v1128 = vmul.f32 %v1106, %v1126
          %v1129 = vmul.f32 %v1108, %v1127
          %v1130 = vsel %vm524, %v1122, 0.0
          %1131 = vadd.xlane.f32.xlu0 %v1130
          %v1132 = vpop.xlane.xlu0 %1131
          %v1133 = vsel %vm524, %v1124, 0.0
          %1134 = vadd.xlane.f32.xlu0 %v1133
          %v1135 = vpop.xlane.xlu0 %1134
          %v1136 = vadd.f32 %v1128, %v1132
          %v1137 = vadd.f32 %v1129, %v1135
          %1138 = vst.msk [vmem:[%s1125] sm:$0xff] %vm567, %v1136
          %1139 = vst.msk [vmem:[%s1125 + $0x8] sm:$0xff] %vm567, %v1137
          %s1140 = scalar_lea.vmem [#allocation4], 48
          %v1141 = vld [vmem:[%s1140] sm:$0xff]
          %v1142 = vld [vmem:[%s1140 + $0x8] sm:$0xff]
          %1144 = vset.pattern.permute.xlu0 0
          %1145 = vperm.xlu0 %1144, %v1106
          %v1146 = vpop.permute.xlu0 %1145
          %1149 = vset.pattern.permute.xlu0 0
          %1150 = vperm.xlu0 %1149, %v1108
          %v1151 = vpop.permute.xlu0 %1150
          %v1153 = vmul.f32 %v1146, %v1141
          %v1154 = vmul.f32 %v1151, %v1142
          %v1155 = vpack.c.bf16 %v1124, %v1122
          %v1158 = vunpack.c.l.b16 %v1027
          %v1159 = vunpack.c.l.b16 %v1028
          %v1160 = vpack.c.b16 %v1159, %v1158
          %1161 = vrot.lane.b32.xlu0 %v1160, 104
          %v1162 = vpop.permute.xlu0 %1161
          %v1165 = vsel %vm524, %v1155, 0
          %1167 = vmatprep.subr.bf16.mxu0 0
          %1168 = vmatpush1.bf16.msra.mxu0 0
          %1169 = vmatprep.subr.bf16.mxu0 0
          %1170 = vmatpush1.bf16.msra.mxu0 0
          %1171 = vmatprep.subr.bf16.mxu0 0
          %1172 = vmatpush1.bf16.msra.mxu0 0
          %1173 = vmatprep.subr.bf16.mxu0 0
          %1174 = vmatpush1.bf16.msra.mxu0 0
          %1175 = vmatprep.subr.bf16.mxu0 0
          %1176 = vmatpush1.bf16.msra.mxu0 0
          %1177 = vmatprep.subr.bf16.mxu0 0
          %1178 = vmatpush1.bf16.msra.mxu0 0
          %1179 = vmatprep.subr.bf16.mxu0 0
          %1180 = vmatpush1.bf16.msra.mxu0 0
          %1181 = vmatprep.subr.bf16.mxu0 0
          %1182 = vmatpush1.bf16.msra.mxu0 %v1162
          %1183 = vmatprep.subr.bf16.mxu0 0
          %1184 = vmatpush2.bf16.msra.mxu0 0
          %1185 = vmatprep.subr.bf16.mxu0 0
          %1186 = vmatpush2.bf16.msra.mxu0 0
          %1187 = vmatprep.subr.bf16.mxu0 0
          %1188 = vmatpush2.bf16.msra.mxu0 0
          %1189 = vmatprep.subr.bf16.mxu0 0
          %1190 = vmatpush2.bf16.msra.mxu0 0
          %1191 = vmatprep.subr.bf16.mxu0 0
          %1192 = vmatpush2.bf16.msra.mxu0 0
          %1193 = vmatprep.subr.bf16.mxu0 0
          %1194 = vmatpush2.bf16.msra.mxu0 0
          %1195 = vmatprep.subr.bf16.mxu0 0
          %1196 = vmatpush2.bf16.msra.mxu0 0
          %1197 = vmatprep.subr.bf16.mxu0 0
          %1198 = vmatpush2.bf16.msra.mxu0 0
          %1199 = vmatprep.mubr.bf16.mxu0 0
          %1200 = vmatmul.mubr.bf16.gmra.mxu0 %v1165
          %v1201 = vpop.f32.mrf.mxu0
          %v1202 = vadd.f32 0.0, %v1201
          %v1203 = vpop.f32.mrf.mxu0
          %v1204 = vpop.f32.mrf.mxu0
          %v1205 = vadd.f32 0.0, %v1204
          %v1206 = vpop.f32.mrf.mxu0
          %1207 = vdwg.mxu0
          %v1208 = vadd.f32 %v1153, %v1202
          %v1209 = vadd.f32 %v1154, %v1205
          %1210 = vst.msk [vmem:[%s1140] sm:$0xff] %vm472, %v1208
          %1211 = vst.msk [vmem:[%s1140 + $0x8] sm:$0xff] %vm472, %v1209
          %1212 = vst.msk [vmem:[%s1092] sm:$0xff] %vm567, %v1101
          %1213 = vst.msk [vmem:[%s1092 + $0x8] sm:$0xff] %vm567, %v1102
        $region163: #{gpt_forward.10} parent=142 // pred_fallthru
          _
        %p1214 = scmp.eq.s32.totalorder %s21, %s20
        // Predicated region
        $region164: #{gpt_forward.10} parent=142 // pred_check
          %p1215 = pneg %p1214
        $region165: #{gpt_forward.10} parent=142 // pred_check_branch
          %1217 = sbr.rel (%p1215) target = $region167
        $region166: #{gpt_forward.10} parent=142 // pred_region
          %v1218 = vlaneseq
          %v1219 = vshrl.u32 %v1218, 7
          %v1220 = vadd.s32 %v1219, 8
          %v1221 = vlaneseq
          %v1222 = vand.u32 %v1221, 127
          %vm1223 = vcmp.le.s32.totalorder %v1222, %v1219
          %vm1224 = vcmp.le.s32.totalorder %v1222, %v1220
          %v1225 = vld [vmem:[%s357] sm:$0xf]
          %v1226 = vld [vmem:[%s357 + $0x4] sm:$0xf]
          %v1227 = vld [vmem:[%s364] sm:$0xf]
          %v1228 = vld [vmem:[%s364 + $0x4] sm:$0xf]
          %v1229 = vld [vmem:[%s371] sm:$0xf]
          %v1230 = vld [vmem:[%s371 + $0x4] sm:$0xf]
          %v1233 = vunpack.c.l.b16 %v1225
          %v1234 = vunpack.c.l.b16 %v1226
          %v1235 = vpack.c.b16 %v1234, %v1233
          %v1238 = vunpack.c.l.b16 %v1227
          %v1239 = vunpack.c.l.b16 %v1228
          %v1240 = vpack.c.b16 %v1239, %v1238
          %vm1241 = vcmask 64512
          %v1243 = vsel %vm1241, %v1235, 0
          %v1246 = vsel %vm1241, %v1240, 0
          %1248 = vmatprep.subr.bf16.mxu0 0
          %1249 = vmatpush1.bf16.xpose.msra.mxu0 0
          %1250 = vmatprep.subr.bf16.mxu0 0
          %1251 = vmatpush1.bf16.xpose.msra.mxu0 0
          %1252 = vmatprep.subr.bf16.mxu0 0
          %1253 = vmatpush1.bf16.xpose.msra.mxu0 0
          %1254 = vmatprep.subr.bf16.mxu0 0
          %1255 = vmatpush1.bf16.xpose.msra.mxu0 0
          %1256 = vmatprep.subr.bf16.mxu0 0
          %1257 = vmatpush1.bf16.xpose.msra.mxu0 0
          %1258 = vmatprep.subr.bf16.mxu0 0
          %1259 = vmatpush1.bf16.xpose.msra.mxu0 0
          %1260 = vmatprep.subr.bf16.mxu0 0
          %1261 = vmatpush1.bf16.xpose.msra.mxu0 0
          %1262 = vmatprep.subr.bf16.mxu0 0
          %1263 = vmatpush1.bf16.xpose.msra.mxu0 %v1246
          %1264 = vmatprep.subr.bf16.mxu0 0
          %1265 = vmatpush2.bf16.xpose.msra.mxu0 0
          %1266 = vmatprep.subr.bf16.mxu0 0
          %1267 = vmatpush2.bf16.xpose.msra.mxu0 0
          %1268 = vmatprep.subr.bf16.mxu0 0
          %1269 = vmatpush2.bf16.xpose.msra.mxu0 0
          %1270 = vmatprep.subr.bf16.mxu0 0
          %1271 = vmatpush2.bf16.xpose.msra.mxu0 0
          %1272 = vmatprep.subr.bf16.mxu0 0
          %1273 = vmatpush2.bf16.xpose.msra.mxu0 0
          %1274 = vmatprep.subr.bf16.mxu0 0
          %1275 = vmatpush2.bf16.xpose.msra.mxu0 0
          %1276 = vmatprep.subr.bf16.mxu0 0
          %1277 = vmatpush2.bf16.xpose.msra.mxu0 0
          %1278 = vmatprep.subr.bf16.mxu0 0
          %1279 = vmatpush2.bf16.xpose.msra.mxu0 0
          %1280 = vmatprep.mubr.bf16.mxu0 0
          %1281 = vmatmul.mubr.bf16.gmra.mxu0 %v1243
          %v1282 = vpop.f32.mrf.mxu0
          %v1283 = vadd.f32 0.0, %v1282
          %v1284 = vpop.f32.mrf.mxu0
          %v1285 = vpop.f32.mrf.mxu0
          %v1286 = vadd.f32 0.0, %v1285
          %v1287 = vpop.f32.mrf.mxu0
          %1288 = vdwg.mxu0
          %v1289 = vmul.f32 %v1283, 0.35355338
          %v1290 = vmul.f32 %v1286, 0.35355338
          %v1291 = vsel %vm1223, %v1289, -1e+30
          %v1292 = vsel %vm1224, %v1290, -1e+30
          %v1293 = vld [vmem:[#allocation2] sm:$0xff]
          %v1294 = vld [vmem:[#allocation2 + $0x8] sm:$0xff]
          %vm1295 = vcmask 130048
          %v1296 = vsel %vm1295, %v1291, -inf
          %1297 = vmax.xlane.f32.xlu0 %v1296
          %v1298 = vpop.xlane.xlu0 %1297
          %v1299 = vsel %vm1295, %v1292, -inf
          %1300 = vmax.xlane.f32.xlu0 %v1299
          %v1301 = vpop.xlane.xlu0 %1300
          %v1302 = vmax.f32 %v1293, %v1298
          %v1303 = vmax.f32 %v1294, %v1301
          %v1304 = vsub.f32 %v1293, %v1302
          %v1305 = vsub.f32 %v1294, %v1303
          %v1306 = vmul.f32 %v1304, 1.442695
          %v1307 = vpow.pop %v1306
          %v1308 = vmul.f32 %v1305, 1.442695
          %v1309 = vpow.pop %v1308
          %1311 = vset.pattern.permute.xlu0 0
          %1312 = vperm.xlu0 %1311, %v1302
          %v1313 = vpop.permute.xlu0 %1312
          %1316 = vset.pattern.permute.xlu0 0
          %1317 = vperm.xlu0 %1316, %v1303
          %v1318 = vpop.permute.xlu0 %1317
          %v1320 = vsub.f32 %v1291, %v1313
          %v1321 = vsub.f32 %v1292, %v1318
          %v1322 = vmul.f32 %v1320, 1.442695
          %v1323 = vpow.pop %v1322
          %v1324 = vmul.f32 %v1321, 1.442695
          %v1325 = vpow.pop %v1324
          %v1326 = vld [vmem:[#allocation3] sm:$0xff]
          %v1327 = vld [vmem:[#allocation3 + $0x8] sm:$0xff]
          %v1328 = vmul.f32 %v1307, %v1326
          %v1329 = vmul.f32 %v1309, %v1327
          %v1330 = vsel %vm1295, %v1323, 0.0
          %1331 = vadd.xlane.f32.xlu0 %v1330
          %v1332 = vpop.xlane.xlu0 %1331
          %v1333 = vsel %vm1295, %v1325, 0.0
          %1334 = vadd.xlane.f32.xlu0 %v1333
          %v1335 = vpop.xlane.xlu0 %1334
          %v1336 = vadd.f32 %v1328, %v1332
          %v1337 = vadd.f32 %v1329, %v1335
          %vm1338 = vcmask 7168
          %1339 = vst.msk [vmem:[#allocation3] sm:$0xff] %vm1338, %v1336
          %1340 = vst.msk [vmem:[#allocation3 + $0x8] sm:$0xff] %vm1338, %v1337
          %v1341 = vld [vmem:[#allocation4] sm:$0xff]
          %v1342 = vld [vmem:[#allocation4 + $0x8] sm:$0xff]
          %1344 = vset.pattern.permute.xlu0 0
          %1345 = vperm.xlu0 %1344, %v1307
          %v1346 = vpop.permute.xlu0 %1345
          %1349 = vset.pattern.permute.xlu0 0
          %1350 = vperm.xlu0 %1349, %v1309
          %v1351 = vpop.permute.xlu0 %1350
          %v1353 = vmul.f32 %v1346, %v1341
          %v1354 = vmul.f32 %v1351, %v1342
          %v1355 = vpack.c.bf16 %v1325, %v1323
          %v1358 = vunpack.c.l.b16 %v1229
          %v1359 = vunpack.c.l.b16 %v1230
          %v1360 = vpack.c.b16 %v1359, %v1358
          %v1363 = vsel %vm1295, %v1355, 0
          %1365 = vmatprep.subr.bf16.mxu0 0
          %1366 = vmatpush1.bf16.msra.mxu0 0
          %1367 = vmatprep.subr.bf16.mxu0 0
          %1368 = vmatpush1.bf16.msra.mxu0 0
          %1369 = vmatprep.subr.bf16.mxu0 0
          %1370 = vmatpush1.bf16.msra.mxu0 0
          %1371 = vmatprep.subr.bf16.mxu0 0
          %1372 = vmatpush1.bf16.msra.mxu0 0
          %1373 = vmatprep.subr.bf16.mxu0 0
          %1374 = vmatpush1.bf16.msra.mxu0 0
          %1375 = vmatprep.subr.bf16.mxu0 0
          %1376 = vmatpush1.bf16.msra.mxu0 0
          %1377 = vmatprep.subr.bf16.mxu0 0
          %1378 = vmatpush1.bf16.msra.mxu0 0
          %1379 = vmatprep.subr.bf16.mxu0 0
          %1380 = vmatpush1.bf16.msra.mxu0 %v1360
          %1381 = vmatprep.subr.bf16.mxu0 0
          %1382 = vmatpush2.bf16.msra.mxu0 0
          %1383 = vmatprep.subr.bf16.mxu0 0
          %1384 = vmatpush2.bf16.msra.mxu0 0
          %1385 = vmatprep.subr.bf16.mxu0 0
          %1386 = vmatpush2.bf16.msra.mxu0 0
          %1387 = vmatprep.subr.bf16.mxu0 0
          %1388 = vmatpush2.bf16.msra.mxu0 0
          %1389 = vmatprep.subr.bf16.mxu0 0
          %1390 = vmatpush2.bf16.msra.mxu0 0
          %1391 = vmatprep.subr.bf16.mxu0 0
          %1392 = vmatpush2.bf16.msra.mxu0 0
          %1393 = vmatprep.subr.bf16.mxu0 0
          %1394 = vmatpush2.bf16.msra.mxu0 0
          %1395 = vmatprep.subr.bf16.mxu0 0
          %1396 = vmatpush2.bf16.msra.mxu0 0
          %1397 = vmatprep.mubr.bf16.mxu0 0
          %1398 = vmatmul.mubr.bf16.gmra.mxu0 %v1363
          %v1399 = vpop.f32.mrf.mxu0
          %v1400 = vadd.f32 0.0, %v1399
          %v1401 = vpop.f32.mrf.mxu0
          %v1402 = vpop.f32.mrf.mxu0
          %v1403 = vadd.f32 0.0, %v1402
          %v1404 = vpop.f32.mrf.mxu0
          %1405 = vdwg.mxu0
          %v1406 = vadd.f32 %v1353, %v1400
          %v1407 = vadd.f32 %v1354, %v1403
          %1408 = vst.msk [vmem:[#allocation4] sm:$0xff] %vm1241, %v1406
          %1409 = vst.msk [vmem:[#allocation4 + $0x8] sm:$0xff] %vm1241, %v1407
          %1410 = vst.msk [vmem:[#allocation2] sm:$0xff] %vm1338, %v1302
          %1411 = vst.msk [vmem:[#allocation2 + $0x8] sm:$0xff] %vm1338, %v1303
          %v1412 = vld [vmem:[%s357] sm:$0xf]
          %v1413 = vld [vmem:[%s357 + $0x4] sm:$0xf]
          %v1414 = vld [vmem:[%s364] sm:$0xf]
          %v1415 = vld [vmem:[%s364 + $0x4] sm:$0xf]
          %v1416 = vld [vmem:[%s371] sm:$0xf]
          %v1417 = vld [vmem:[%s371 + $0x4] sm:$0xf]
          %v1420 = vunpack.c.l.b16 %v1412
          %v1421 = vunpack.c.l.b16 %v1413
          %v1422 = vpack.c.b16 %v1421, %v1420
          %1423 = vrot.lane.b32.xlu0 %v1422, 120
          %v1424 = vpop.permute.xlu0 %1423
          %v1427 = vunpack.c.l.b16 %v1414
          %v1428 = vunpack.c.l.b16 %v1415
          %v1429 = vpack.c.b16 %v1428, %v1427
          %1430 = vrot.lane.b32.xlu0 %v1429, 120
          %v1431 = vpop.permute.xlu0 %1430
          %v1433 = vsel %vm1241, %v1424, 0
          %v1436 = vsel %vm1241, %v1431, 0
          %1438 = vmatprep.subr.bf16.mxu0 0
          %1439 = vmatpush1.bf16.xpose.msra.mxu0 0
          %1440 = vmatprep.subr.bf16.mxu0 0
          %1441 = vmatpush1.bf16.xpose.msra.mxu0 0
          %1442 = vmatprep.subr.bf16.mxu0 0
          %1443 = vmatpush1.bf16.xpose.msra.mxu0 0
          %1444 = vmatprep.subr.bf16.mxu0 0
          %1445 = vmatpush1.bf16.xpose.msra.mxu0 0
          %1446 = vmatprep.subr.bf16.mxu0 0
          %1447 = vmatpush1.bf16.xpose.msra.mxu0 0
          %1448 = vmatprep.subr.bf16.mxu0 0
          %1449 = vmatpush1.bf16.xpose.msra.mxu0 0
          %1450 = vmatprep.subr.bf16.mxu0 0
          %1451 = vmatpush1.bf16.xpose.msra.mxu0 0
          %1452 = vmatprep.subr.bf16.mxu0 0
          %1453 = vmatpush1.bf16.xpose.msra.mxu0 %v1436
          %1454 = vmatprep.subr.bf16.mxu0 0
          %1455 = vmatpush2.bf16.xpose.msra.mxu0 0
          %1456 = vmatprep.subr.bf16.mxu0 0
          %1457 = vmatpush2.bf16.xpose.msra.mxu0 0
          %1458 = vmatprep.subr.bf16.mxu0 0
          %1459 = vmatpush2.bf16.xpose.msra.mxu0 0
          %1460 = vmatprep.subr.bf16.mxu0 0
          %1461 = vmatpush2.bf16.xpose.msra.mxu0 0
          %1462 = vmatprep.subr.bf16.mxu0 0
          %1463 = vmatpush2.bf16.xpose.msra.mxu0 0
          %1464 = vmatprep.subr.bf16.mxu0 0
          %1465 = vmatpush2.bf16.xpose.msra.mxu0 0
          %1466 = vmatprep.subr.bf16.mxu0 0
          %1467 = vmatpush2.bf16.xpose.msra.mxu0 0
          %1468 = vmatprep.subr.bf16.mxu0 0
          %1469 = vmatpush2.bf16.xpose.msra.mxu0 0
          %1470 = vmatprep.mubr.bf16.mxu0 0
          %1471 = vmatmul.mubr.bf16.gmra.mxu0 %v1433
          %v1472 = vpop.f32.mrf.mxu0
          %v1473 = vadd.f32 0.0, %v1472
          %v1474 = vpop.f32.mrf.mxu0
          %v1475 = vpop.f32.mrf.mxu0
          %v1476 = vadd.f32 0.0, %v1475
          %v1477 = vpop.f32.mrf.mxu0
          %1478 = vdwg.mxu0
          %v1479 = vmul.f32 %v1473, 0.35355338
          %v1480 = vmul.f32 %v1476, 0.35355338
          %v1481 = vsel %vm1223, %v1479, -1e+30
          %v1482 = vsel %vm1224, %v1480, -1e+30
          %s1483 = scalar_lea.vmem [#allocation2], 16
          %v1484 = vld [vmem:[%s1483] sm:$0xff]
          %v1485 = vld [vmem:[%s1483 + $0x8] sm:$0xff]
          %v1486 = vsel %vm1295, %v1481, -inf
          %1487 = vmax.xlane.f32.xlu0 %v1486
          %v1488 = vpop.xlane.xlu0 %1487
          %v1489 = vsel %vm1295, %v1482, -inf
          %1490 = vmax.xlane.f32.xlu0 %v1489
          %v1491 = vpop.xlane.xlu0 %1490
          %v1492 = vmax.f32 %v1484, %v1488
          %v1493 = vmax.f32 %v1485, %v1491
          %v1494 = vsub.f32 %v1484, %v1492
          %v1495 = vsub.f32 %v1485, %v1493
          %v1496 = vmul.f32 %v1494, 1.442695
          %v1497 = vpow.pop %v1496
          %v1498 = vmul.f32 %v1495, 1.442695
          %v1499 = vpow.pop %v1498
          %1501 = vset.pattern.permute.xlu0 0
          %1502 = vperm.xlu0 %1501, %v1492
          %v1503 = vpop.permute.xlu0 %1502
          %1506 = vset.pattern.permute.xlu0 0
          %1507 = vperm.xlu0 %1506, %v1493
          %v1508 = vpop.permute.xlu0 %1507
          %v1510 = vsub.f32 %v1481, %v1503
          %v1511 = vsub.f32 %v1482, %v1508
          %v1512 = vmul.f32 %v1510, 1.442695
          %v1513 = vpow.pop %v1512
          %v1514 = vmul.f32 %v1511, 1.442695
          %v1515 = vpow.pop %v1514
          %s1516 = scalar_lea.vmem [#allocation3], 16
          %v1517 = vld [vmem:[%s1516] sm:$0xff]
          %v1518 = vld [vmem:[%s1516 + $0x8] sm:$0xff]
          %v1519 = vmul.f32 %v1497, %v1517
          %v1520 = vmul.f32 %v1499, %v1518
          %v1521 = vsel %vm1295, %v1513, 0.0
          %1522 = vadd.xlane.f32.xlu0 %v1521
          %v1523 = vpop.xlane.xlu0 %1522
          %v1524 = vsel %vm1295, %v1515, 0.0
          %1525 = vadd.xlane.f32.xlu0 %v1524
          %v1526 = vpop.xlane.xlu0 %1525
          %v1527 = vadd.f32 %v1519, %v1523
          %v1528 = vadd.f32 %v1520, %v1526
          %1529 = vst.msk [vmem:[%s1516] sm:$0xff] %vm1338, %v1527
          %1530 = vst.msk [vmem:[%s1516 + $0x8] sm:$0xff] %vm1338, %v1528
          %s1531 = scalar_lea.vmem [#allocation4], 16
          %v1532 = vld [vmem:[%s1531] sm:$0xff]
          %v1533 = vld [vmem:[%s1531 + $0x8] sm:$0xff]
          %1535 = vset.pattern.permute.xlu0 0
          %1536 = vperm.xlu0 %1535, %v1497
          %v1537 = vpop.permute.xlu0 %1536
          %1540 = vset.pattern.permute.xlu0 0
          %1541 = vperm.xlu0 %1540, %v1499
          %v1542 = vpop.permute.xlu0 %1541
          %v1544 = vmul.f32 %v1537, %v1532
          %v1545 = vmul.f32 %v1542, %v1533
          %v1546 = vpack.c.bf16 %v1515, %v1513
          %v1549 = vunpack.c.l.b16 %v1416
          %v1550 = vunpack.c.l.b16 %v1417
          %v1551 = vpack.c.b16 %v1550, %v1549
          %1552 = vrot.lane.b32.xlu0 %v1551, 120
          %v1553 = vpop.permute.xlu0 %1552
          %v1556 = vsel %vm1295, %v1546, 0
          %1558 = vmatprep.subr.bf16.mxu0 0
          %1559 = vmatpush1.bf16.msra.mxu0 0
          %1560 = vmatprep.subr.bf16.mxu0 0
          %1561 = vmatpush1.bf16.msra.mxu0 0
          %1562 = vmatprep.subr.bf16.mxu0 0
          %1563 = vmatpush1.bf16.msra.mxu0 0
          %1564 = vmatprep.subr.bf16.mxu0 0
          %1565 = vmatpush1.bf16.msra.mxu0 0
          %1566 = vmatprep.subr.bf16.mxu0 0
          %1567 = vmatpush1.bf16.msra.mxu0 0
          %1568 = vmatprep.subr.bf16.mxu0 0
          %1569 = vmatpush1.bf16.msra.mxu0 0
          %1570 = vmatprep.subr.bf16.mxu0 0
          %1571 = vmatpush1.bf16.msra.mxu0 0
          %1572 = vmatprep.subr.bf16.mxu0 0
          %1573 = vmatpush1.bf16.msra.mxu0 %v1553
          %1574 = vmatprep.subr.bf16.mxu0 0
          %1575 = vmatpush2.bf16.msra.mxu0 0
          %1576 = vmatprep.subr.bf16.mxu0 0
          %1577 = vmatpush2.bf16.msra.mxu0 0
          %1578 = vmatprep.subr.bf16.mxu0 0
          %1579 = vmatpush2.bf16.msra.mxu0 0
          %1580 = vmatprep.subr.bf16.mxu0 0
          %1581 = vmatpush2.bf16.msra.mxu0 0
          %1582 = vmatprep.subr.bf16.mxu0 0
          %1583 = vmatpush2.bf16.msra.mxu0 0
          %1584 = vmatprep.subr.bf16.mxu0 0
          %1585 = vmatpush2.bf16.msra.mxu0 0
          %1586 = vmatprep.subr.bf16.mxu0 0
          %1587 = vmatpush2.bf16.msra.mxu0 0
          %1588 = vmatprep.subr.bf16.mxu0 0
          %1589 = vmatpush2.bf16.msra.mxu0 0
          %1590 = vmatprep.mubr.bf16.mxu0 0
          %1591 = vmatmul.mubr.bf16.gmra.mxu0 %v1556
          %v1592 = vpop.f32.mrf.mxu0
          %v1593 = vadd.f32 0.0, %v1592
          %v1594 = vpop.f32.mrf.mxu0
          %v1595 = vpop.f32.mrf.mxu0
          %v1596 = vadd.f32 0.0, %v1595
          %v1597 = vpop.f32.mrf.mxu0
          %1598 = vdwg.mxu0
          %v1599 = vadd.f32 %v1544, %v1593
          %v1600 = vadd.f32 %v1545, %v1596
          %1601 = vst.msk [vmem:[%s1531] sm:$0xff] %vm1241, %v1599
          %1602 = vst.msk [vmem:[%s1531 + $0x8] sm:$0xff] %vm1241, %v1600
          %1603 = vst.msk [vmem:[%s1483] sm:$0xff] %vm1338, %v1492
          %1604 = vst.msk [vmem:[%s1483 + $0x8] sm:$0xff] %vm1338, %v1493
          %v1605 = vld [vmem:[%s357] sm:$0xf]
          %v1606 = vld [vmem:[%s357 + $0x4] sm:$0xf]
          %v1607 = vld [vmem:[%s364] sm:$0xf]
          %v1608 = vld [vmem:[%s364 + $0x4] sm:$0xf]
          %v1609 = vld [vmem:[%s371] sm:$0xf]
          %v1610 = vld [vmem:[%s371 + $0x4] sm:$0xf]
          %v1613 = vunpack.c.l.b16 %v1605
          %v1614 = vunpack.c.l.b16 %v1606
          %v1615 = vpack.c.b16 %v1614, %v1613
          %1616 = vrot.lane.b32.xlu0 %v1615, 112
          %v1617 = vpop.permute.xlu0 %1616
          %v1620 = vunpack.c.l.b16 %v1607
          %v1621 = vunpack.c.l.b16 %v1608
          %v1622 = vpack.c.b16 %v1621, %v1620
          %1623 = vrot.lane.b32.xlu0 %v1622, 112
          %v1624 = vpop.permute.xlu0 %1623
          %v1626 = vsel %vm1241, %v1617, 0
          %v1629 = vsel %vm1241, %v1624, 0
          %1631 = vmatprep.subr.bf16.mxu0 0
          %1632 = vmatpush1.bf16.xpose.msra.mxu0 0
          %1633 = vmatprep.subr.bf16.mxu0 0
          %1634 = vmatpush1.bf16.xpose.msra.mxu0 0
          %1635 = vmatprep.subr.bf16.mxu0 0
          %1636 = vmatpush1.bf16.xpose.msra.mxu0 0
          %1637 = vmatprep.subr.bf16.mxu0 0
          %1638 = vmatpush1.bf16.xpose.msra.mxu0 0
          %1639 = vmatprep.subr.bf16.mxu0 0
          %1640 = vmatpush1.bf16.xpose.msra.mxu0 0
          %1641 = vmatprep.subr.bf16.mxu0 0
          %1642 = vmatpush1.bf16.xpose.msra.mxu0 0
          %1643 = vmatprep.subr.bf16.mxu0 0
          %1644 = vmatpush1.bf16.xpose.msra.mxu0 0
          %1645 = vmatprep.subr.bf16.mxu0 0
          %1646 = vmatpush1.bf16.xpose.msra.mxu0 %v1629
          %1647 = vmatprep.subr.bf16.mxu0 0
          %1648 = vmatpush2.bf16.xpose.msra.mxu0 0
          %1649 = vmatprep.subr.bf16.mxu0 0
          %1650 = vmatpush2.bf16.xpose.msra.mxu0 0
          %1651 = vmatprep.subr.bf16.mxu0 0
          %1652 = vmatpush2.bf16.xpose.msra.mxu0 0
          %1653 = vmatprep.subr.bf16.mxu0 0
          %1654 = vmatpush2.bf16.xpose.msra.mxu0 0
          %1655 = vmatprep.subr.bf16.mxu0 0
          %1656 = vmatpush2.bf16.xpose.msra.mxu0 0
          %1657 = vmatprep.subr.bf16.mxu0 0
          %1658 = vmatpush2.bf16.xpose.msra.mxu0 0
          %1659 = vmatprep.subr.bf16.mxu0 0
          %1660 = vmatpush2.bf16.xpose.msra.mxu0 0
          %1661 = vmatprep.subr.bf16.mxu0 0
          %1662 = vmatpush2.bf16.xpose.msra.mxu0 0
          %1663 = vmatprep.mubr.bf16.mxu0 0
          %1664 = vmatmul.mubr.bf16.gmra.mxu0 %v1626
          %v1665 = vpop.f32.mrf.mxu0
          %v1666 = vadd.f32 0.0, %v1665
          %v1667 = vpop.f32.mrf.mxu0
          %v1668 = vpop.f32.mrf.mxu0
          %v1669 = vadd.f32 0.0, %v1668
          %v1670 = vpop.f32.mrf.mxu0
          %1671 = vdwg.mxu0
          %v1672 = vmul.f32 %v1666, 0.35355338
          %v1673 = vmul.f32 %v1669, 0.35355338
          %v1674 = vsel %vm1223, %v1672, -1e+30
          %v1675 = vsel %vm1224, %v1673, -1e+30
          %s1676 = scalar_lea.vmem [#allocation2], 32
          %v1677 = vld [vmem:[%s1676] sm:$0xff]
          %v1678 = vld [vmem:[%s1676 + $0x8] sm:$0xff]
          %v1679 = vsel %vm1295, %v1674, -inf
          %1680 = vmax.xlane.f32.xlu0 %v1679
          %v1681 = vpop.xlane.xlu0 %1680
          %v1682 = vsel %vm1295, %v1675, -inf
          %1683 = vmax.xlane.f32.xlu0 %v1682
          %v1684 = vpop.xlane.xlu0 %1683
          %v1685 = vmax.f32 %v1677, %v1681
          %v1686 = vmax.f32 %v1678, %v1684
          %v1687 = vsub.f32 %v1677, %v1685
          %v1688 = vsub.f32 %v1678, %v1686
          %v1689 = vmul.f32 %v1687, 1.442695
          %v1690 = vpow.pop %v1689
          %v1691 = vmul.f32 %v1688, 1.442695
          %v1692 = vpow.pop %v1691
          %1694 = vset.pattern.permute.xlu0 0
          %1695 = vperm.xlu0 %1694, %v1685
          %v1696 = vpop.permute.xlu0 %1695
          %1699 = vset.pattern.permute.xlu0 0
          %1700 = vperm.xlu0 %1699, %v1686
          %v1701 = vpop.permute.xlu0 %1700
          %v1703 = vsub.f32 %v1674, %v1696
          %v1704 = vsub.f32 %v1675, %v1701
          %v1705 = vmul.f32 %v1703, 1.442695
          %v1706 = vpow.pop %v1705
          %v1707 = vmul.f32 %v1704, 1.442695
          %v1708 = vpow.pop %v1707
          %s1709 = scalar_lea.vmem [#allocation3], 32
          %v1710 = vld [vmem:[%s1709] sm:$0xff]
          %v1711 = vld [vmem:[%s1709 + $0x8] sm:$0xff]
          %v1712 = vmul.f32 %v1690, %v1710
          %v1713 = vmul.f32 %v1692, %v1711
          %v1714 = vsel %vm1295, %v1706, 0.0
          %1715 = vadd.xlane.f32.xlu0 %v1714
          %v1716 = vpop.xlane.xlu0 %1715
          %v1717 = vsel %vm1295, %v1708, 0.0
          %1718 = vadd.xlane.f32.xlu0 %v1717
          %v1719 = vpop.xlane.xlu0 %1718
          %v1720 = vadd.f32 %v1712, %v1716
          %v1721 = vadd.f32 %v1713, %v1719
          %1722 = vst.msk [vmem:[%s1709] sm:$0xff] %vm1338, %v1720
          %1723 = vst.msk [vmem:[%s1709 + $0x8] sm:$0xff] %vm1338, %v1721
          %s1724 = scalar_lea.vmem [#allocation4], 32
          %v1725 = vld [vmem:[%s1724] sm:$0xff]
          %v1726 = vld [vmem:[%s1724 + $0x8] sm:$0xff]
          %1728 = vset.pattern.permute.xlu0 0
          %1729 = vperm.xlu0 %1728, %v1690
          %v1730 = vpop.permute.xlu0 %1729
          %1733 = vset.pattern.permute.xlu0 0
          %1734 = vperm.xlu0 %1733, %v1692
          %v1735 = vpop.permute.xlu0 %1734
          %v1737 = vmul.f32 %v1730, %v1725
          %v1738 = vmul.f32 %v1735, %v1726
          %v1739 = vpack.c.bf16 %v1708, %v1706
          %v1742 = vunpack.c.l.b16 %v1609
          %v1743 = vunpack.c.l.b16 %v1610
          %v1744 = vpack.c.b16 %v1743, %v1742
          %1745 = vrot.lane.b32.xlu0 %v1744, 112
          %v1746 = vpop.permute.xlu0 %1745
          %v1749 = vsel %vm1295, %v1739, 0
          %1751 = vmatprep.subr.bf16.mxu0 0
          %1752 = vmatpush1.bf16.msra.mxu0 0
          %1753 = vmatprep.subr.bf16.mxu0 0
          %1754 = vmatpush1.bf16.msra.mxu0 0
          %1755 = vmatprep.subr.bf16.mxu0 0
          %1756 = vmatpush1.bf16.msra.mxu0 0
          %1757 = vmatprep.subr.bf16.mxu0 0
          %1758 = vmatpush1.bf16.msra.mxu0 0
          %1759 = vmatprep.subr.bf16.mxu0 0
          %1760 = vmatpush1.bf16.msra.mxu0 0
          %1761 = vmatprep.subr.bf16.mxu0 0
          %1762 = vmatpush1.bf16.msra.mxu0 0
          %1763 = vmatprep.subr.bf16.mxu0 0
          %1764 = vmatpush1.bf16.msra.mxu0 0
          %1765 = vmatprep.subr.bf16.mxu0 0
          %1766 = vmatpush1.bf16.msra.mxu0 %v1746
          %1767 = vmatprep.subr.bf16.mxu0 0
          %1768 = vmatpush2.bf16.msra.mxu0 0
          %1769 = vmatprep.subr.bf16.mxu0 0
          %1770 = vmatpush2.bf16.msra.mxu0 0
          %1771 = vmatprep.subr.bf16.mxu0 0
          %1772 = vmatpush2.bf16.msra.mxu0 0
          %1773 = vmatprep.subr.bf16.mxu0 0
          %1774 = vmatpush2.bf16.msra.mxu0 0
          %1775 = vmatprep.subr.bf16.mxu0 0
          %1776 = vmatpush2.bf16.msra.mxu0 0
          %1777 = vmatprep.subr.bf16.mxu0 0
          %1778 = vmatpush2.bf16.msra.mxu0 0
          %1779 = vmatprep.subr.bf16.mxu0 0
          %1780 = vmatpush2.bf16.msra.mxu0 0
          %1781 = vmatprep.subr.bf16.mxu0 0
          %1782 = vmatpush2.bf16.msra.mxu0 0
          %1783 = vmatprep.mubr.bf16.mxu0 0
          %1784 = vmatmul.mubr.bf16.gmra.mxu0 %v1749
          %v1785 = vpop.f32.mrf.mxu0
          %v1786 = vadd.f32 0.0, %v1785
          %v1787 = vpop.f32.mrf.mxu0
          %v1788 = vpop.f32.mrf.mxu0
          %v1789 = vadd.f32 0.0, %v1788
          %v1790 = vpop.f32.mrf.mxu0
          %1791 = vdwg.mxu0
          %v1792 = vadd.f32 %v1737, %v1786
          %v1793 = vadd.f32 %v1738, %v1789
          %1794 = vst.msk [vmem:[%s1724] sm:$0xff] %vm1241, %v1792
          %1795 = vst.msk [vmem:[%s1724 + $0x8] sm:$0xff] %vm1241, %v1793
          %1796 = vst.msk [vmem:[%s1676] sm:$0xff] %vm1338, %v1685
          %1797 = vst.msk [vmem:[%s1676 + $0x8] sm:$0xff] %vm1338, %v1686
          %v1798 = vld [vmem:[%s357] sm:$0xf]
          %v1799 = vld [vmem:[%s357 + $0x4] sm:$0xf]
          %v1800 = vld [vmem:[%s364] sm:$0xf]
          %v1801 = vld [vmem:[%s364 + $0x4] sm:$0xf]
          %v1802 = vld [vmem:[%s371] sm:$0xf]
          %v1803 = vld [vmem:[%s371 + $0x4] sm:$0xf]
          %v1806 = vunpack.c.l.b16 %v1798
          %v1807 = vunpack.c.l.b16 %v1799
          %v1808 = vpack.c.b16 %v1807, %v1806
          %1809 = vrot.lane.b32.xlu0 %v1808, 104
          %v1810 = vpop.permute.xlu0 %1809
          %v1813 = vunpack.c.l.b16 %v1800
          %v1814 = vunpack.c.l.b16 %v1801
          %v1815 = vpack.c.b16 %v1814, %v1813
          %1816 = vrot.lane.b32.xlu0 %v1815, 104
          %v1817 = vpop.permute.xlu0 %1816
          %v1819 = vsel %vm1241, %v1810, 0
          %v1822 = vsel %vm1241, %v1817, 0
          %1824 = vmatprep.subr.bf16.mxu0 0
          %1825 = vmatpush1.bf16.xpose.msra.mxu0 0
          %1826 = vmatprep.subr.bf16.mxu0 0
          %1827 = vmatpush1.bf16.xpose.msra.mxu0 0
          %1828 = vmatprep.subr.bf16.mxu0 0
          %1829 = vmatpush1.bf16.xpose.msra.mxu0 0
          %1830 = vmatprep.subr.bf16.mxu0 0
          %1831 = vmatpush1.bf16.xpose.msra.mxu0 0
          %1832 = vmatprep.subr.bf16.mxu0 0
          %1833 = vmatpush1.bf16.xpose.msra.mxu0 0
          %1834 = vmatprep.subr.bf16.mxu0 0
          %1835 = vmatpush1.bf16.xpose.msra.mxu0 0
          %1836 = vmatprep.subr.bf16.mxu0 0
          %1837 = vmatpush1.bf16.xpose.msra.mxu0 0
          %1838 = vmatprep.subr.bf16.mxu0 0
          %1839 = vmatpush1.bf16.xpose.msra.mxu0 %v1822
          %1840 = vmatprep.subr.bf16.mxu0 0
          %1841 = vmatpush2.bf16.xpose.msra.mxu0 0
          %1842 = vmatprep.subr.bf16.mxu0 0
          %1843 = vmatpush2.bf16.xpose.msra.mxu0 0
          %1844 = vmatprep.subr.bf16.mxu0 0
          %1845 = vmatpush2.bf16.xpose.msra.mxu0 0
          %1846 = vmatprep.subr.bf16.mxu0 0
          %1847 = vmatpush2.bf16.xpose.msra.mxu0 0
          %1848 = vmatprep.subr.bf16.mxu0 0
          %1849 = vmatpush2.bf16.xpose.msra.mxu0 0
          %1850 = vmatprep.subr.bf16.mxu0 0
          %1851 = vmatpush2.bf16.xpose.msra.mxu0 0
          %1852 = vmatprep.subr.bf16.mxu0 0
          %1853 = vmatpush2.bf16.xpose.msra.mxu0 0
          %1854 = vmatprep.subr.bf16.mxu0 0
          %1855 = vmatpush2.bf16.xpose.msra.mxu0 0
          %1856 = vmatprep.mubr.bf16.mxu0 0
          %1857 = vmatmul.mubr.bf16.gmra.mxu0 %v1819
          %v1858 = vpop.f32.mrf.mxu0
          %v1859 = vadd.f32 0.0, %v1858
          %v1860 = vpop.f32.mrf.mxu0
          %v1861 = vpop.f32.mrf.mxu0
          %v1862 = vadd.f32 0.0, %v1861
          %v1863 = vpop.f32.mrf.mxu0
          %1864 = vdwg.mxu0
          %v1865 = vmul.f32 %v1859, 0.35355338
          %v1866 = vmul.f32 %v1862, 0.35355338
          %v1867 = vsel %vm1223, %v1865, -1e+30
          %v1868 = vsel %vm1224, %v1866, -1e+30
          %s1869 = scalar_lea.vmem [#allocation2], 48
          %v1870 = vld [vmem:[%s1869] sm:$0xff]
          %v1871 = vld [vmem:[%s1869 + $0x8] sm:$0xff]
          %v1872 = vsel %vm1295, %v1867, -inf
          %1873 = vmax.xlane.f32.xlu0 %v1872
          %v1874 = vpop.xlane.xlu0 %1873
          %v1875 = vsel %vm1295, %v1868, -inf
          %1876 = vmax.xlane.f32.xlu0 %v1875
          %v1877 = vpop.xlane.xlu0 %1876
          %v1878 = vmax.f32 %v1870, %v1874
          %v1879 = vmax.f32 %v1871, %v1877
          %v1880 = vsub.f32 %v1870, %v1878
          %v1881 = vsub.f32 %v1871, %v1879
          %v1882 = vmul.f32 %v1880, 1.442695
          %v1883 = vpow.pop %v1882
          %v1884 = vmul.f32 %v1881, 1.442695
          %v1885 = vpow.pop %v1884
          %1887 = vset.pattern.permute.xlu0 0
          %1888 = vperm.xlu0 %1887, %v1878
          %v1889 = vpop.permute.xlu0 %1888
          %1892 = vset.pattern.permute.xlu0 0
          %1893 = vperm.xlu0 %1892, %v1879
          %v1894 = vpop.permute.xlu0 %1893
          %v1896 = vsub.f32 %v1867, %v1889
          %v1897 = vsub.f32 %v1868, %v1894
          %v1898 = vmul.f32 %v1896, 1.442695
          %v1899 = vpow.pop %v1898
          %v1900 = vmul.f32 %v1897, 1.442695
          %v1901 = vpow.pop %v1900
          %s1902 = scalar_lea.vmem [#allocation3], 48
          %v1903 = vld [vmem:[%s1902] sm:$0xff]
          %v1904 = vld [vmem:[%s1902 + $0x8] sm:$0xff]
          %v1905 = vmul.f32 %v1883, %v1903
          %v1906 = vmul.f32 %v1885, %v1904
          %v1907 = vsel %vm1295, %v1899, 0.0
          %1908 = vadd.xlane.f32.xlu0 %v1907
          %v1909 = vpop.xlane.xlu0 %1908
          %v1910 = vsel %vm1295, %v1901, 0.0
          %1911 = vadd.xlane.f32.xlu0 %v1910
          %v1912 = vpop.xlane.xlu0 %1911
          %v1913 = vadd.f32 %v1905, %v1909
          %v1914 = vadd.f32 %v1906, %v1912
          %1915 = vst.msk [vmem:[%s1902] sm:$0xff] %vm1338, %v1913
          %1916 = vst.msk [vmem:[%s1902 + $0x8] sm:$0xff] %vm1338, %v1914
          %s1917 = scalar_lea.vmem [#allocation4], 48
          %v1918 = vld [vmem:[%s1917] sm:$0xff]
          %v1919 = vld [vmem:[%s1917 + $0x8] sm:$0xff]
          %1921 = vset.pattern.permute.xlu0 0
          %1922 = vperm.xlu0 %1921, %v1883
          %v1923 = vpop.permute.xlu0 %1922
          %1926 = vset.pattern.permute.xlu0 0
          %1927 = vperm.xlu0 %1926, %v1885
          %v1928 = vpop.permute.xlu0 %1927
          %v1930 = vmul.f32 %v1923, %v1918
          %v1931 = vmul.f32 %v1928, %v1919
          %v1932 = vpack.c.bf16 %v1901, %v1899
          %v1935 = vunpack.c.l.b16 %v1802
          %v1936 = vunpack.c.l.b16 %v1803
          %v1937 = vpack.c.b16 %v1936, %v1935
          %1938 = vrot.lane.b32.xlu0 %v1937, 104
          %v1939 = vpop.permute.xlu0 %1938
          %v1942 = vsel %vm1295, %v1932, 0
          %1944 = vmatprep.subr.bf16.mxu0 0
          %1945 = vmatpush1.bf16.msra.mxu0 0
          %1946 = vmatprep.subr.bf16.mxu0 0
          %1947 = vmatpush1.bf16.msra.mxu0 0
          %1948 = vmatprep.subr.bf16.mxu0 0
          %1949 = vmatpush1.bf16.msra.mxu0 0
          %1950 = vmatprep.subr.bf16.mxu0 0
          %1951 = vmatpush1.bf16.msra.mxu0 0
          %1952 = vmatprep.subr.bf16.mxu0 0
          %1953 = vmatpush1.bf16.msra.mxu0 0
          %1954 = vmatprep.subr.bf16.mxu0 0
          %1955 = vmatpush1.bf16.msra.mxu0 0
          %1956 = vmatprep.subr.bf16.mxu0 0
          %1957 = vmatpush1.bf16.msra.mxu0 0
          %1958 = vmatprep.subr.bf16.mxu0 0
          %1959 = vmatpush1.bf16.msra.mxu0 %v1939
          %1960 = vmatprep.subr.bf16.mxu0 0
          %1961 = vmatpush2.bf16.msra.mxu0 0
          %1962 = vmatprep.subr.bf16.mxu0 0
          %1963 = vmatpush2.bf16.msra.mxu0 0
          %1964 = vmatprep.subr.bf16.mxu0 0
          %1965 = vmatpush2.bf16.msra.mxu0 0
          %1966 = vmatprep.subr.bf16.mxu0 0
          %1967 = vmatpush2.bf16.msra.mxu0 0
          %1968 = vmatprep.subr.bf16.mxu0 0
          %1969 = vmatpush2.bf16.msra.mxu0 0
          %1970 = vmatprep.subr.bf16.mxu0 0
          %1971 = vmatpush2.bf16.msra.mxu0 0
          %1972 = vmatprep.subr.bf16.mxu0 0
          %1973 = vmatpush2.bf16.msra.mxu0 0
          %1974 = vmatprep.subr.bf16.mxu0 0
          %1975 = vmatpush2.bf16.msra.mxu0 0
          %1976 = vmatprep.mubr.bf16.mxu0 0
          %1977 = vmatmul.mubr.bf16.gmra.mxu0 %v1942
          %v1978 = vpop.f32.mrf.mxu0
          %v1979 = vadd.f32 0.0, %v1978
          %v1980 = vpop.f32.mrf.mxu0
          %v1981 = vpop.f32.mrf.mxu0
          %v1982 = vadd.f32 0.0, %v1981
          %v1983 = vpop.f32.mrf.mxu0
          %1984 = vdwg.mxu0
          %v1985 = vadd.f32 %v1930, %v1979
          %v1986 = vadd.f32 %v1931, %v1982
          %1987 = vst.msk [vmem:[%s1917] sm:$0xff] %vm1241, %v1985
          %1988 = vst.msk [vmem:[%s1917 + $0x8] sm:$0xff] %vm1241, %v1986
          %1989 = vst.msk [vmem:[%s1869] sm:$0xff] %vm1338, %v1878
          %1990 = vst.msk [vmem:[%s1869 + $0x8] sm:$0xff] %vm1338, %v1879
          %v1991 = vld [vmem:[#allocation4] sm:$0xff]
          %v1992 = vld [vmem:[#allocation4 + $0x8] sm:$0xff]
          %v1993 = vld [vmem:[#allocation3] sm:$0xff]
          %v1994 = vld [vmem:[#allocation3 + $0x8] sm:$0xff]
          %v1995 = vrcp.pop %v1993
          %v1996 = vrcp.pop %v1994
          %1998 = vset.pattern.permute.xlu0 0
          %1999 = vperm.xlu0 %1998, %v1995
          %v2000 = vpop.permute.xlu0 %1999
          %2003 = vset.pattern.permute.xlu0 0
          %2004 = vperm.xlu0 %2003, %v1996
          %v2005 = vpop.permute.xlu0 %2004
          %v2007 = vmul.f32 %v1991, %v2000
          %v2008 = vmul.f32 %v1992, %v2005
          %v2009 = vld [vmem:[%s1531] sm:$0xff]
          %v2010 = vld [vmem:[%s1531 + $0x8] sm:$0xff]
          %v2011 = vld [vmem:[%s1516] sm:$0xff]
          %v2012 = vld [vmem:[%s1516 + $0x8] sm:$0xff]
          %v2013 = vrcp.pop %v2011
          %v2014 = vrcp.pop %v2012
          %2016 = vset.pattern.permute.xlu0 0
          %2017 = vperm.xlu0 %2016, %v2013
          %v2018 = vpop.permute.xlu0 %2017
          %2021 = vset.pattern.permute.xlu0 0
          %2022 = vperm.xlu0 %2021, %v2014
          %v2023 = vpop.permute.xlu0 %2022
          %v2025 = vmul.f32 %v2009, %v2018
          %v2026 = vmul.f32 %v2010, %v2023
          %v2027 = vld [vmem:[%s1724] sm:$0xff]
          %v2028 = vld [vmem:[%s1724 + $0x8] sm:$0xff]
          %v2029 = vld [vmem:[%s1709] sm:$0xff]
          %v2030 = vld [vmem:[%s1709 + $0x8] sm:$0xff]
          %v2031 = vrcp.pop %v2029
          %v2032 = vrcp.pop %v2030
          %2034 = vset.pattern.permute.xlu0 0
          %2035 = vperm.xlu0 %2034, %v2031
          %v2036 = vpop.permute.xlu0 %2035
          %2039 = vset.pattern.permute.xlu0 0
          %2040 = vperm.xlu0 %2039, %v2032
          %v2041 = vpop.permute.xlu0 %2040
          %v2043 = vmul.f32 %v2027, %v2036
          %v2044 = vmul.f32 %v2028, %v2041
          %v2045 = vld [vmem:[%s1917] sm:$0xff]
          %v2046 = vld [vmem:[%s1917 + $0x8] sm:$0xff]
          %v2047 = vld [vmem:[%s1902] sm:$0xff]
          %v2048 = vld [vmem:[%s1902 + $0x8] sm:$0xff]
          %v2049 = vrcp.pop %v2047
          %v2050 = vrcp.pop %v2048
          %2052 = vset.pattern.permute.xlu0 0
          %2053 = vperm.xlu0 %2052, %v2049
          %v2054 = vpop.permute.xlu0 %2053
          %2057 = vset.pattern.permute.xlu0 0
          %2058 = vperm.xlu0 %2057, %v2050
          %v2059 = vpop.permute.xlu0 %2058
          %v2061 = vmul.f32 %v2045, %v2054
          %v2062 = vmul.f32 %v2046, %v2059
          %2065 = vrot.lane.b32.xlu0 %v2025, 8
          %v2066 = vpop.permute.xlu0 %2065
          %2067 = vrot.lane.b32.xlu0 %v2026, 8
          %v2068 = vpop.permute.xlu0 %2067
          %2073 = vrot.lane.b32.xlu0 %v2043, 16
          %v2074 = vpop.permute.xlu0 %2073
          %2075 = vrot.lane.b32.xlu0 %v2044, 16
          %v2076 = vpop.permute.xlu0 %2075
          %2081 = vrot.lane.b32.xlu0 %v2061, 24
          %v2082 = vpop.permute.xlu0 %2081
          %2083 = vrot.lane.b32.xlu0 %v2062, 24
          %v2084 = vpop.permute.xlu0 %2083
          %v2087 = vsel %vm1241, %v2007, %v2066
          %v2088 = vsel %vm1241, %v2008, %v2068
          %v2089 = vsel %vm1295, %v2087, %v2074
          %v2090 = vsel %vm1295, %v2088, %v2076
          %vm2091 = vcmask 195584
          %v2092 = vsel %vm2091, %v2089, %v2082
          %v2093 = vsel %vm2091, %v2090, %v2084
          %vm2094 = vcmask 261120
          %v2095 = vsel %vm2094, %v2092, 0.0
          %v2096 = vsel %vm2094, %v2093, 0.0
          %v2097 = vpack.c.bf16 %v2096, %v2095
          %v2099 = vunpack.c.l.b16 %v2097
          %v2100 = vunpack.c.h.b16 %v2097
          %v2101 = vpack.c.b16 %v2099, %v2099
          %v2102 = vpack.c.b16 %v2100, %v2100
          %2105 = vst [vmem:[%s419] sm:$0xf] %v2101
          %2106 = vst [vmem:[%s419 + $0x4] sm:$0xf] %v2102
        $region167: #{gpt_forward.10} parent=142 // pred_fallthru
          _
        %s2107 = smul.u32 2, %s20
        %p2108 = scmp.lt.s32.totalorder %s19, 1
        %s2109 = scalar_select %p2108, %s19, 1
        %p2110 = scmp.lt.s32.totalorder %s2107, 1
        %s2111 = scalar_select %p2110, %s2107, 1
        %s2112 = smul.addr %s2109, 2
        %s2113 = sadd.s32 %s2111, %s2112
        %s2114 = smul.addr %s2113, 4
        %s2115 = scalar_lea.vmem %s3, %s2114
        // Predicated region
        $region168: #{gpt_forward.10} parent=142 // pred_check
          %p2116 = pneg %p145
        $region169: #{gpt_forward.10} parent=142 // pred_check_branch
          %2118 = sbr.rel (%p2116) target = $region171
        $region170: #{gpt_forward.10} parent=142 // pred_region
          %s2119 = smul.u32 2, %s20
        $region171: #{gpt_forward.10} parent=142 // pred_fallthru
          _
      $region143: #{gpt_forward.10} parent=5 // pred_fallthru
        _
      %p2120 = scmp.le.s32.totalorder 2, %s9
      // Predicated region
      $region172: #{gpt_forward.10} parent=5 // pred_check
        %p2121 = pneg %p2120
      $region173: #{gpt_forward.10} parent=5 // pred_check_branch
        %2123 = sbr.rel (%p2121) target = $region175
      $region174: #{gpt_forward.10} parent=5 // pred_region
        %s2124 = ssub.s32 %s9, 2
        // Predicated region
        $region176: #{gpt_forward.10} parent=174 // pred_check
          %p2125 = pneg %p151
        $region177: #{gpt_forward.10} parent=174 // pred_check_branch
          %2127 = sbr.rel (%p2125) target = $region179
        $region178: #{gpt_forward.10} parent=174 // pred_region
          %s2128 = smul.u32 2, %s23
          %p2129 = scmp.lt.s32.totalorder %s22, 1
          %s2130 = scalar_select %p2129, %s22, 1
          %p2131 = scmp.lt.s32.totalorder %s2128, 1
          %s2132 = scalar_select %p2131, %s2128, 1
          %s2133 = smul.addr %s2130, 2
          %s2134 = sadd.s32 %s2132, %s2133
          %s2135 = smul.addr %s2134, 4
          %s2136 = scalar_lea.vmem %s3, %s2135
        $region179: #{gpt_forward.10} parent=174 // pred_fallthru
          _
      $region175: #{gpt_forward.10} parent=5 // pred_fallthru
        _
    $region6: #{gpt_forward.10} parent=1 // loop_footer
      %s13 = sadd.s32 1, %s9
    $region7: #{gpt_forward.10} parent=1 // loop_footer_branch
      %8 = sbr.rel target = $region3
    $region8: #{gpt_forward.10} parent=1 // loop_exit
      _

// kernel: gpt_forward.17
$region0: #{gpt_forward.17}
  #allocation0 [shape = 'u32[]', space=smem, size = 0x4, offset = 0x4, fixed_abs, tag = 'smem constant byte address 0x4 - core index']
  #allocation1 [shape = 'u32[144,128]{1,0:T(1,128)}', space=vmem, size = 0x12000, scoped, tag = 'internal scratch']
  #allocation2 [shape = 'f32[32,128]{1,0:T(8,128)}', space=vmem, size = 0x4000, scoped, tag = 'scratch operand']
  %s0 = inlined_call_operand.vmem [shape: bf16[32,128], index: 0, kind: input, shape index: {}]
  %s1 = inlined_call_operand.vmem [shape: bf16[128,128], index: 1, kind: input, shape index: {}]
  %s2 = inlined_call_operand.vmem [shape: f32[1,128], index: 2, kind: input, shape index: {}]
  %s3 = inlined_call_operand.vmem [shape: f32[32,128], index: 3, kind: output, shape index: {}]
  %s4 = sld [smem:[#allocation0]]
  $region30: #{gpt_forward.17} parent=0
    _
  %s6 = ssub.s32 1, %s4
  %s7 = scalar_select 0, %s6, %s4
  // Predicated region
  $region2: #{gpt_forward.17} parent=0 // pred_check
    _
  $region3: #{gpt_forward.17} parent=0 // pred_check_branch
    %9 = sbr.rel (0) target = $region5
  $region4: #{gpt_forward.17} parent=0 // pred_region
    _
  $region5: #{gpt_forward.17} parent=0 // pred_fallthru
    _
  // Predicated region
  $region6: #{gpt_forward.17} parent=0 // pred_check
    _
  $region7: #{gpt_forward.17} parent=0 // pred_check_branch
    %11 = sbr.rel (0) target = $region9
  $region8: #{gpt_forward.17} parent=0 // pred_region
    _
  $region9: #{gpt_forward.17} parent=0 // pred_fallthru
    _
  // Predicated region
  $region10: #{gpt_forward.17} parent=0 // pred_check
    _
  $region11: #{gpt_forward.17} parent=0 // pred_check_branch
    %13 = sbr.rel (0) target = $region13
  $region12: #{gpt_forward.17} parent=0 // pred_region
    _
  $region13: #{gpt_forward.17} parent=0 // pred_fallthru
    _
  %p15 = scmp.eq.s32.totalorder 0, 0
  // Predicated region
  $region14: #{gpt_forward.17} parent=0 // pred_check
    %p16 = pneg %p15
  $region15: #{gpt_forward.17} parent=0 // pred_check_branch
    %18 = sbr.rel (%p16) target = $region17
  $region16: #{gpt_forward.17} parent=0 // pred_region
    %19 = vst [vmem:[#allocation2] sm:$0xff] 0.0
    %20 = vst [vmem:[#allocation2 + $0x8] sm:$0xff] 0.0
    %21 = vst [vmem:[#allocation2 + $0x10] sm:$0xff] 0.0
    %22 = vst [vmem:[#allocation2 + $0x18] sm:$0xff] 0.0
  $region17: #{gpt_forward.17} parent=0 // pred_fallthru
    _
  %v23 = vld [vmem:[#allocation2] sm:$0xff]
  %v24 = vld [vmem:[#allocation2 + $0x8] sm:$0xff]
  %v25 = vld [vmem:[#allocation2 + $0x10] sm:$0xff]
  %v26 = vld [vmem:[#allocation2 + $0x18] sm:$0xff]
  %v27 = vld [vmem:[%s0] sm:$0xf]
  %v28 = vld [vmem:[%s0 + $0x4] sm:$0xf]
  %v29 = vld [vmem:[%s0 + $0x8] sm:$0xf]
  %v30 = vld [vmem:[%s0 + $0xc] sm:$0xf]
  %v31 = vld [vmem:[%s1] sm:$0xf]
  %v32 = vld [vmem:[%s1 + $0x4] sm:$0xf]
  %v33 = vld [vmem:[%s1 + $0x8] sm:$0xf]
  %v34 = vld [vmem:[%s1 + $0xc] sm:$0xf]
  %v35 = vld [vmem:[%s1 + $0x10] sm:$0xf]
  %v36 = vld [vmem:[%s1 + $0x14] sm:$0xf]
  %v37 = vld [vmem:[%s1 + $0x18] sm:$0xf]
  %v38 = vld [vmem:[%s1 + $0x1c] sm:$0xf]
  %v39 = vld [vmem:[%s1 + $0x20] sm:$0xf]
  %v40 = vld [vmem:[%s1 + $0x24] sm:$0xf]
  %v41 = vld [vmem:[%s1 + $0x28] sm:$0xf]
  %v42 = vld [vmem:[%s1 + $0x2c] sm:$0xf]
  %v43 = vld [vmem:[%s1 + $0x30] sm:$0xf]
  %v44 = vld [vmem:[%s1 + $0x34] sm:$0xf]
  %v45 = vld [vmem:[%s1 + $0x38] sm:$0xf]
  %v46 = vld [vmem:[%s1 + $0x3c] sm:$0xf]
  %v51 = vunpack.c.l.b16 %v27
  %v52 = vunpack.c.l.b16 %v28
  %v53 = vunpack.c.l.b16 %v29
  %v54 = vunpack.c.l.b16 %v30
  %v55 = vpack.c.b16 %v52, %v51
  %v56 = vpack.c.b16 %v54, %v53
  %v75 = vunpack.c.l.b16 %v31
  %v76 = vunpack.c.l.b16 %v32
  %v77 = vunpack.c.l.b16 %v33
  %v78 = vunpack.c.l.b16 %v34
  %v79 = vunpack.c.l.b16 %v35
  %v80 = vunpack.c.l.b16 %v36
  %v81 = vunpack.c.l.b16 %v37
  %v82 = vunpack.c.l.b16 %v38
  %v83 = vunpack.c.l.b16 %v39
  %v84 = vunpack.c.l.b16 %v40
  %v85 = vunpack.c.l.b16 %v41
  %v86 = vunpack.c.l.b16 %v42
  %v87 = vunpack.c.l.b16 %v43
  %v88 = vunpack.c.l.b16 %v44
  %v89 = vunpack.c.l.b16 %v45
  %v90 = vunpack.c.l.b16 %v46
  %v91 = vpack.c.b16 %v76, %v75
  %v92 = vpack.c.b16 %v78, %v77
  %v93 = vpack.c.b16 %v80, %v79
  %v94 = vpack.c.b16 %v82, %v81
  %v95 = vpack.c.b16 %v84, %v83
  %v96 = vpack.c.b16 %v86, %v85
  %v97 = vpack.c.b16 %v88, %v87
  %v98 = vpack.c.b16 %v90, %v89
  %107 = vmatprep.subr.bf16.mxu0 0
  %108 = vmatpush1.bf16.msra.mxu0 %v98
  %109 = vmatprep.subr.bf16.mxu0 0
  %110 = vmatpush1.bf16.msra.mxu0 %v97
  %111 = vmatprep.subr.bf16.mxu0 0
  %112 = vmatpush1.bf16.msra.mxu0 %v96
  %113 = vmatprep.subr.bf16.mxu0 0
  %114 = vmatpush1.bf16.msra.mxu0 %v95
  %115 = vmatprep.subr.bf16.mxu0 0
  %116 = vmatpush1.bf16.msra.mxu0 %v94
  %117 = vmatprep.subr.bf16.mxu0 0
  %118 = vmatpush1.bf16.msra.mxu0 %v93
  %119 = vmatprep.subr.bf16.mxu0 0
  %120 = vmatpush1.bf16.msra.mxu0 %v92
  %121 = vmatprep.subr.bf16.mxu0 0
  %122 = vmatpush1.bf16.msra.mxu0 %v91
  %123 = vmatprep.subr.bf16.mxu0 0
  %124 = vmatpush2.bf16.msra.mxu0 0
  %125 = vmatprep.subr.bf16.mxu0 0
  %126 = vmatpush2.bf16.msra.mxu0 0
  %127 = vmatprep.subr.bf16.mxu0 0
  %128 = vmatpush2.bf16.msra.mxu0 0
  %129 = vmatprep.subr.bf16.mxu0 0
  %130 = vmatpush2.bf16.msra.mxu0 0
  %131 = vmatprep.subr.bf16.mxu0 0
  %132 = vmatpush2.bf16.msra.mxu0 0
  %133 = vmatprep.subr.bf16.mxu0 0
  %134 = vmatpush2.bf16.msra.mxu0 0
  %135 = vmatprep.subr.bf16.mxu0 0
  %136 = vmatpush2.bf16.msra.mxu0 0
  %137 = vmatprep.subr.bf16.mxu0 0
  %138 = vmatpush2.bf16.msra.mxu0 0
  %139 = vmatprep.mubr.bf16.mxu0 0
  %140 = vmatmul.mubr.bf16.gmra.mxu0 %v55
  %v141 = vpop.f32.mrf.mxu0
  %v142 = vadd.f32 0.0, %v141
  %v143 = vpop.f32.mrf.mxu0
  %v144 = vpop.f32.mrf.mxu0
  %v145 = vadd.f32 0.0, %v144
  %v146 = vpop.f32.mrf.mxu0
  %147 = vmatprep.mubr.bf16.mxu0 0
  %148 = vmatmul.mubr.bf16.gmra.mxu0 %v56
  %v149 = vpop.f32.mrf.mxu0
  %v150 = vadd.f32 0.0, %v149
  %v151 = vpop.f32.mrf.mxu0
  %v152 = vpop.f32.mrf.mxu0
  %v153 = vadd.f32 0.0, %v152
  %v154 = vpop.f32.mrf.mxu0
  %155 = vdwg.mxu0
  %v156 = vadd.f32 %v23, %v142
  %v157 = vadd.f32 %v24, %v145
  %v158 = vadd.f32 %v25, %v150
  %v159 = vadd.f32 %v26, %v153
  %160 = vst [vmem:[#allocation2] sm:$0xff] %v156
  %161 = vst [vmem:[#allocation2 + $0x8] sm:$0xff] %v157
  %162 = vst [vmem:[#allocation2 + $0x10] sm:$0xff] %v158
  %163 = vst [vmem:[#allocation2 + $0x18] sm:$0xff] %v159
  // Predicated region
  $region18: #{gpt_forward.17} parent=0 // pred_check
    %p164 = pneg %p15
  $region19: #{gpt_forward.17} parent=0 // pred_check_branch
    %166 = sbr.rel (%p164) target = $region21
  $region20: #{gpt_forward.17} parent=0 // pred_region
    %v167 = vld [vmem:[#allocation2] sm:$0xff]
    %v168 = vld [vmem:[#allocation2 + $0x8] sm:$0xff]
    %v169 = vld [vmem:[#allocation2 + $0x10] sm:$0xff]
    %v170 = vld [vmem:[#allocation2 + $0x18] sm:$0xff]
    %v171 = vld [vmem:[%s2] sm:$0x1]
    %v173 = vlaneseq
    %v174 = vshrl.u32 %v173, 7
    %v175 = vsub.s32 0, %v174
    %v176 = vrot.slane %v171, %v175
    %v178 = vadd.f32 %v167, %v176
    %v179 = vadd.f32 %v168, %v176
    %v180 = vadd.f32 %v169, %v176
    %v181 = vadd.f32 %v170, %v176
    %182 = vst [vmem:[%s3] sm:$0xff] %v178
    %183 = vst [vmem:[%s3 + $0x8] sm:$0xff] %v179
    %184 = vst [vmem:[%s3 + $0x10] sm:$0xff] %v180
    %185 = vst [vmem:[%s3 + $0x18] sm:$0xff] %v181
  $region21: #{gpt_forward.17} parent=0 // pred_fallthru
    _
  // Predicated region
  $region22: #{gpt_forward.17} parent=0 // pred_check
    _
  $region23: #{gpt_forward.17} parent=0 // pred_check_branch
    %187 = sbr.rel (0) target = $region25
  $region24: #{gpt_forward.17} parent=0 // pred_region
    _
  $region25: #{gpt_forward.17} parent=0 // pred_fallthru
    _
  // Predicated region
  $region26: #{gpt_forward.17} parent=0 // pred_check
    _
  $region27: #{gpt_forward.17} parent=0 // pred_check_branch
    %189 = sbr.rel (0) target = $region29
  $region28: #{gpt_forward.17} parent=0 // pred_region
    _
  $region29: #{gpt_forward.17} parent=0 // pred_fallthru
    _

</llo_original>
